<compile_context>
chip_gen: v6e
topology: v6e:2x2x1
jax: 0.10.0
libtpu: 0.0.40
codegen_flags: <defaults>
</compile_context>

<pallas_src>
import jax
import jax.numpy as jnp
from jax import lax
from jax.experimental import pallas as pl
from jax.experimental.pallas import tpu as pltpu


# ----------------------------------------------------------------------------
# Kernel
# ----------------------------------------------------------------------------
def csp_first_stage_kernel(x_ref, wd_ref, bd_ref, w0_ref, b0_ref,
                           w1_ref, b1_ref, wb1_ref, bb1_ref,
                           wb3_ref, bb3_ref, wb2_ref, bb2_ref,
                           wc0_ref, wc1_ref, bc_ref, o_ref):
    bf16 = jnp.bfloat16
    f32 = jnp.float32

    xw = x_ref[0]                           # (H, W2, 2*Cin) bf16, col pairs in lanes
    H, W2, two_cin = xw.shape
    Cin = two_cin // 2
    H2 = H // 2
    M = H2 * W2
    Chid = wb1_ref.shape[1]

    def lrelu(v):
        return jnp.where(v > 0, v, 0.01 * v)

    def mm(a, w_ref):                       # bf16 x bf16 -> f32 MXU matmul
        return jnp.dot(a.astype(bf16), w_ref[...], preferred_element_type=f32)

    # ---- downsample_conv: 3x3 / stride 2 / pad 1 as ONE K=9*Cin matmul -----
    # xw lanes: [0:Cin] = input column 2*w2, [Cin:2*Cin] = column 2*w2+1.
    zc = jnp.zeros((H, 1, two_cin), bf16)
    prev = jnp.concatenate([zc, xw[:, :W2 - 1, :]], axis=1)      # column pair w2-1
    # lane blocks: kx=0 -> col 2*w2-1, kx=1 -> col 2*w2, kx=2 -> col 2*w2+1
    wide = jnp.concatenate([prev[:, :, Cin:], xw], axis=-1)      # (H, W2, 3*Cin)
    wideh = wide.reshape(H2, 2, W2, 3 * Cin)
    r_mid = wideh[:, 0]                                          # rows 2*h2   (ky=1)
    r_dn = wideh[:, 1]                                           # rows 2*h2+1 (ky=2)
    zr = jnp.zeros((1, W2, 3 * Cin), bf16)
    r_up = jnp.concatenate([zr, r_dn[:H2 - 1]], axis=0)          # rows 2*h2-1 (ky=0)
    dcol = jnp.concatenate([r_up, r_mid, r_dn], axis=-1).reshape(M, 9 * Cin)
    d = lrelu(mm(dcol, wd_ref) + bd_ref[...])                    # (M, Cout) f32

    # ---- split_conv0 / split_conv1 (1x1) ------------------------------------
    x0 = lrelu(mm(d, w0_ref) + b0_ref[...])
    x1 = lrelu(mm(d, w1_ref) + b1_ref[...])

    # ---- CSPBlock: 1x1 -> 3x3 (pad 1) -> residual ---------------------------
    hblk = lrelu(mm(x1, wb1_ref) + bb1_ref[...])                 # (M, Chid)
    h3 = hblk.astype(bf16).reshape(H2, W2, Chid)
    zc2 = jnp.zeros((H2, 1, Chid), bf16)
    hx0 = jnp.concatenate([zc2, h3[:, :W2 - 1, :]], axis=1)      # col w2-1
    hx2 = jnp.concatenate([h3[:, 1:, :], zc2], axis=1)           # col w2+1
    hcat = jnp.concatenate([hx0, h3, hx2], axis=-1)              # (H2, W2, 3*Chid)
    zr2 = jnp.zeros((1, W2, 3 * Chid), bf16)
    hup = jnp.concatenate([zr2, hcat[:H2 - 1]], axis=0)          # row h2-1
    hdn = jnp.concatenate([hcat[1:], zr2], axis=0)               # row h2+1
    hcol = jnp.concatenate([hup, hcat, hdn], axis=-1).reshape(M, 9 * Chid)
    t = lrelu(mm(hcol, wb3_ref) + bb3_ref[...])                  # (M, Cout)
    x1 = x1 + t                                                  # residual (f32)

    # ---- blocks_conv tail 1x1 ------------------------------------------------
    x1 = lrelu(mm(x1, wb2_ref) + bb2_ref[...])

    # ---- concat([x0, x1]) + 1x1 conv, concat weight split in two -------------
    y = lrelu(mm(x0, wc0_ref) + mm(x1, wc1_ref) + bc_ref[...])   # (M, Cout)

    o_ref[0] = y.astype(o_ref.dtype)                             # lane-dense store


# ----------------------------------------------------------------------------
# Wrapper
# ----------------------------------------------------------------------------
def csp_first_stage(x_nhwc, p):
    """x_nhwc: (N, H, W, Cin) f32.  p: dict of BN-folded parameters."""
    N, H, W, Cin = x_nhwc.shape
    assert H % 2 == 0 and W % 2 == 0, "stride-2 conv path assumes even H, W"
    H2, W2 = H // 2, W // 2
    M = H2 * W2
    Cout = p['wd'].shape[-1]
    Chid = p['wb1'].shape[-1]
    bf16 = jnp.bfloat16

    # Pair adjacent input columns into the lane dim (free reshape at XLA level)
    # so the stride-2 conv needs no strided loads inside the kernel.
    x_k = x_nhwc.astype(bf16).reshape(N, H, W2, 2 * Cin)

    # Weights: BN already folded in; reshape 3x3 (HWIO) -> (9*Ci, Co), cast bf16.
    wd = p['wd'].reshape(9 * Cin, Cout).astype(bf16)
    wb3 = p['wb3'].reshape(9 * Chid, Cout).astype(bf16)
    w0 = p['w0'].astype(bf16)
    w1 = p['w1'].astype(bf16)
    wb1 = p['wb1'].astype(bf16)
    wb2 = p['wb2'].astype(bf16)
    wc0 = p['wc'][:Cout].astype(bf16)    # concat weight split: x0 half
    wc1 = p['wc'][Cout:].astype(bf16)    # concat weight split: x1 half

    def full(arr):
        return pl.BlockSpec(arr.shape, lambda n: (0, 0))

    out = pl.pallas_call(
        csp_first_stage_kernel,
        out_shape=jax.ShapeDtypeStruct((N, M, Cout), jnp.float32),
        grid_spec=pltpu.PrefetchScalarGridSpec(
            num_scalar_prefetch=0,
            grid=(N,),
            in_specs=[
                pl.BlockSpec((1, H, W2, 2 * Cin), lambda n: (n, 0, 0, 0)),
                full(wd), full(p['bd']),
                full(w0), full(p['b0']),
                full(w1), full(p['b1']),
                full(wb1), full(p['bb1']),
                full(wb3), full(p['bb3']),
                full(wb2), full(p['bb2']),
                full(wc0), full(wc1), full(p['bc']),
            ],
            out_specs=pl.BlockSpec((1, M, Cout), lambda n: (n, 0, 0)),
        ),
        compiler_params=pltpu.CompilerParams(
            dimension_semantics=("parallel",)),
    )(x_k, wd, p['bd'], w0, p['b0'], w1, p['b1'],
      wb1, p['bb1'], wb3, p['bb3'], wb2, p['bb2'], wc0, wc1, p['bc'])

    return out.reshape(N, H2, W2, Cout)


# ----------------------------------------------------------------------------
# Pure-JAX reference (bf16 matmul operands, f32 accumulation, same as kernel)
# ----------------------------------------------------------------------------
def _lrelu(v):
    return jnp.where(v > 0, v, 0.01 * v)


def ref_forward(x, p):
    bf16, f32 = jnp.bfloat16, jnp.float32

    def c1(a, w, b):
        y = jnp.einsum('nhwc,cd->nhwd', a.astype(bf16), w.astype(bf16),
                       preferred_element_type=f32)
        return _lrelu(y + b[0])

    def c3(a, w_hwio, b, stride):
        y = lax.conv_general_dilated(
            a.astype(bf16), w_hwio.astype(bf16), (stride, stride),
            ((1, 1), (1, 1)), dimension_numbers=('NHWC', 'HWIO', 'NHWC'),
            preferred_element_type=f32)
        return _lrelu(y + b[0])

    d = c3(x, p['wd'], p['bd'], 2)                      # downsample_conv
    x0 = c1(d, p['w0'], p['b0'])                        # split_conv0
    x1 = c1(d, p['w1'], p['b1'])                        # split_conv1
    h = c1(x1, p['wb1'], p['bb1'])                      # CSPBlock 1x1
    t = c3(h, p['wb3'], p['bb3'], 1)                    # CSPBlock 3x3
    x1 = x1 + t                                         # residual
    x1 = c1(x1, p['wb2'], p['bb2'])                     # blocks_conv tail 1x1
    cat = jnp.concatenate([x0, x1], axis=-1)
    return c1(cat, p['wc'], p['bc'])                    # concat_conv


# ----------------------------------------------------------------------------
# Parameter construction (synthetic weights, BN folded into scale/bias)
# ----------------------------------------------------------------------------
def _fold_bn(w_hwio, gamma, beta, mean, var, eps=1e-5):
    s = gamma / jnp.sqrt(var + eps)
    return w_hwio * s, (beta - mean * s)[None, :]


def _make_conv(key, kh, kw, cin, cout):
    ks = jax.random.split(key, 5)
    fan = float(kh * kw * cin)
    w = jax.random.normal(ks[0], (kh, kw, cin, cout), jnp.float32) / (fan ** 0.5)
    g = 1.0 + 0.1 * jax.random.normal(ks[1], (cout,), jnp.float32)
    b = 0.1 * jax.random.normal(ks[2], (cout,), jnp.float32)
    m = 0.1 * jax.random.normal(ks[3], (cout,), jnp.float32)
    v = jax.random.uniform(ks[4], (cout,), jnp.float32, minval=0.5, maxval=1.5)
    return _fold_bn(w, g, b, m, v)


if __name__ == "__main__":
    N, Cin, H, W = 2, 64, 16, 16      # input pseudo-image (NCHW convention)
    Cout = 128                        # out_channels
    Chid = Cin                        # CSPBlock hidden = in_channels

    key = jax.random.PRNGKey(0)
    k = jax.random.split(key, 8)

    x_nchw = jax.random.normal(k[0], (N, Cin, H, W), jnp.float32)
    x_nhwc = jnp.transpose(x_nchw, (0, 2, 3, 1))

    wd, bd = _make_conv(k[1], 3, 3, Cin, Cout)        # downsample_conv (3x3, s2)
    w0_, b0 = _make_conv(k[2], 1, 1, Cout, Cout)      # split_conv0
    w1_, b1 = _make_conv(k[3], 1, 1, Cout, Cout)      # split_conv1
    wb1_, bb1 = _make_conv(k[4], 1, 1, Cout, Chid)    # CSPBlock conv 1x1
    wb3, bb3 = _make_conv(k[5], 3, 3, Chid, Cout)     # CSPBlock conv 3x3
    wb2_, bb2 = _make_conv(k[6], 1, 1, Cout, Cout)    # blocks_conv tail 1x1
    wc_, bc = _make_conv(k[7], 1, 1, 2 * Cout, Cout)  # concat_conv

    params = dict(
        wd=wd, bd=bd,
        w0=w0_.reshape(Cout, Cout), b0=b0,
        w1=w1_.reshape(Cout, Cout), b1=b1,
        wb1=wb1_.reshape(Cout, Chid), bb1=bb1,
        wb3=wb3, bb3=bb3,
        wb2=wb2_.reshape(Cout, Cout), bb2=bb2,
        wc=wc_.reshape(2 * Cout, Cout), bc=bc,
    )

    out = csp_first_stage(x_nhwc, params)
    out = jax.block_until_ready(out)

    ref = ref_forward(x_nhwc, params)
    assert out.shape == (N, H // 2, W // 2, Cout)
    max_err = float(jnp.max(jnp.abs(out - ref)))
    assert jnp.allclose(out, ref, atol=5e-2, rtol=5e-2), max_err

    print("KERNEL_OK")
</pallas_src>

<mosaic_0001>
module attributes {stable_mosaic.version = 11 : i64} {
  func.func @csp_first_stage_kernel(%arg0: i32, %arg1: memref<1x16x8x128xbf16, #tpu.memory_space<vmem>>, %arg2: memref<576x128xbf16, #tpu.memory_space<vmem>>, %arg3: memref<1x128xf32, #tpu.memory_space<vmem>>, %arg4: memref<128x128xbf16, #tpu.memory_space<vmem>>, %arg5: memref<1x128xf32, #tpu.memory_space<vmem>>, %arg6: memref<128x128xbf16, #tpu.memory_space<vmem>>, %arg7: memref<1x128xf32, #tpu.memory_space<vmem>>, %arg8: memref<128x64xbf16, #tpu.memory_space<vmem>>, %arg9: memref<1x64xf32, #tpu.memory_space<vmem>>, %arg10: memref<576x128xbf16, #tpu.memory_space<vmem>>, %arg11: memref<1x128xf32, #tpu.memory_space<vmem>>, %arg12: memref<128x128xbf16, #tpu.memory_space<vmem>>, %arg13: memref<1x128xf32, #tpu.memory_space<vmem>>, %arg14: memref<128x128xbf16, #tpu.memory_space<vmem>>, %arg15: memref<128x128xbf16, #tpu.memory_space<vmem>>, %arg16: memref<1x128xf32, #tpu.memory_space<vmem>>, %arg17: memref<1x64x128xf32, #tpu.memory_space<vmem>>) attributes {dimension_semantics = [#tpu.dimension_semantics<parallel>], iteration_bounds = array<i64: 2>, scalar_prefetch = 0 : i64, scratch_operands = 0 : i64, tpu.core_type = #tpu.core_type<tc>, window_params = [{transform_indices = @transform_0, window_bounds = array<i64: 1, 16, 8, 128>}, {pipeline_mode = #tpu.pipeline_mode<synchronous>, transform_indices = @transform_1, window_bounds = array<i64: 576, 128>}, {pipeline_mode = #tpu.pipeline_mode<synchronous>, transform_indices = @transform_2, window_bounds = array<i64: 1, 128>}, {pipeline_mode = #tpu.pipeline_mode<synchronous>, transform_indices = @transform_3, window_bounds = array<i64: 128, 128>}, {pipeline_mode = #tpu.pipeline_mode<synchronous>, transform_indices = @transform_4, window_bounds = array<i64: 1, 128>}, {pipeline_mode = #tpu.pipeline_mode<synchronous>, transform_indices = @transform_5, window_bounds = array<i64: 128, 128>}, {pipeline_mode = #tpu.pipeline_mode<synchronous>, transform_indices = @transform_6, window_bounds = array<i64: 1, 128>}, {pipeline_mode = #tpu.pipeline_mode<synchronous>, transform_indices = @transform_7, window_bounds = array<i64: 128, 64>}, {pipeline_mode = #tpu.pipeline_mode<synchronous>, transform_indices = @transform_8, window_bounds = array<i64: 1, 64>}, {pipeline_mode = #tpu.pipeline_mode<synchronous>, transform_indices = @transform_9, window_bounds = array<i64: 576, 128>}, {pipeline_mode = #tpu.pipeline_mode<synchronous>, transform_indices = @transform_10, window_bounds = array<i64: 1, 128>}, {pipeline_mode = #tpu.pipeline_mode<synchronous>, transform_indices = @transform_11, window_bounds = array<i64: 128, 128>}, {pipeline_mode = #tpu.pipeline_mode<synchronous>, transform_indices = @transform_12, window_bounds = array<i64: 1, 128>}, {pipeline_mode = #tpu.pipeline_mode<synchronous>, transform_indices = @transform_13, window_bounds = array<i64: 128, 128>}, {pipeline_mode = #tpu.pipeline_mode<synchronous>, transform_indices = @transform_14, window_bounds = array<i64: 128, 128>}, {pipeline_mode = #tpu.pipeline_mode<synchronous>, transform_indices = @transform_15, window_bounds = array<i64: 1, 128>}, {transform_indices = @transform_16, window_bounds = array<i64: 1, 64, 128>}]} {
    %c0 = arith.constant 0 : index
    %c0_0 = arith.constant 0 : index
    %c0_1 = arith.constant 0 : index
    %c0_2 = arith.constant 0 : index
    %0 = vector.load %arg1[%c0, %c0_0, %c0_1, %c0_2] : memref<1x16x8x128xbf16, #tpu.memory_space<vmem>>, vector<1x16x8x128xbf16>
    %1 = vector.shape_cast %0 : vector<1x16x8x128xbf16> to vector<16x8x128xbf16>
    %cst = arith.constant 0.000000e+00 : bf16
    %2 = vector.broadcast %cst : bf16 to vector<16x1x128xbf16>
    %3 = vector.extract_strided_slice %1 {offsets = [0, 0, 0], sizes = [16, 7, 128], strides = [1, 1, 1]} : vector<16x8x128xbf16> to vector<16x7x128xbf16>
    %4 = tpu.concatenate %2, %3 in 1 : vector<16x1x128xbf16>, vector<16x7x128xbf16> -> vector<16x8x128xbf16>
    %5 = vector.extract_strided_slice %4 {offsets = [0, 0, 64], sizes = [16, 8, 64], strides = [1, 1, 1]} : vector<16x8x128xbf16> to vector<16x8x64xbf16>
    %6 = tpu.concatenate %5, %1 in 2 : vector<16x8x64xbf16>, vector<16x8x128xbf16> -> vector<16x8x192xbf16>
    %7 = vector.shape_cast %6 : vector<16x8x192xbf16> to vector<8x2x8x192xbf16>
    %8 = vector.extract_strided_slice %7 {offsets = [0, 0, 0, 0], sizes = [8, 1, 8, 192], strides = [1, 1, 1, 1]} : vector<8x2x8x192xbf16> to vector<8x1x8x192xbf16>
    %9 = vector.shape_cast %8 : vector<8x1x8x192xbf16> to vector<8x8x192xbf16>
    %10 = vector.extract_strided_slice %7 {offsets = [0, 1, 0, 0], sizes = [8, 1, 8, 192], strides = [1, 1, 1, 1]} : vector<8x2x8x192xbf16> to vector<8x1x8x192xbf16>
    %11 = vector.shape_cast %10 : vector<8x1x8x192xbf16> to vector<8x8x192xbf16>
    %cst_3 = arith.constant 0.000000e+00 : bf16
    %12 = vector.broadcast %cst_3 : bf16 to vector<1x8x192xbf16>
    %13 = vector.extract_strided_slice %11 {offsets = [0, 0, 0], sizes = [7, 8, 192], strides = [1, 1, 1]} : vector<8x8x192xbf16> to vector<7x8x192xbf16>
    %14 = tpu.concatenate %12, %13 in 0 : vector<1x8x192xbf16>, vector<7x8x192xbf16> -> vector<8x8x192xbf16>
    %15 = tpu.concatenate %14, %9, %11 in 2 : vector<8x8x192xbf16>, vector<8x8x192xbf16>, vector<8x8x192xbf16> -> vector<8x8x576xbf16>
    %16 = vector.shape_cast %15 : vector<8x8x576xbf16> to vector<64x576xbf16>
    %c0_4 = arith.constant 0 : index
    %c0_5 = arith.constant 0 : index
    %17 = vector.load %arg2[%c0_4, %c0_5] : memref<576x128xbf16, #tpu.memory_space<vmem>>, vector<576x128xbf16>
    %cst_6 = arith.constant dense<0.000000e+00> : vector<64x128xf32>
    %18 = tpu.matmul %16, %17, %cst_6 {dimension_numbers = #tpu.dot_dimension_numbers<[1], [0], [0], [1], [0, 0, 1, 1], [], []>} : vector<64x576xbf16>, vector<576x128xbf16>, vector<64x128xf32> -> vector<64x128xf32>
    %c0_7 = arith.constant 0 : index
    %c0_8 = arith.constant 0 : index
    %19 = vector.load %arg3[%c0_7, %c0_8] : memref<1x128xf32, #tpu.memory_space<vmem>>, vector<1x128xf32>
    %20 = vector.broadcast %19 : vector<1x128xf32> to vector<64x128xf32>
    %21 = arith.addf %18, %20 : vector<64x128xf32>
    %cst_9 = arith.constant 0.000000e+00 : f32
    %22 = vector.broadcast %cst_9 : f32 to vector<64x128xf32>
    %23 = arith.cmpf ogt, %21, %22 : vector<64x128xf32>
    %cst_10 = arith.constant 0.00999999977 : f32
    %24 = vector.broadcast %cst_10 : f32 to vector<64x128xf32>
    %25 = arith.mulf %24, %21 : vector<64x128xf32>
    %26 = arith.select %23, %21, %25 : vector<64x128xi1>, vector<64x128xf32>
    %27 = arith.truncf %26 : vector<64x128xf32> to vector<64x128xbf16>
    %c0_11 = arith.constant 0 : index
    %c0_12 = arith.constant 0 : index
    %28 = vector.load %arg4[%c0_11, %c0_12] : memref<128x128xbf16, #tpu.memory_space<vmem>>, vector<128x128xbf16>
    %cst_13 = arith.constant dense<0.000000e+00> : vector<64x128xf32>
    %29 = tpu.matmul %27, %28, %cst_13 {dimension_numbers = #tpu.dot_dimension_numbers<[1], [0], [0], [1], [0, 0, 1, 1], [], []>} : vector<64x128xbf16>, vector<128x128xbf16>, vector<64x128xf32> -> vector<64x128xf32>
    %c0_14 = arith.constant 0 : index
    %c0_15 = arith.constant 0 : index
    %30 = vector.load %arg5[%c0_14, %c0_15] : memref<1x128xf32, #tpu.memory_space<vmem>>, vector<1x128xf32>
    %31 = vector.broadcast %30 : vector<1x128xf32> to vector<64x128xf32>
    %32 = arith.addf %29, %31 : vector<64x128xf32>
    %cst_16 = arith.constant 0.000000e+00 : f32
    %33 = vector.broadcast %cst_16 : f32 to vector<64x128xf32>
    %34 = arith.cmpf ogt, %32, %33 : vector<64x128xf32>
    %cst_17 = arith.constant 0.00999999977 : f32
    %35 = vector.broadcast %cst_17 : f32 to vector<64x128xf32>
    %36 = arith.mulf %35, %32 : vector<64x128xf32>
    %37 = arith.select %34, %32, %36 : vector<64x128xi1>, vector<64x128xf32>
    %38 = arith.truncf %26 : vector<64x128xf32> to vector<64x128xbf16>
    %c0_18 = arith.constant 0 : index
    %c0_19 = arith.constant 0 : index
    %39 = vector.load %arg6[%c0_18, %c0_19] : memref<128x128xbf16, #tpu.memory_space<vmem>>, vector<128x128xbf16>
    %cst_20 = arith.constant dense<0.000000e+00> : vector<64x128xf32>
    %40 = tpu.matmul %38, %39, %cst_20 {dimension_numbers = #tpu.dot_dimension_numbers<[1], [0], [0], [1], [0, 0, 1, 1], [], []>} : vector<64x128xbf16>, vector<128x128xbf16>, vector<64x128xf32> -> vector<64x128xf32>
    %c0_21 = arith.constant 0 : index
    %c0_22 = arith.constant 0 : index
    %41 = vector.load %arg7[%c0_21, %c0_22] : memref<1x128xf32, #tpu.memory_space<vmem>>, vector<1x128xf32>
    %42 = vector.broadcast %41 : vector<1x128xf32> to vector<64x128xf32>
    %43 = arith.addf %40, %42 : vector<64x128xf32>
    %cst_23 = arith.constant 0.000000e+00 : f32
    %44 = vector.broadcast %cst_23 : f32 to vector<64x128xf32>
    %45 = arith.cmpf ogt, %43, %44 : vector<64x128xf32>
    %cst_24 = arith.constant 0.00999999977 : f32
    %46 = vector.broadcast %cst_24 : f32 to vector<64x128xf32>
    %47 = arith.mulf %46, %43 : vector<64x128xf32>
    %48 = arith.select %45, %43, %47 : vector<64x128xi1>, vector<64x128xf32>
    %49 = arith.truncf %48 : vector<64x128xf32> to vector<64x128xbf16>
    %c0_25 = arith.constant 0 : index
    %c0_26 = arith.constant 0 : index
    %50 = vector.load %arg8[%c0_25, %c0_26] : memref<128x64xbf16, #tpu.memory_space<vmem>>, vector<128x64xbf16>
    %cst_27 = arith.constant dense<0.000000e+00> : vector<64x64xf32>
    %51 = tpu.matmul %49, %50, %cst_27 {dimension_numbers = #tpu.dot_dimension_numbers<[1], [0], [0], [1], [0, 0, 1, 1], [], []>} : vector<64x128xbf16>, vector<128x64xbf16>, vector<64x64xf32> -> vector<64x64xf32>
    %c0_28 = arith.constant 0 : index
    %c0_29 = arith.constant 0 : index
    %52 = vector.load %arg9[%c0_28, %c0_29] : memref<1x64xf32, #tpu.memory_space<vmem>>, vector<1x64xf32>
    %53 = vector.broadcast %52 : vector<1x64xf32> to vector<64x64xf32>
    %54 = arith.addf %51, %53 : vector<64x64xf32>
    %cst_30 = arith.constant 0.000000e+00 : f32
    %55 = vector.broadcast %cst_30 : f32 to vector<64x64xf32>
    %56 = arith.cmpf ogt, %54, %55 : vector<64x64xf32>
    %cst_31 = arith.constant 0.00999999977 : f32
    %57 = vector.broadcast %cst_31 : f32 to vector<64x64xf32>
    %58 = arith.mulf %57, %54 : vector<64x64xf32>
    %59 = arith.select %56, %54, %58 : vector<64x64xi1>, vector<64x64xf32>
    %60 = arith.truncf %59 : vector<64x64xf32> to vector<64x64xbf16>
    %61 = vector.shape_cast %60 : vector<64x64xbf16> to vector<8x8x64xbf16>
    %cst_32 = arith.constant 0.000000e+00 : bf16
    %62 = vector.broadcast %cst_32 : bf16 to vector<8x1x64xbf16>
    %63 = vector.extract_strided_slice %61 {offsets = [0, 0, 0], sizes = [8, 7, 64], strides = [1, 1, 1]} : vector<8x8x64xbf16> to vector<8x7x64xbf16>
    %64 = tpu.concatenate %62, %63 in 1 : vector<8x1x64xbf16>, vector<8x7x64xbf16> -> vector<8x8x64xbf16>
    %65 = vector.extract_strided_slice %61 {offsets = [0, 1, 0], sizes = [8, 7, 64], strides = [1, 1, 1]} : vector<8x8x64xbf16> to vector<8x7x64xbf16>
    %66 = tpu.concatenate %65, %62 in 1 : vector<8x7x64xbf16>, vector<8x1x64xbf16> -> vector<8x8x64xbf16>
    %67 = tpu.concatenate %64, %61, %66 in 2 : vector<8x8x64xbf16>, vector<8x8x64xbf16>, vector<8x8x64xbf16> -> vector<8x8x192xbf16>
    %cst_33 = arith.constant 0.000000e+00 : bf16
    %68 = vector.broadcast %cst_33 : bf16 to vector<1x8x192xbf16>
    %69 = vector.extract_strided_slice %67 {offsets = [0, 0, 0], sizes = [7, 8, 192], strides = [1, 1, 1]} : vector<8x8x192xbf16> to vector<7x8x192xbf16>
    %70 = tpu.concatenate %68, %69 in 0 : vector<1x8x192xbf16>, vector<7x8x192xbf16> -> vector<8x8x192xbf16>
    %71 = vector.extract_strided_slice %67 {offsets = [1, 0, 0], sizes = [7, 8, 192], strides = [1, 1, 1]} : vector<8x8x192xbf16> to vector<7x8x192xbf16>
    %72 = tpu.concatenate %71, %68 in 0 : vector<7x8x192xbf16>, vector<1x8x192xbf16> -> vector<8x8x192xbf16>
    %73 = tpu.concatenate %70, %67, %72 in 2 : vector<8x8x192xbf16>, vector<8x8x192xbf16>, vector<8x8x192xbf16> -> vector<8x8x576xbf16>
    %74 = vector.shape_cast %73 : vector<8x8x576xbf16> to vector<64x576xbf16>
    %c0_34 = arith.constant 0 : index
    %c0_35 = arith.constant 0 : index
    %75 = vector.load %arg10[%c0_34, %c0_35] : memref<576x128xbf16, #tpu.memory_space<vmem>>, vector<576x128xbf16>
    %cst_36 = arith.constant dense<0.000000e+00> : vector<64x128xf32>
    %76 = tpu.matmul %74, %75, %cst_36 {dimension_numbers = #tpu.dot_dimension_numbers<[1], [0], [0], [1], [0, 0, 1, 1], [], []>} : vector<64x576xbf16>, vector<576x128xbf16>, vector<64x128xf32> -> vector<64x128xf32>
    %c0_37 = arith.constant 0 : index
    %c0_38 = arith.constant 0 : index
    %77 = vector.load %arg11[%c0_37, %c0_38] : memref<1x128xf32, #tpu.memory_space<vmem>>, vector<1x128xf32>
    %78 = vector.broadcast %77 : vector<1x128xf32> to vector<64x128xf32>
    %79 = arith.addf %76, %78 : vector<64x128xf32>
    %cst_39 = arith.constant 0.000000e+00 : f32
    %80 = vector.broadcast %cst_39 : f32 to vector<64x128xf32>
    %81 = arith.cmpf ogt, %79, %80 : vector<64x128xf32>
    %cst_40 = arith.constant 0.00999999977 : f32
    %82 = vector.broadcast %cst_40 : f32 to vector<64x128xf32>
    %83 = arith.mulf %82, %79 : vector<64x128xf32>
    %84 = arith.select %81, %79, %83 : vector<64x128xi1>, vector<64x128xf32>
    %85 = arith.addf %48, %84 : vector<64x128xf32>
    %86 = arith.truncf %85 : vector<64x128xf32> to vector<64x128xbf16>
    %c0_41 = arith.constant 0 : index
    %c0_42 = arith.constant 0 : index
    %87 = vector.load %arg12[%c0_41, %c0_42] : memref<128x128xbf16, #tpu.memory_space<vmem>>, vector<128x128xbf16>
    %cst_43 = arith.constant dense<0.000000e+00> : vector<64x128xf32>
    %88 = tpu.matmul %86, %87, %cst_43 {dimension_numbers = #tpu.dot_dimension_numbers<[1], [0], [0], [1], [0, 0, 1, 1], [], []>} : vector<64x128xbf16>, vector<128x128xbf16>, vector<64x128xf32> -> vector<64x128xf32>
    %c0_44 = arith.constant 0 : index
    %c0_45 = arith.constant 0 : index
    %89 = vector.load %arg13[%c0_44, %c0_45] : memref<1x128xf32, #tpu.memory_space<vmem>>, vector<1x128xf32>
    %90 = vector.broadcast %89 : vector<1x128xf32> to vector<64x128xf32>
    %91 = arith.addf %88, %90 : vector<64x128xf32>
    %cst_46 = arith.constant 0.000000e+00 : f32
    %92 = vector.broadcast %cst_46 : f32 to vector<64x128xf32>
    %93 = arith.cmpf ogt, %91, %92 : vector<64x128xf32>
    %cst_47 = arith.constant 0.00999999977 : f32
    %94 = vector.broadcast %cst_47 : f32 to vector<64x128xf32>
    %95 = arith.mulf %94, %91 : vector<64x128xf32>
    %96 = arith.select %93, %91, %95 : vector<64x128xi1>, vector<64x128xf32>
    %97 = arith.truncf %37 : vector<64x128xf32> to vector<64x128xbf16>
    %c0_48 = arith.constant 0 : index
    %c0_49 = arith.constant 0 : index
    %98 = vector.load %arg14[%c0_48, %c0_49] : memref<128x128xbf16, #tpu.memory_space<vmem>>, vector<128x128xbf16>
    %cst_50 = arith.constant dense<0.000000e+00> : vector<64x128xf32>
    %99 = tpu.matmul %97, %98, %cst_50 {dimension_numbers = #tpu.dot_dimension_numbers<[1], [0], [0], [1], [0, 0, 1, 1], [], []>} : vector<64x128xbf16>, vector<128x128xbf16>, vector<64x128xf32> -> vector<64x128xf32>
    %100 = arith.truncf %96 : vector<64x128xf32> to vector<64x128xbf16>
    %c0_51 = arith.constant 0 : index
    %c0_52 = arith.constant 0 : index
    %101 = vector.load %arg15[%c0_51, %c0_52] : memref<128x128xbf16, #tpu.memory_space<vmem>>, vector<128x128xbf16>
    %cst_53 = arith.constant dense<0.000000e+00> : vector<64x128xf32>
    %102 = tpu.matmul %100, %101, %cst_53 {dimension_numbers = #tpu.dot_dimension_numbers<[1], [0], [0], [1], [0, 0, 1, 1], [], []>} : vector<64x128xbf16>, vector<128x128xbf16>, vector<64x128xf32> -> vector<64x128xf32>
    %103 = arith.addf %99, %102 : vector<64x128xf32>
    %c0_54 = arith.constant 0 : index
    %c0_55 = arith.constant 0 : index
    %104 = vector.load %arg16[%c0_54, %c0_55] : memref<1x128xf32, #tpu.memory_space<vmem>>, vector<1x128xf32>
    %105 = vector.broadcast %104 : vector<1x128xf32> to vector<64x128xf32>
    %106 = arith.addf %103, %105 : vector<64x128xf32>
    %cst_56 = arith.constant 0.000000e+00 : f32
    %107 = vector.broadcast %cst_56 : f32 to vector<64x128xf32>
    %108 = arith.cmpf ogt, %106, %107 : vector<64x128xf32>
    %cst_57 = arith.constant 0.00999999977 : f32
    %109 = vector.broadcast %cst_57 : f32 to vector<64x128xf32>
    %110 = arith.mulf %109, %106 : vector<64x128xf32>
    %111 = arith.select %108, %106, %110 : vector<64x128xi1>, vector<64x128xf32>
    %c0_58 = arith.constant 0 : index
    %c0_59 = arith.constant 0 : index
    %c0_60 = arith.constant 0 : index
    %112 = vector.load %arg17[%c0_58, %c0_59, %c0_60] : memref<1x64x128xf32, #tpu.memory_space<vmem>>, vector<1x64x128xf32>
    %113 = vector.shape_cast %112 : vector<1x64x128xf32> to vector<64x128xf32>
    %114 = vector.shape_cast %111 : vector<64x128xf32> to vector<1x64x128xf32>
    tpu.vector_store %arg17[%c0_58, %c0_59, %c0_60], %114 {strides = array<i32>} : memref<1x64x128xf32, #tpu.memory_space<vmem>>, vector<1x64x128xf32>,
    return
  }
  func.func @transform_0(%arg0: i32) -> (i32, i32, i32, i32) {
    %c0_i32 = arith.constant 0 : i32
    %c0_i32_0 = arith.constant 0 : i32
    %c0_i32_1 = arith.constant 0 : i32
    %c0_i32_2 = arith.constant 0 : i32
    return %arg0, %c0_i32, %c0_i32_0, %c0_i32_1 : i32, i32, i32, i32
  }
  func.func @transform_1(%arg0: i32) -> (i32, i32) {
    %c0_i32 = arith.constant 0 : i32
    %c0_i32_0 = arith.constant 0 : i32
    %c0_i32_1 = arith.constant 0 : i32
    return %c0_i32, %c0_i32_0 : i32, i32
  }
  func.func @transform_2(%arg0: i32) -> (i32, i32) {
    %c0_i32 = arith.constant 0 : i32
    %c0_i32_0 = arith.constant 0 : i32
    %c0_i32_1 = arith.constant 0 : i32
    return %c0_i32, %c0_i32_0 : i32, i32
  }
  func.func @transform_3(%arg0: i32) -> (i32, i32) {
    %c0_i32 = arith.constant 0 : i32
    %c0_i32_0 = arith.constant 0 : i32
    %c0_i32_1 = arith.constant 0 : i32
    return %c0_i32, %c0_i32_0 : i32, i32
  }
  func.func @transform_4(%arg0: i32) -> (i32, i32) {
    %c0_i32 = arith.constant 0 : i32
    %c0_i32_0 = arith.constant 0 : i32
    %c0_i32_1 = arith.constant 0 : i32
    return %c0_i32, %c0_i32_0 : i32, i32
  }
  func.func @transform_5(%arg0: i32) -> (i32, i32) {
    %c0_i32 = arith.constant 0 : i32
    %c0_i32_0 = arith.constant 0 : i32
    %c0_i32_1 = arith.constant 0 : i32
    return %c0_i32, %c0_i32_0 : i32, i32
  }
  func.func @transform_6(%arg0: i32) -> (i32, i32) {
    %c0_i32 = arith.constant 0 : i32
    %c0_i32_0 = arith.constant 0 : i32
    %c0_i32_1 = arith.constant 0 : i32
    return %c0_i32, %c0_i32_0 : i32, i32
  }
  func.func @transform_7(%arg0: i32) -> (i32, i32) {
    %c0_i32 = arith.constant 0 : i32
    %c0_i32_0 = arith.constant 0 : i32
    %c0_i32_1 = arith.constant 0 : i32
    return %c0_i32, %c0_i32_0 : i32, i32
  }
  func.func @transform_8(%arg0: i32) -> (i32, i32) {
    %c0_i32 = arith.constant 0 : i32
    %c0_i32_0 = arith.constant 0 : i32
    %c0_i32_1 = arith.constant 0 : i32
    return %c0_i32, %c0_i32_0 : i32, i32
  }
  func.func @transform_9(%arg0: i32) -> (i32, i32) {
    %c0_i32 = arith.constant 0 : i32
    %c0_i32_0 = arith.constant 0 : i32
    %c0_i32_1 = arith.constant 0 : i32
    return %c0_i32, %c0_i32_0 : i32, i32
  }
  func.func @transform_10(%arg0: i32) -> (i32, i32) {
    %c0_i32 = arith.constant 0 : i32
    %c0_i32_0 = arith.constant 0 : i32
    %c0_i32_1 = arith.constant 0 : i32
    return %c0_i32, %c0_i32_0 : i32, i32
  }
  func.func @transform_11(%arg0: i32) -> (i32, i32) {
    %c0_i32 = arith.constant 0 : i32
    %c0_i32_0 = arith.constant 0 : i32
    %c0_i32_1 = arith.constant 0 : i32
    return %c0_i32, %c0_i32_0 : i32, i32
  }
  func.func @transform_12(%arg0: i32) -> (i32, i32) {
    %c0_i32 = arith.constant 0 : i32
    %c0_i32_0 = arith.constant 0 : i32
    %c0_i32_1 = arith.constant 0 : i32
    return %c0_i32, %c0_i32_0 : i32, i32
  }
  func.func @transform_13(%arg0: i32) -> (i32, i32) {
    %c0_i32 = arith.constant 0 : i32
    %c0_i32_0 = arith.constant 0 : i32
    %c0_i32_1 = arith.constant 0 : i32
    return %c0_i32, %c0_i32_0 : i32, i32
  }
  func.func @transform_14(%arg0: i32) -> (i32, i32) {
    %c0_i32 = arith.constant 0 : i32
    %c0_i32_0 = arith.constant 0 : i32
    %c0_i32_1 = arith.constant 0 : i32
    return %c0_i32, %c0_i32_0 : i32, i32
  }
  func.func @transform_15(%arg0: i32) -> (i32, i32) {
    %c0_i32 = arith.constant 0 : i32
    %c0_i32_0 = arith.constant 0 : i32
    %c0_i32_1 = arith.constant 0 : i32
    return %c0_i32, %c0_i32_0 : i32, i32
  }
  func.func @transform_16(%arg0: i32) -> (i32, i32, i32) {
    %c0_i32 = arith.constant 0 : i32
    %c0_i32_0 = arith.constant 0 : i32
    %c0_i32_1 = arith.constant 0 : i32
    return %arg0, %c0_i32, %c0_i32_0 : i32, i32, i32
  }
}

</mosaic_0001>

<llo_original>
// kernel: tpu_custom_call.1
$region0: #{tpu_custom_call.1}
  #allocation0 [shape = 'u32[]', space=smem, size = 0x4, offset = 0x4, fixed_abs, tag = 'smem constant byte address 0x4 - core index']
  #allocation1 [shape = 'u32[144,128]{1,0:T(1,128)}', space=vmem, size = 0x12000, scoped, tag = 'internal scratch']
  %s0 = inlined_call_operand.hbm [shape: bf16[2,16,8,128], index: 0, kind: input, shape index: {}]
  %s1 = inlined_call_operand.hbm [shape: bf16[576,128], index: 1, kind: input, shape index: {}]
  %s2 = inlined_call_operand.vmem [shape: f32[1,128], index: 2, kind: input, shape index: {}]
  %s3 = inlined_call_operand.vmem [shape: bf16[128,128], index: 3, kind: input, shape index: {}]
  %s4 = inlined_call_operand.vmem [shape: f32[1,128], index: 4, kind: input, shape index: {}]
  %s5 = inlined_call_operand.hbm [shape: bf16[128,128], index: 5, kind: input, shape index: {}]
  %s6 = inlined_call_operand.vmem [shape: f32[1,128], index: 6, kind: input, shape index: {}]
  %s7 = inlined_call_operand.vmem [shape: bf16[128,64], index: 7, kind: input, shape index: {}]
  %s8 = inlined_call_operand.vmem [shape: f32[1,64], index: 8, kind: input, shape index: {}]
  %s9 = inlined_call_operand.hbm [shape: bf16[576,128], index: 9, kind: input, shape index: {}]
  %s10 = inlined_call_operand.vmem [shape: f32[1,128], index: 10, kind: input, shape index: {}]
  %s11 = inlined_call_operand.hbm [shape: bf16[128,128], index: 11, kind: input, shape index: {}]
  %s12 = inlined_call_operand.vmem [shape: f32[1,128], index: 12, kind: input, shape index: {}]
  %s13 = inlined_call_operand.hbm [shape: bf16[128,128], index: 13, kind: input, shape index: {}]
  %s14 = inlined_call_operand.hbm [shape: bf16[128,128], index: 14, kind: input, shape index: {}]
  %s15 = inlined_call_operand.vmem [shape: f32[1,128], index: 15, kind: input, shape index: {}]
  %s16 = inlined_call_operand.hbm [shape: f32[2,64,128], index: 16, kind: output, shape index: {}]
  %s17 = sld [smem:[#allocation0]]
  $region125: #{tpu_custom_call.1} parent=0
    _
  %s19 = ssub.s32 1, %s17
  %s20 = scalar_select 0, %s19, %s17
  $region1: #{tpu_custom_call.1} parent=0
    #allocation2 [shape = 'u8[65536]{0}', space=vmem, size = 0x10000, scoped, tag = 'input window, operand 0']
    #allocation3 [shape = 's32[2]{0}', space=sflag, size = 0x8, scoped, tag = 'scoped memory for tpu_custom_call.1']
    #allocation4 [shape = 's32[2]{0}', space=sflag, size = 0x8, scoped, tag = 'scoped memory for tpu_custom_call.1']
    #allocation5 [shape = 'u8[147456]{0}', space=vmem, size = 0x24000, scoped, tag = 'input window, operand 1, single buffered']
    #allocation6 [shape = 's32[1]{0}', space=sflag, size = 0x4, scoped, tag = 'scoped memory for tpu_custom_call.1']
    #allocation7 [shape = 'u8[32768]{0}', space=vmem, size = 0x8000, scoped, tag = 'input window, operand 5, single buffered']
    #allocation8 [shape = 'u8[147456]{0}', space=vmem, size = 0x24000, scoped, tag = 'input window, operand 9, single buffered']
    #allocation9 [shape = 's32[1]{0}', space=sflag, size = 0x4, scoped, tag = 'scoped memory for tpu_custom_call.1']
    #allocation10 [shape = 'u8[32768]{0}', space=vmem, size = 0x8000, scoped, tag = 'input window, operand 11, single buffered']
    #allocation11 [shape = 'u8[32768]{0}', space=vmem, size = 0x8000, scoped, tag = 'input window, operand 13, single buffered']
    #allocation12 [shape = 's32[1]{0}', space=sflag, size = 0x4, scoped, tag = 'scoped memory for tpu_custom_call.1']
    #allocation13 [shape = 'u8[32768]{0}', space=vmem, size = 0x8000, scoped, tag = 'input window, operand 14, single buffered']
    #allocation14 [shape = 'u8[65536]{0}', space=vmem, size = 0x10000, scoped, tag = 'output window, operand 0']
    %21 = vsyncpa [#allocation3], 0
    %s22 = scalar_lea.sflag [#allocation3], 1
    %23 = vsyncpa %s22, 0
    %24 = vsyncpa [#allocation6], 0
    %25 = vsyncpa [#allocation9], 0
    %26 = vsyncpa [#allocation12], 0
    %27 = vsyncpa [#allocation4], 0
    %s28 = scalar_lea.sflag [#allocation4], 1
    %29 = vsyncpa %s28, 0
    loop: start=0, step=1, limit=4
    $region2: #{tpu_custom_call.1} parent=1 // loop_pre_header
      _
    $region3: #{tpu_custom_call.1} parent=1 // loop_header
      %s31 = sphi 0, %s35
      %p32 = scmp.ge.s32.totalorder %s31, 4
      %s41 = sphi 0, %s43
      %s44 = sphi 0, %s41
      %s45 = sphi 0, %s44
      %s61 = sphi 0, %s45
      %s65 = sphi 0, %s65
      %s67 = sphi 0, %s65
      %s68 = sphi 0, %s67
      %s82 = sphi 0, %s68
      %s86 = sphi 0, %s86
      %s88 = sphi 0, %s86
      %s89 = sphi 0, %s88
      %s103 = sphi 0, %s89
      %s107 = sphi 0, %s107
      %s109 = sphi 0, %s107
      %s110 = sphi 0, %s109
      %s124 = sphi 0, %s110
      %s128 = sphi 0, %s128
      %s130 = sphi 0, %s128
      %s131 = sphi 0, %s130
      %s145 = sphi 0, %s131
      %s149 = sphi 0, %s149
      %s151 = sphi 0, %s149
      %s152 = sphi 0, %s151
      %s166 = sphi 0, %s152
      %s170 = sphi 0, %s170
      %s172 = sphi 0, %s170
      %s173 = sphi 0, %s172
      %s187 = sphi 0, %s173
      %s191 = sphi 0, %s191
      %s193 = sphi 0, %s191
      %s194 = sphi 0, %s193
      %s208 = sphi 0, %s194
      %s212 = sphi 0, %s212
      %s214 = sphi 0, %s212
      %s215 = sphi 0, %s214
      %s229 = sphi 0, %s215
      %s233 = sphi 0, %s233
      %s235 = sphi 0, %s233
      %s236 = sphi 0, %s235
      %s250 = sphi 0, %s236
      %s254 = sphi 0, %s254
      %s256 = sphi 0, %s254
      %s257 = sphi 0, %s256
      %s271 = sphi 0, %s257
      %s275 = sphi 0, %s275
      %s277 = sphi 0, %s275
      %s278 = sphi 0, %s277
      %s292 = sphi 0, %s278
      %s296 = sphi 0, %s296
      %s298 = sphi 0, %s296
      %s299 = sphi 0, %s298
      %s313 = sphi 0, %s299
      %s317 = sphi 0, %s317
      %s319 = sphi 0, %s317
      %s320 = sphi 0, %s319
      %s334 = sphi 0, %s320
      %s338 = sphi 0, %s338
      %s340 = sphi 0, %s338
      %s341 = sphi 0, %s340
      %s355 = sphi 0, %s341
      %s359 = sphi 0, %s359
      %s361 = sphi 0, %s359
      %s362 = sphi 0, %s361
      %s376 = sphi 0, %s362
      %s382 = sphi 0, %s384
      %s385 = sphi 0, %s382
      %s386 = sphi 0, %s385
      %s402 = sphi 0, %s386
    $region4: #{tpu_custom_call.1} parent=1 // loop_header_branch
      %34 = sbr.rel (%p32) target = $region8
    $region5: #{tpu_custom_call.1} parent=1 // loop_body
      %s36 = ssub.s32 %s31, 1
      %s37 = ssub.s32 %s31, 2
      %s38 = sadd.s32 %s31, 1
      %s39 = ssub.s32 %s31, %s38
      %p40 = scmp.eq.s32.totalorder %s39, 0
      %s42 = sadd.s32 %s41, 1
      %s43 = scalar_select %p40, %s41, %s42
      %p46 = pneg %p40
      %p47 = scmp.eq.s32.totalorder %s31, 1
      %p48 = por %p46, %p47
      %p49 = scmp.ne.s32.totalorder %s41, %s44
      %p50 = scmp.eq.s32.totalorder %s31, 0
      %p51 = por %p49, %p50
      %p52 = scmp.ne.s32.totalorder %s41, %s44
      %p53 = scmp.eq.s32.totalorder %s36, 1
      %p54 = por %p52, %p53
      %p55 = scmp.ne.s32.totalorder %s44, %s45
      %p56 = scmp.eq.s32.totalorder %s36, 0
      %p57 = por %p55, %p56
      %p58 = scmp.ne.s32.totalorder %s44, %s45
      %p59 = scmp.eq.s32.totalorder %s37, 1
      %p60 = por %p58, %p59
      %p62 = scmp.ne.s32.totalorder %s45, %s61
      %p63 = scmp.eq.s32.totalorder %s37, 0
      %p64 = por %p62, %p63
      %s66 = sadd.s32 %s65, 1
      %p69 = scmp.eq.s32.totalorder %s31, 1
      %p70 = scmp.ne.s32.totalorder %s65, %s67
      %p71 = scmp.eq.s32.totalorder %s31, 0
      %p72 = por %p70, %p71
      %p73 = scmp.ne.s32.totalorder %s65, %s67
      %p74 = scmp.eq.s32.totalorder %s36, 1
      %p75 = por %p73, %p74
      %p76 = scmp.ne.s32.totalorder %s67, %s68
      %p77 = scmp.eq.s32.totalorder %s36, 0
      %p78 = por %p76, %p77
      %p79 = scmp.ne.s32.totalorder %s67, %s68
      %p80 = scmp.eq.s32.totalorder %s37, 1
      %p81 = por %p79, %p80
      %p83 = scmp.ne.s32.totalorder %s68, %s82
      %p84 = scmp.eq.s32.totalorder %s37, 0
      %p85 = por %p83, %p84
      %s87 = sadd.s32 %s86, 1
      %p90 = scmp.eq.s32.totalorder %s31, 1
      %p91 = scmp.ne.s32.totalorder %s86, %s88
      %p92 = scmp.eq.s32.totalorder %s31, 0
      %p93 = por %p91, %p92
      %p94 = scmp.ne.s32.totalorder %s86, %s88
      %p95 = scmp.eq.s32.totalorder %s36, 1
      %p96 = por %p94, %p95
      %p97 = scmp.ne.s32.totalorder %s88, %s89
      %p98 = scmp.eq.s32.totalorder %s36, 0
      %p99 = por %p97, %p98
      %p100 = scmp.ne.s32.totalorder %s88, %s89
      %p101 = scmp.eq.s32.totalorder %s37, 1
      %p102 = por %p100, %p101
      %p104 = scmp.ne.s32.totalorder %s89, %s103
      %p105 = scmp.eq.s32.totalorder %s37, 0
      %p106 = por %p104, %p105
      %s108 = sadd.s32 %s107, 1
      %p111 = scmp.eq.s32.totalorder %s31, 1
      %p112 = scmp.ne.s32.totalorder %s107, %s109
      %p113 = scmp.eq.s32.totalorder %s31, 0
      %p114 = por %p112, %p113
      %p115 = scmp.ne.s32.totalorder %s107, %s109
      %p116 = scmp.eq.s32.totalorder %s36, 1
      %p117 = por %p115, %p116
      %p118 = scmp.ne.s32.totalorder %s109, %s110
      %p119 = scmp.eq.s32.totalorder %s36, 0
      %p120 = por %p118, %p119
      %p121 = scmp.ne.s32.totalorder %s109, %s110
      %p122 = scmp.eq.s32.totalorder %s37, 1
      %p123 = por %p121, %p122
      %p125 = scmp.ne.s32.totalorder %s110, %s124
      %p126 = scmp.eq.s32.totalorder %s37, 0
      %p127 = por %p125, %p126
      %s129 = sadd.s32 %s128, 1
      %p132 = scmp.eq.s32.totalorder %s31, 1
      %p133 = scmp.ne.s32.totalorder %s128, %s130
      %p134 = scmp.eq.s32.totalorder %s31, 0
      %p135 = por %p133, %p134
      %p136 = scmp.ne.s32.totalorder %s128, %s130
      %p137 = scmp.eq.s32.totalorder %s36, 1
      %p138 = por %p136, %p137
      %p139 = scmp.ne.s32.totalorder %s130, %s131
      %p140 = scmp.eq.s32.totalorder %s36, 0
      %p141 = por %p139, %p140
      %p142 = scmp.ne.s32.totalorder %s130, %s131
      %p143 = scmp.eq.s32.totalorder %s37, 1
      %p144 = por %p142, %p143
      %p146 = scmp.ne.s32.totalorder %s131, %s145
      %p147 = scmp.eq.s32.totalorder %s37, 0
      %p148 = por %p146, %p147
      %s150 = sadd.s32 %s149, 1
      %p153 = scmp.eq.s32.totalorder %s31, 1
      %p154 = scmp.ne.s32.totalorder %s149, %s151
      %p155 = scmp.eq.s32.totalorder %s31, 0
      %p156 = por %p154, %p155
      %p157 = scmp.ne.s32.totalorder %s149, %s151
      %p158 = scmp.eq.s32.totalorder %s36, 1
      %p159 = por %p157, %p158
      %p160 = scmp.ne.s32.totalorder %s151, %s152
      %p161 = scmp.eq.s32.totalorder %s36, 0
      %p162 = por %p160, %p161
      %p163 = scmp.ne.s32.totalorder %s151, %s152
      %p164 = scmp.eq.s32.totalorder %s37, 1
      %p165 = por %p163, %p164
      %p167 = scmp.ne.s32.totalorder %s152, %s166
      %p168 = scmp.eq.s32.totalorder %s37, 0
      %p169 = por %p167, %p168
      %s171 = sadd.s32 %s170, 1
      %p174 = scmp.eq.s32.totalorder %s31, 1
      %p175 = scmp.ne.s32.totalorder %s170, %s172
      %p176 = scmp.eq.s32.totalorder %s31, 0
      %p177 = por %p175, %p176
      %p178 = scmp.ne.s32.totalorder %s170, %s172
      %p179 = scmp.eq.s32.totalorder %s36, 1
      %p180 = por %p178, %p179
      %p181 = scmp.ne.s32.totalorder %s172, %s173
      %p182 = scmp.eq.s32.totalorder %s36, 0
      %p183 = por %p181, %p182
      %p184 = scmp.ne.s32.totalorder %s172, %s173
      %p185 = scmp.eq.s32.totalorder %s37, 1
      %p186 = por %p184, %p185
      %p188 = scmp.ne.s32.totalorder %s173, %s187
      %p189 = scmp.eq.s32.totalorder %s37, 0
      %p190 = por %p188, %p189
      %s192 = sadd.s32 %s191, 1
      %p195 = scmp.eq.s32.totalorder %s31, 1
      %p196 = scmp.ne.s32.totalorder %s191, %s193
      %p197 = scmp.eq.s32.totalorder %s31, 0
      %p198 = por %p196, %p197
      %p199 = scmp.ne.s32.totalorder %s191, %s193
      %p200 = scmp.eq.s32.totalorder %s36, 1
      %p201 = por %p199, %p200
      %p202 = scmp.ne.s32.totalorder %s193, %s194
      %p203 = scmp.eq.s32.totalorder %s36, 0
      %p204 = por %p202, %p203
      %p205 = scmp.ne.s32.totalorder %s193, %s194
      %p206 = scmp.eq.s32.totalorder %s37, 1
      %p207 = por %p205, %p206
      %p209 = scmp.ne.s32.totalorder %s194, %s208
      %p210 = scmp.eq.s32.totalorder %s37, 0
      %p211 = por %p209, %p210
      %s213 = sadd.s32 %s212, 1
      %p216 = scmp.eq.s32.totalorder %s31, 1
      %p217 = scmp.ne.s32.totalorder %s212, %s214
      %p218 = scmp.eq.s32.totalorder %s31, 0
      %p219 = por %p217, %p218
      %p220 = scmp.ne.s32.totalorder %s212, %s214
      %p221 = scmp.eq.s32.totalorder %s36, 1
      %p222 = por %p220, %p221
      %p223 = scmp.ne.s32.totalorder %s214, %s215
      %p224 = scmp.eq.s32.totalorder %s36, 0
      %p225 = por %p223, %p224
      %p226 = scmp.ne.s32.totalorder %s214, %s215
      %p227 = scmp.eq.s32.totalorder %s37, 1
      %p228 = por %p226, %p227
      %p230 = scmp.ne.s32.totalorder %s215, %s229
      %p231 = scmp.eq.s32.totalorder %s37, 0
      %p232 = por %p230, %p231
      %s234 = sadd.s32 %s233, 1
      %p237 = scmp.eq.s32.totalorder %s31, 1
      %p238 = scmp.ne.s32.totalorder %s233, %s235
      %p239 = scmp.eq.s32.totalorder %s31, 0
      %p240 = por %p238, %p239
      %p241 = scmp.ne.s32.totalorder %s233, %s235
      %p242 = scmp.eq.s32.totalorder %s36, 1
      %p243 = por %p241, %p242
      %p244 = scmp.ne.s32.totalorder %s235, %s236
      %p245 = scmp.eq.s32.totalorder %s36, 0
      %p246 = por %p244, %p245
      %p247 = scmp.ne.s32.totalorder %s235, %s236
      %p248 = scmp.eq.s32.totalorder %s37, 1
      %p249 = por %p247, %p248
      %p251 = scmp.ne.s32.totalorder %s236, %s250
      %p252 = scmp.eq.s32.totalorder %s37, 0
      %p253 = por %p251, %p252
      %s255 = sadd.s32 %s254, 1
      %p258 = scmp.eq.s32.totalorder %s31, 1
      %p259 = scmp.ne.s32.totalorder %s254, %s256
      %p260 = scmp.eq.s32.totalorder %s31, 0
      %p261 = por %p259, %p260
      %p262 = scmp.ne.s32.totalorder %s254, %s256
      %p263 = scmp.eq.s32.totalorder %s36, 1
      %p264 = por %p262, %p263
      %p265 = scmp.ne.s32.totalorder %s256, %s257
      %p266 = scmp.eq.s32.totalorder %s36, 0
      %p267 = por %p265, %p266
      %p268 = scmp.ne.s32.totalorder %s256, %s257
      %p269 = scmp.eq.s32.totalorder %s37, 1
      %p270 = por %p268, %p269
      %p272 = scmp.ne.s32.totalorder %s257, %s271
      %p273 = scmp.eq.s32.totalorder %s37, 0
      %p274 = por %p272, %p273
      %s276 = sadd.s32 %s275, 1
      %p279 = scmp.eq.s32.totalorder %s31, 1
      %p280 = scmp.ne.s32.totalorder %s275, %s277
      %p281 = scmp.eq.s32.totalorder %s31, 0
      %p282 = por %p280, %p281
      %p283 = scmp.ne.s32.totalorder %s275, %s277
      %p284 = scmp.eq.s32.totalorder %s36, 1
      %p285 = por %p283, %p284
      %p286 = scmp.ne.s32.totalorder %s277, %s278
      %p287 = scmp.eq.s32.totalorder %s36, 0
      %p288 = por %p286, %p287
      %p289 = scmp.ne.s32.totalorder %s277, %s278
      %p290 = scmp.eq.s32.totalorder %s37, 1
      %p291 = por %p289, %p290
      %p293 = scmp.ne.s32.totalorder %s278, %s292
      %p294 = scmp.eq.s32.totalorder %s37, 0
      %p295 = por %p293, %p294
      %s297 = sadd.s32 %s296, 1
      %p300 = scmp.eq.s32.totalorder %s31, 1
      %p301 = scmp.ne.s32.totalorder %s296, %s298
      %p302 = scmp.eq.s32.totalorder %s31, 0
      %p303 = por %p301, %p302
      %p304 = scmp.ne.s32.totalorder %s296, %s298
      %p305 = scmp.eq.s32.totalorder %s36, 1
      %p306 = por %p304, %p305
      %p307 = scmp.ne.s32.totalorder %s298, %s299
      %p308 = scmp.eq.s32.totalorder %s36, 0
      %p309 = por %p307, %p308
      %p310 = scmp.ne.s32.totalorder %s298, %s299
      %p311 = scmp.eq.s32.totalorder %s37, 1
      %p312 = por %p310, %p311
      %p314 = scmp.ne.s32.totalorder %s299, %s313
      %p315 = scmp.eq.s32.totalorder %s37, 0
      %p316 = por %p314, %p315
      %s318 = sadd.s32 %s317, 1
      %p321 = scmp.eq.s32.totalorder %s31, 1
      %p322 = scmp.ne.s32.totalorder %s317, %s319
      %p323 = scmp.eq.s32.totalorder %s31, 0
      %p324 = por %p322, %p323
      %p325 = scmp.ne.s32.totalorder %s317, %s319
      %p326 = scmp.eq.s32.totalorder %s36, 1
      %p327 = por %p325, %p326
      %p328 = scmp.ne.s32.totalorder %s319, %s320
      %p329 = scmp.eq.s32.totalorder %s36, 0
      %p330 = por %p328, %p329
      %p331 = scmp.ne.s32.totalorder %s319, %s320
      %p332 = scmp.eq.s32.totalorder %s37, 1
      %p333 = por %p331, %p332
      %p335 = scmp.ne.s32.totalorder %s320, %s334
      %p336 = scmp.eq.s32.totalorder %s37, 0
      %p337 = por %p335, %p336
      %s339 = sadd.s32 %s338, 1
      %p342 = scmp.eq.s32.totalorder %s31, 1
      %p343 = scmp.ne.s32.totalorder %s338, %s340
      %p344 = scmp.eq.s32.totalorder %s31, 0
      %p345 = por %p343, %p344
      %p346 = scmp.ne.s32.totalorder %s338, %s340
      %p347 = scmp.eq.s32.totalorder %s36, 1
      %p348 = por %p346, %p347
      %p349 = scmp.ne.s32.totalorder %s340, %s341
      %p350 = scmp.eq.s32.totalorder %s36, 0
      %p351 = por %p349, %p350
      %p352 = scmp.ne.s32.totalorder %s340, %s341
      %p353 = scmp.eq.s32.totalorder %s37, 1
      %p354 = por %p352, %p353
      %p356 = scmp.ne.s32.totalorder %s341, %s355
      %p357 = scmp.eq.s32.totalorder %s37, 0
      %p358 = por %p356, %p357
      %s360 = sadd.s32 %s359, 1
      %p363 = scmp.eq.s32.totalorder %s31, 1
      %p364 = scmp.ne.s32.totalorder %s359, %s361
      %p365 = scmp.eq.s32.totalorder %s31, 0
      %p366 = por %p364, %p365
      %p367 = scmp.ne.s32.totalorder %s359, %s361
      %p368 = scmp.eq.s32.totalorder %s36, 1
      %p369 = por %p367, %p368
      %p370 = scmp.ne.s32.totalorder %s361, %s362
      %p371 = scmp.eq.s32.totalorder %s36, 0
      %p372 = por %p370, %p371
      %p373 = scmp.ne.s32.totalorder %s361, %s362
      %p374 = scmp.eq.s32.totalorder %s37, 1
      %p375 = por %p373, %p374
      %p377 = scmp.ne.s32.totalorder %s362, %s376
      %p378 = scmp.eq.s32.totalorder %s37, 0
      %p379 = por %p377, %p378
      %s380 = ssub.s32 %s31, %s38
      %p381 = scmp.eq.s32.totalorder %s380, 0
      %s383 = sadd.s32 %s382, 1
      %s384 = scalar_select %p381, %s382, %s383
      %p387 = pneg %p381
      %p388 = scmp.eq.s32.totalorder %s31, 1
      %p389 = por %p387, %p388
      %p390 = scmp.ne.s32.totalorder %s382, %s385
      %p391 = scmp.eq.s32.totalorder %s31, 0
      %p392 = por %p390, %p391
      %p393 = scmp.ne.s32.totalorder %s382, %s385
      %p394 = scmp.eq.s32.totalorder %s36, 1
      %p395 = por %p393, %p394
      %p396 = scmp.ne.s32.totalorder %s385, %s386
      %p397 = scmp.eq.s32.totalorder %s36, 0
      %p398 = por %p396, %p397
      %p399 = scmp.ne.s32.totalorder %s385, %s386
      %p400 = scmp.eq.s32.totalorder %s37, 1
      %p401 = por %p399, %p400
      %p403 = scmp.ne.s32.totalorder %s386, %s402
      %p404 = scmp.eq.s32.totalorder %s37, 0
      %p405 = por %p403, %p404
      %p406 = scmp.le.s32.totalorder 1, %s31
      %p407 = scmp.lt.s32.totalorder %s31, 3
      %p408 = pnand %p406, %p407
      %p409 = pneg %p408
      // Predicated region
      $region9: #{tpu_custom_call.1} parent=5 // pred_check
        _
      $region10: #{tpu_custom_call.1} parent=5 // pred_check_branch
        %411 = sbr.rel (%p408) target = $region12
      $region11: #{tpu_custom_call.1} parent=5 // pred_region
        %s412 = ssub.s32 %s31, 1
        // Predicated region
        $region13: #{tpu_custom_call.1} parent=11 // pred_check
          %p413 = pneg %p78
        $region14: #{tpu_custom_call.1} parent=11 // pred_check_branch
          %415 = sbr.rel (%p413) target = $region16
        $region15: #{tpu_custom_call.1} parent=11 // pred_region
          %s417 = ssub.s32 4608, 4608
          %418 = vsyncadd [#allocation6], %s417
          %s419 = sshll.u32 [#allocation5], 4
          %s420 = int_to_ptr.vmem [resolvable:$true] %s419
          %425 = dma.hbm_to_vmem [thread:$0]  %s1, 4608, %s420, [#allocation6], 64, 64, 4
        $region16: #{tpu_custom_call.1} parent=11 // pred_fallthru
          _
        // Predicated region
        $region17: #{tpu_custom_call.1} parent=11 // pred_check
          %p426 = pneg %p99
        $region18: #{tpu_custom_call.1} parent=11 // pred_check_branch
          %428 = sbr.rel (%p426) target = $region20
        $region19: #{tpu_custom_call.1} parent=11 // pred_region
          _
        $region20: #{tpu_custom_call.1} parent=11 // pred_fallthru
          _
        // Predicated region
        $region21: #{tpu_custom_call.1} parent=11 // pred_check
          %p429 = pneg %p120
        $region22: #{tpu_custom_call.1} parent=11 // pred_check_branch
          %431 = sbr.rel (%p429) target = $region24
        $region23: #{tpu_custom_call.1} parent=11 // pred_region
          _
        $region24: #{tpu_custom_call.1} parent=11 // pred_fallthru
          _
        // Predicated region
        $region25: #{tpu_custom_call.1} parent=11 // pred_check
          %p432 = pneg %p141
        $region26: #{tpu_custom_call.1} parent=11 // pred_check_branch
          %434 = sbr.rel (%p432) target = $region28
        $region27: #{tpu_custom_call.1} parent=11 // pred_region
          _
        $region28: #{tpu_custom_call.1} parent=11 // pred_fallthru
          _
        // Predicated region
        $region29: #{tpu_custom_call.1} parent=11 // pred_check
          %p435 = pneg %p162
        $region30: #{tpu_custom_call.1} parent=11 // pred_check_branch
          %437 = sbr.rel (%p435) target = $region32
        $region31: #{tpu_custom_call.1} parent=11 // pred_region
          %s439 = ssub.s32 1024, 1024
          %440 = vsyncadd [#allocation6], %s439
          %s441 = sshll.u32 [#allocation7], 4
          %s442 = int_to_ptr.vmem [resolvable:$true] %s441
          %447 = dma.hbm_to_vmem [thread:$0]  %s5, 1024, %s442, [#allocation6], 64, 64, 4
        $region32: #{tpu_custom_call.1} parent=11 // pred_fallthru
          _
        // Predicated region
        $region33: #{tpu_custom_call.1} parent=11 // pred_check
          %p448 = pneg %p183
        $region34: #{tpu_custom_call.1} parent=11 // pred_check_branch
          %450 = sbr.rel (%p448) target = $region36
        $region35: #{tpu_custom_call.1} parent=11 // pred_region
          _
        $region36: #{tpu_custom_call.1} parent=11 // pred_fallthru
          _
        // Predicated region
        $region37: #{tpu_custom_call.1} parent=11 // pred_check
          %p451 = pneg %p204
        $region38: #{tpu_custom_call.1} parent=11 // pred_check_branch
          %453 = sbr.rel (%p451) target = $region40
        $region39: #{tpu_custom_call.1} parent=11 // pred_region
          _
        $region40: #{tpu_custom_call.1} parent=11 // pred_fallthru
          _
        // Predicated region
        $region41: #{tpu_custom_call.1} parent=11 // pred_check
          %p454 = pneg %p225
        $region42: #{tpu_custom_call.1} parent=11 // pred_check_branch
          %456 = sbr.rel (%p454) target = $region44
        $region43: #{tpu_custom_call.1} parent=11 // pred_region
          _
        $region44: #{tpu_custom_call.1} parent=11 // pred_fallthru
          _
        // Predicated region
        $region45: #{tpu_custom_call.1} parent=11 // pred_check
          %p457 = pneg %p246
        $region46: #{tpu_custom_call.1} parent=11 // pred_check_branch
          %459 = sbr.rel (%p457) target = $region48
        $region47: #{tpu_custom_call.1} parent=11 // pred_region
          %s461 = ssub.s32 4608, 4608
          %462 = vsyncadd [#allocation9], %s461
          %s463 = sshll.u32 [#allocation8], 4
          %s464 = int_to_ptr.vmem [resolvable:$true] %s463
          %469 = dma.hbm_to_vmem [thread:$0]  %s9, 4608, %s464, [#allocation9], 64, 64, 4
        $region48: #{tpu_custom_call.1} parent=11 // pred_fallthru
          _
        // Predicated region
        $region49: #{tpu_custom_call.1} parent=11 // pred_check
          %p470 = pneg %p267
        $region50: #{tpu_custom_call.1} parent=11 // pred_check_branch
          %472 = sbr.rel (%p470) target = $region52
        $region51: #{tpu_custom_call.1} parent=11 // pred_region
          _
        $region52: #{tpu_custom_call.1} parent=11 // pred_fallthru
          _
        // Predicated region
        $region53: #{tpu_custom_call.1} parent=11 // pred_check
          %p473 = pneg %p288
        $region54: #{tpu_custom_call.1} parent=11 // pred_check_branch
          %475 = sbr.rel (%p473) target = $region56
        $region55: #{tpu_custom_call.1} parent=11 // pred_region
          %s477 = ssub.s32 1024, 1024
          %478 = vsyncadd [#allocation9], %s477
          %s479 = sshll.u32 [#allocation10], 4
          %s480 = int_to_ptr.vmem [resolvable:$true] %s479
          %485 = dma.hbm_to_vmem [thread:$0]  %s11, 1024, %s480, [#allocation9], 64, 64, 4
        $region56: #{tpu_custom_call.1} parent=11 // pred_fallthru
          _
        // Predicated region
        $region57: #{tpu_custom_call.1} parent=11 // pred_check
          %p486 = pneg %p309
        $region58: #{tpu_custom_call.1} parent=11 // pred_check_branch
          %488 = sbr.rel (%p486) target = $region60
        $region59: #{tpu_custom_call.1} parent=11 // pred_region
          _
        $region60: #{tpu_custom_call.1} parent=11 // pred_fallthru
          _
        // Predicated region
        $region61: #{tpu_custom_call.1} parent=11 // pred_check
          %p489 = pneg %p330
        $region62: #{tpu_custom_call.1} parent=11 // pred_check_branch
          %491 = sbr.rel (%p489) target = $region64
        $region63: #{tpu_custom_call.1} parent=11 // pred_region
          %s493 = ssub.s32 1024, 1024
          %494 = vsyncadd [#allocation12], %s493
          %s495 = sshll.u32 [#allocation11], 4
          %s496 = int_to_ptr.vmem [resolvable:$true] %s495
          %501 = dma.hbm_to_vmem [thread:$0]  %s13, 1024, %s496, [#allocation12], 64, 64, 4
        $region64: #{tpu_custom_call.1} parent=11 // pred_fallthru
          _
        // Predicated region
        $region65: #{tpu_custom_call.1} parent=11 // pred_check
          %p502 = pneg %p351
        $region66: #{tpu_custom_call.1} parent=11 // pred_check_branch
          %504 = sbr.rel (%p502) target = $region68
        $region67: #{tpu_custom_call.1} parent=11 // pred_region
          %s506 = ssub.s32 1024, 1024
          %507 = vsyncadd [#allocation12], %s506
          %s508 = sshll.u32 [#allocation13], 4
          %s509 = int_to_ptr.vmem [resolvable:$true] %s508
          %514 = dma.hbm_to_vmem [thread:$0]  %s14, 1024, %s509, [#allocation12], 64, 64, 4
        $region68: #{tpu_custom_call.1} parent=11 // pred_fallthru
          _
        // Predicated region
        $region69: #{tpu_custom_call.1} parent=11 // pred_check
          %p515 = pneg %p372
        $region70: #{tpu_custom_call.1} parent=11 // pred_check_branch
          %517 = sbr.rel (%p515) target = $region72
        $region71: #{tpu_custom_call.1} parent=11 // pred_region
          _
        $region72: #{tpu_custom_call.1} parent=11 // pred_fallthru
          _
      $region12: #{tpu_custom_call.1} parent=5 // pred_fallthru
        _
      %p518 = scmp.lt.s32.totalorder %s31, 2
      // Predicated region
      $region73: #{tpu_custom_call.1} parent=5 // pred_check
        %p519 = pneg %p518
      $region74: #{tpu_custom_call.1} parent=5 // pred_check_branch
        %521 = sbr.rel (%p519) target = $region76
      $region75: #{tpu_custom_call.1} parent=5 // pred_region
        // Predicated region
        $region77: #{tpu_custom_call.1} parent=75 // pred_check
          %p522 = pneg %p51
        $region78: #{tpu_custom_call.1} parent=75 // pred_check_branch
          %524 = sbr.rel (%p522) target = $region80
        $region79: #{tpu_custom_call.1} parent=75 // pred_region
          %s525 = sand.u32 %s41, 1
          %s526 = scalar_lea.sflag [#allocation3], %s525
          %s527 = sand.u32 %s41, 1
          %s528 = smul.addr %s527, 64
          %s529 = scalar_lea.vmem [#allocation2], %s528
          %s531 = ssub.s32 1024, 1024
          %532 = vsyncadd %s526, %s531
          %s533 = smul.addr %s31, 16
          %s534 = smul.addr %s533, 64
          %s535 = scalar_lea.hbm %s0, %s534
          %s536 = sshll.u32 %s529, 4
          %s537 = int_to_ptr.vmem [resolvable:$true] %s536
          %542 = dma.hbm_to_vmem [thread:$0]  %s535, 1024, %s537, %s526, 64, 64, 4
        $region80: #{tpu_custom_call.1} parent=75 // pred_fallthru
          _
      $region76: #{tpu_custom_call.1} parent=5 // pred_fallthru
        _
      %p543 = scmp.le.s32.totalorder 1, %s31
      %p544 = scmp.lt.s32.totalorder %s31, 3
      %p545 = pnand %p543, %p544
      %p546 = pneg %p545
      // Predicated region
      $region81: #{tpu_custom_call.1} parent=5 // pred_check
        _
      $region82: #{tpu_custom_call.1} parent=5 // pred_check_branch
        %548 = sbr.rel (%p545) target = $region84
      $region83: #{tpu_custom_call.1} parent=5 // pred_region
        %s549 = ssub.s32 %s31, 1
        %s550 = sand.u32 %s44, 1
        %s551 = scalar_lea.sflag [#allocation3], %s550
        %s552 = sand.u32 %s44, 1
        %s553 = smul.addr %s552, 64
        %s554 = scalar_lea.vmem [#allocation2], %s553
        // Predicated region
        $region85: #{tpu_custom_call.1} parent=83 // pred_check
          %p555 = pneg %p57
        $region86: #{tpu_custom_call.1} parent=83 // pred_check_branch
          %557 = sbr.rel (%p555) target = $region88
        $region87: #{tpu_custom_call.1} parent=83 // pred_region
          %558 = dma.done %s551, 1024
        $region88: #{tpu_custom_call.1} parent=83 // pred_fallthru
          _
        // Predicated region
        $region89: #{tpu_custom_call.1} parent=83 // pred_check
          %p559 = pneg %p78
        $region90: #{tpu_custom_call.1} parent=83 // pred_check_branch
          %561 = sbr.rel (%p559) target = $region92
        $region91: #{tpu_custom_call.1} parent=83 // pred_region
          %562 = dma.done [#allocation6], 4608
        $region92: #{tpu_custom_call.1} parent=83 // pred_fallthru
          _
        // Predicated region
        $region93: #{tpu_custom_call.1} parent=83 // pred_check
          %p563 = pneg %p162
        $region94: #{tpu_custom_call.1} parent=83 // pred_check_branch
          %565 = sbr.rel (%p563) target = $region96
        $region95: #{tpu_custom_call.1} parent=83 // pred_region
          %566 = dma.done [#allocation6], 1024
        $region96: #{tpu_custom_call.1} parent=83 // pred_fallthru
          _
        // Predicated region
        $region97: #{tpu_custom_call.1} parent=83 // pred_check
          %p567 = pneg %p246
        $region98: #{tpu_custom_call.1} parent=83 // pred_check_branch
          %569 = sbr.rel (%p567) target = $region100
        $region99: #{tpu_custom_call.1} parent=83 // pred_region
          %570 = dma.done [#allocation9], 4608
        $region100: #{tpu_custom_call.1} parent=83 // pred_fallthru
          _
        // Predicated region
        $region101: #{tpu_custom_call.1} parent=83 // pred_check
          %p571 = pneg %p288
        $region102: #{tpu_custom_call.1} parent=83 // pred_check_branch
          %573 = sbr.rel (%p571) target = $region104
        $region103: #{tpu_custom_call.1} parent=83 // pred_region
          %574 = dma.done [#allocation9], 1024
        $region104: #{tpu_custom_call.1} parent=83 // pred_fallthru
          _
        // Predicated region
        $region105: #{tpu_custom_call.1} parent=83 // pred_check
          %p575 = pneg %p330
        $region106: #{tpu_custom_call.1} parent=83 // pred_check_branch
          %577 = sbr.rel (%p575) target = $region108
        $region107: #{tpu_custom_call.1} parent=83 // pred_region
          %578 = dma.done [#allocation12], 1024
        $region108: #{tpu_custom_call.1} parent=83 // pred_fallthru
          _
        // Predicated region
        $region109: #{tpu_custom_call.1} parent=83 // pred_check
          %p579 = pneg %p351
        $region110: #{tpu_custom_call.1} parent=83 // pred_check_branch
          %581 = sbr.rel (%p579) target = $region112
        $region111: #{tpu_custom_call.1} parent=83 // pred_region
          %582 = dma.done [#allocation12], 1024
        $region112: #{tpu_custom_call.1} parent=83 // pred_fallthru
          _
        %s583 = sand.u32 %s44, 1
        %s584 = scalar_lea.sflag [#allocation3], %s583
        %s585 = sand.u32 %s44, 1
        %s586 = smul.addr %s585, 64
        %s587 = scalar_lea.vmem [#allocation2], %s586
        %p588 = pneg %p57
        %p589 = pneg %p54
        %p590 = pneg %p78
        %p591 = pneg %p75
        %p592 = pneg %p99
        %p593 = pneg %p96
        %p594 = pneg %p120
        %p595 = pneg %p117
        %p596 = pneg %p141
        %p597 = pneg %p138
        %p598 = pneg %p162
        %p599 = pneg %p159
        %p600 = pneg %p183
        %p601 = pneg %p180
        %p602 = pneg %p204
        %p603 = pneg %p201
        %p604 = pneg %p225
        %p605 = pneg %p222
        %p606 = pneg %p246
        %p607 = pneg %p243
        %p608 = pneg %p267
        %p609 = pneg %p264
        %p610 = pneg %p288
        %p611 = pneg %p285
        %p612 = pneg %p309
        %p613 = pneg %p306
        %p614 = pneg %p330
        %p615 = pneg %p327
        %p616 = pneg %p351
        %p617 = pneg %p348
        %p618 = pneg %p372
        %p619 = pneg %p369
        %p620 = pneg %p398
        %p621 = pneg %p395
        %s622 = sand.u32 %s385, 1
        %s623 = scalar_lea.sflag [#allocation4], %s622
        %s624 = sand.u32 %s385, 1
        %s625 = smul.addr %s624, 64
        %s626 = scalar_lea.vmem [#allocation14], %s625
        %v628 = vld [vmem:[%s554] sm:$0xf]
        %v629 = vld [vmem:[%s554 + $0x4] sm:$0xf]
        %v630 = vld [vmem:[%s554 + $0x8] sm:$0xf]
        %v631 = vld [vmem:[%s554 + $0xc] sm:$0xf]
        %v632 = vld [vmem:[%s554 + $0x10] sm:$0xf]
        %v633 = vld [vmem:[%s554 + $0x14] sm:$0xf]
        %v634 = vld [vmem:[%s554 + $0x18] sm:$0xf]
        %v635 = vld [vmem:[%s554 + $0x1c] sm:$0xf]
        %v636 = vld [vmem:[%s554 + $0x20] sm:$0xf]
        %v637 = vld [vmem:[%s554 + $0x24] sm:$0xf]
        %v638 = vld [vmem:[%s554 + $0x28] sm:$0xf]
        %v639 = vld [vmem:[%s554 + $0x2c] sm:$0xf]
        %v640 = vld [vmem:[%s554 + $0x30] sm:$0xf]
        %v641 = vld [vmem:[%s554 + $0x34] sm:$0xf]
        %v642 = vld [vmem:[%s554 + $0x38] sm:$0xf]
        %v643 = vld [vmem:[%s554 + $0x3c] sm:$0xf]
        %v660 = vunpack.c.l.b16 %v628
        %v661 = vunpack.c.l.b16 %v629
        %v662 = vunpack.c.l.b16 %v630
        %v663 = vunpack.c.l.b16 %v631
        %v664 = vunpack.c.l.b16 %v632
        %v665 = vunpack.c.l.b16 %v633
        %v666 = vunpack.c.l.b16 %v634
        %v667 = vunpack.c.l.b16 %v635
        %v668 = vunpack.c.l.b16 %v636
        %v669 = vunpack.c.l.b16 %v637
        %v670 = vunpack.c.l.b16 %v638
        %v671 = vunpack.c.l.b16 %v639
        %v672 = vunpack.c.l.b16 %v640
        %v673 = vunpack.c.l.b16 %v641
        %v674 = vunpack.c.l.b16 %v642
        %v675 = vunpack.c.l.b16 %v643
        %v676 = vpack.c.b16 %v660, %v660
        %v677 = vpack.c.b16 %v661, %v661
        %v678 = vpack.c.b16 %v662, %v662
        %v679 = vpack.c.b16 %v663, %v663
        %v680 = vpack.c.b16 %v664, %v664
        %v681 = vpack.c.b16 %v665, %v665
        %v682 = vpack.c.b16 %v666, %v666
        %v683 = vpack.c.b16 %v667, %v667
        %v684 = vpack.c.b16 %v668, %v668
        %v685 = vpack.c.b16 %v669, %v669
        %v686 = vpack.c.b16 %v670, %v670
        %v687 = vpack.c.b16 %v671, %v671
        %v688 = vpack.c.b16 %v672, %v672
        %v689 = vpack.c.b16 %v673, %v673
        %v690 = vpack.c.b16 %v674, %v674
        %v691 = vpack.c.b16 %v675, %v675
        %v693 = vshrl.u32 %v676, 16
        %v695 = vrot.slane %v693, 7
        %v696 = vshll.u32 %v676, 16
        %v698 = vor.u32 %v695, %v696
        %v700 = vshrl.u32 %v677, 16
        %v702 = vrot.slane %v700, 7
        %v703 = vshll.u32 %v677, 16
        %v705 = vor.u32 %v702, %v703
        %v707 = vshrl.u32 %v678, 16
        %v709 = vrot.slane %v707, 7
        %v710 = vshll.u32 %v678, 16
        %v712 = vor.u32 %v709, %v710
        %v714 = vshrl.u32 %v679, 16
        %v716 = vrot.slane %v714, 7
        %v717 = vshll.u32 %v679, 16
        %v719 = vor.u32 %v716, %v717
        %v721 = vshrl.u32 %v680, 16
        %v723 = vrot.slane %v721, 7
        %v724 = vshll.u32 %v680, 16
        %v726 = vor.u32 %v723, %v724
        %v728 = vshrl.u32 %v681, 16
        %v730 = vrot.slane %v728, 7
        %v731 = vshll.u32 %v681, 16
        %v733 = vor.u32 %v730, %v731
        %v735 = vshrl.u32 %v682, 16
        %v737 = vrot.slane %v735, 7
        %v738 = vshll.u32 %v682, 16
        %v740 = vor.u32 %v737, %v738
        %v742 = vshrl.u32 %v683, 16
        %v744 = vrot.slane %v742, 7
        %v745 = vshll.u32 %v683, 16
        %v747 = vor.u32 %v744, %v745
        %v749 = vshrl.u32 %v684, 16
        %v751 = vrot.slane %v749, 7
        %v752 = vshll.u32 %v684, 16
        %v754 = vor.u32 %v751, %v752
        %v756 = vshrl.u32 %v685, 16
        %v758 = vrot.slane %v756, 7
        %v759 = vshll.u32 %v685, 16
        %v761 = vor.u32 %v758, %v759
        %v763 = vshrl.u32 %v686, 16
        %v765 = vrot.slane %v763, 7
        %v766 = vshll.u32 %v686, 16
        %v768 = vor.u32 %v765, %v766
        %v770 = vshrl.u32 %v687, 16
        %v772 = vrot.slane %v770, 7
        %v773 = vshll.u32 %v687, 16
        %v775 = vor.u32 %v772, %v773
        %v777 = vshrl.u32 %v688, 16
        %v779 = vrot.slane %v777, 7
        %v780 = vshll.u32 %v688, 16
        %v782 = vor.u32 %v779, %v780
        %v784 = vshrl.u32 %v689, 16
        %v786 = vrot.slane %v784, 7
        %v787 = vshll.u32 %v689, 16
        %v789 = vor.u32 %v786, %v787
        %v791 = vshrl.u32 %v690, 16
        %v793 = vrot.slane %v791, 7
        %v794 = vshll.u32 %v690, 16
        %v796 = vor.u32 %v793, %v794
        %v798 = vshrl.u32 %v691, 16
        %v800 = vrot.slane %v798, 7
        %v801 = vshll.u32 %v691, 16
        %v803 = vor.u32 %v800, %v801
        %vm820 = vcmask 1040384
        %vm821 = vsmask.f32 256
        %vm822 = vmand %vm820, %vm821
        %v823 = vsel %vm822, 0, %v698
        %v824 = vsel %vm822, 0, %v705
        %v825 = vsel %vm822, 0, %v712
        %v826 = vsel %vm822, 0, %v719
        %v827 = vsel %vm822, 0, %v726
        %v828 = vsel %vm822, 0, %v733
        %v829 = vsel %vm822, 0, %v740
        %v830 = vsel %vm822, 0, %v747
        %v831 = vsel %vm822, 0, %v754
        %v832 = vsel %vm822, 0, %v761
        %v833 = vsel %vm822, 0, %v768
        %v834 = vsel %vm822, 0, %v775
        %v835 = vsel %vm822, 0, %v782
        %v836 = vsel %vm822, 0, %v789
        %v837 = vsel %vm822, 0, %v796
        %v838 = vsel %vm822, 0, %v803
        %855 = vrot.lane.b32.xlu0 %v823, 64
        %v856 = vpop.permute.xlu0 %855
        %857 = vrot.lane.b32.xlu0 %v824, 64
        %v858 = vpop.permute.xlu0 %857
        %859 = vrot.lane.b32.xlu0 %v825, 64
        %v860 = vpop.permute.xlu0 %859
        %861 = vrot.lane.b32.xlu0 %v826, 64
        %v862 = vpop.permute.xlu0 %861
        %863 = vrot.lane.b32.xlu0 %v827, 64
        %v864 = vpop.permute.xlu0 %863
        %865 = vrot.lane.b32.xlu0 %v828, 64
        %v866 = vpop.permute.xlu0 %865
        %867 = vrot.lane.b32.xlu0 %v829, 64
        %v868 = vpop.permute.xlu0 %867
        %869 = vrot.lane.b32.xlu0 %v830, 64
        %v870 = vpop.permute.xlu0 %869
        %871 = vrot.lane.b32.xlu0 %v831, 64
        %v872 = vpop.permute.xlu0 %871
        %873 = vrot.lane.b32.xlu0 %v832, 64
        %v874 = vpop.permute.xlu0 %873
        %875 = vrot.lane.b32.xlu0 %v833, 64
        %v876 = vpop.permute.xlu0 %875
        %877 = vrot.lane.b32.xlu0 %v834, 64
        %v878 = vpop.permute.xlu0 %877
        %879 = vrot.lane.b32.xlu0 %v835, 64
        %v880 = vpop.permute.xlu0 %879
        %881 = vrot.lane.b32.xlu0 %v836, 64
        %v882 = vpop.permute.xlu0 %881
        %883 = vrot.lane.b32.xlu0 %v837, 64
        %v884 = vpop.permute.xlu0 %883
        %885 = vrot.lane.b32.xlu0 %v838, 64
        %v886 = vpop.permute.xlu0 %885
        %887 = vrot.lane.b32.xlu0 %v676, 64
        %v888 = vpop.permute.xlu0 %887
        %889 = vrot.lane.b32.xlu0 %v677, 64
        %v890 = vpop.permute.xlu0 %889
        %891 = vrot.lane.b32.xlu0 %v678, 64
        %v892 = vpop.permute.xlu0 %891
        %893 = vrot.lane.b32.xlu0 %v679, 64
        %v894 = vpop.permute.xlu0 %893
        %895 = vrot.lane.b32.xlu0 %v680, 64
        %v896 = vpop.permute.xlu0 %895
        %897 = vrot.lane.b32.xlu0 %v681, 64
        %v898 = vpop.permute.xlu0 %897
        %899 = vrot.lane.b32.xlu0 %v682, 64
        %v900 = vpop.permute.xlu0 %899
        %901 = vrot.lane.b32.xlu0 %v683, 64
        %v902 = vpop.permute.xlu0 %901
        %903 = vrot.lane.b32.xlu0 %v684, 64
        %v904 = vpop.permute.xlu0 %903
        %905 = vrot.lane.b32.xlu0 %v685, 64
        %v906 = vpop.permute.xlu0 %905
        %907 = vrot.lane.b32.xlu0 %v686, 64
        %v908 = vpop.permute.xlu0 %907
        %909 = vrot.lane.b32.xlu0 %v687, 64
        %v910 = vpop.permute.xlu0 %909
        %911 = vrot.lane.b32.xlu0 %v688, 64
        %v912 = vpop.permute.xlu0 %911
        %913 = vrot.lane.b32.xlu0 %v689, 64
        %v914 = vpop.permute.xlu0 %913
        %915 = vrot.lane.b32.xlu0 %v690, 64
        %v916 = vpop.permute.xlu0 %915
        %917 = vrot.lane.b32.xlu0 %v691, 64
        %v918 = vpop.permute.xlu0 %917
        %vm919 = vcmask 523264
        %v922 = vsel %vm919, %v856, %v888
        %v925 = vsel %vm919, %v858, %v890
        %v928 = vsel %vm919, %v860, %v892
        %v931 = vsel %vm919, %v862, %v894
        %v934 = vsel %vm919, %v864, %v896
        %v937 = vsel %vm919, %v866, %v898
        %v940 = vsel %vm919, %v868, %v900
        %v943 = vsel %vm919, %v870, %v902
        %v946 = vsel %vm919, %v872, %v904
        %v949 = vsel %vm919, %v874, %v906
        %v952 = vsel %vm919, %v876, %v908
        %v955 = vsel %vm919, %v878, %v910
        %v958 = vsel %vm919, %v880, %v912
        %v961 = vsel %vm919, %v882, %v914
        %v964 = vsel %vm919, %v884, %v916
        %v967 = vsel %vm919, %v886, %v918
        %976 = vrot.lane.b32.xlu0 %v922, 64
        %v977 = vpop.permute.xlu0 %976
        %978 = vrot.lane.b32.xlu0 %v888, 64
        %v979 = vpop.permute.xlu0 %978
        %980 = vrot.lane.b32.xlu0 %v928, 64
        %v981 = vpop.permute.xlu0 %980
        %982 = vrot.lane.b32.xlu0 %v892, 64
        %v983 = vpop.permute.xlu0 %982
        %984 = vrot.lane.b32.xlu0 %v934, 64
        %v985 = vpop.permute.xlu0 %984
        %986 = vrot.lane.b32.xlu0 %v896, 64
        %v987 = vpop.permute.xlu0 %986
        %988 = vrot.lane.b32.xlu0 %v940, 64
        %v989 = vpop.permute.xlu0 %988
        %990 = vrot.lane.b32.xlu0 %v900, 64
        %v991 = vpop.permute.xlu0 %990
        %992 = vrot.lane.b32.xlu0 %v946, 64
        %v993 = vpop.permute.xlu0 %992
        %994 = vrot.lane.b32.xlu0 %v904, 64
        %v995 = vpop.permute.xlu0 %994
        %996 = vrot.lane.b32.xlu0 %v952, 64
        %v997 = vpop.permute.xlu0 %996
        %998 = vrot.lane.b32.xlu0 %v908, 64
        %v999 = vpop.permute.xlu0 %998
        %1000 = vrot.lane.b32.xlu0 %v958, 64
        %v1001 = vpop.permute.xlu0 %1000
        %1002 = vrot.lane.b32.xlu0 %v912, 64
        %v1003 = vpop.permute.xlu0 %1002
        %1004 = vrot.lane.b32.xlu0 %v964, 64
        %v1005 = vpop.permute.xlu0 %1004
        %1006 = vrot.lane.b32.xlu0 %v916, 64
        %v1007 = vpop.permute.xlu0 %1006
        %vm1008 = vcmask 523264
        %v1009 = vsel %vm1008, %v977, %v979
        %v1010 = vsel %vm1008, %v981, %v983
        %v1011 = vsel %vm1008, %v985, %v987
        %v1012 = vsel %vm1008, %v989, %v991
        %v1013 = vsel %vm1008, %v993, %v995
        %v1014 = vsel %vm1008, %v997, %v999
        %v1015 = vsel %vm1008, %v1001, %v1003
        %v1016 = vsel %vm1008, %v1005, %v1007
        %v1019 = vsel %vm919, 0, %v977
        %v1021 = vsel %vm919, %v890, %v981
        %v1023 = vsel %vm919, %v894, %v985
        %v1025 = vsel %vm919, %v898, %v989
        %v1027 = vsel %vm919, %v902, %v993
        %v1029 = vsel %vm919, %v906, %v997
        %v1031 = vsel %vm919, %v910, %v1001
        %v1033 = vsel %vm919, %v914, %v1005
        %v1051 = vunpack.c.l.b16 0
        %v1052 = vunpack.c.l.b16 %v1019
        %v1053 = vunpack.c.l.b16 %v1009
        %v1054 = vunpack.c.l.b16 %v925
        %v1055 = vunpack.c.l.b16 %v890
        %v1056 = vunpack.c.l.b16 %v1021
        %v1057 = vunpack.c.l.b16 %v1010
        %v1058 = vunpack.c.l.b16 %v931
        %v1059 = vunpack.c.l.b16 %v894
        %v1060 = vunpack.c.l.b16 %v1023
        %v1061 = vunpack.c.l.b16 %v1011
        %v1062 = vunpack.c.l.b16 %v937
        %v1063 = vunpack.c.l.b16 %v898
        %v1064 = vunpack.c.l.b16 %v1025
        %v1065 = vunpack.c.l.b16 %v1012
        %v1066 = vunpack.c.l.b16 %v943
        %v1067 = vunpack.c.l.b16 %v902
        %v1068 = vunpack.c.l.b16 %v1027
        %v1069 = vunpack.c.l.b16 %v1013
        %v1070 = vunpack.c.l.b16 %v949
        %v1071 = vunpack.c.l.b16 %v906
        %v1072 = vunpack.c.l.b16 %v1029
        %v1073 = vunpack.c.l.b16 %v1014
        %v1074 = vunpack.c.l.b16 %v955
        %v1075 = vunpack.c.l.b16 %v910
        %v1076 = vunpack.c.l.b16 %v1031
        %v1077 = vunpack.c.l.b16 %v1015
        %v1078 = vunpack.c.l.b16 %v961
        %v1079 = vunpack.c.l.b16 %v914
        %v1080 = vunpack.c.l.b16 %v1033
        %v1081 = vunpack.c.l.b16 %v1016
        %v1082 = vunpack.c.l.b16 %v967
        %v1083 = vunpack.c.l.b16 %v918
        %v1084 = vld [vmem:[#allocation5] sm:$0xf]
        %v1085 = vld [vmem:[#allocation5 + $0x4] sm:$0xf]
        %v1086 = vld [vmem:[#allocation5 + $0x8] sm:$0xf]
        %v1087 = vld [vmem:[#allocation5 + $0xc] sm:$0xf]
        %v1088 = vld [vmem:[#allocation5 + $0x10] sm:$0xf]
        %v1089 = vld [vmem:[#allocation5 + $0x14] sm:$0xf]
        %v1090 = vld [vmem:[#allocation5 + $0x18] sm:$0xf]
        %v1091 = vld [vmem:[#allocation5 + $0x1c] sm:$0xf]
        %v1092 = vld [vmem:[#allocation5 + $0x20] sm:$0xf]
        %v1093 = vld [vmem:[#allocation5 + $0x24] sm:$0xf]
        %v1094 = vld [vmem:[#allocation5 + $0x28] sm:$0xf]
        %v1095 = vld [vmem:[#allocation5 + $0x2c] sm:$0xf]
        %v1096 = vld [vmem:[#allocation5 + $0x30] sm:$0xf]
        %v1097 = vld [vmem:[#allocation5 + $0x34] sm:$0xf]
        %v1098 = vld [vmem:[#allocation5 + $0x38] sm:$0xf]
        %v1099 = vld [vmem:[#allocation5 + $0x3c] sm:$0xf]
        %v1100 = vld [vmem:[#allocation5 + $0x40] sm:$0xf]
        %v1101 = vld [vmem:[#allocation5 + $0x44] sm:$0xf]
        %v1102 = vld [vmem:[#allocation5 + $0x48] sm:$0xf]
        %v1103 = vld [vmem:[#allocation5 + $0x4c] sm:$0xf]
        %v1104 = vld [vmem:[#allocation5 + $0x50] sm:$0xf]
        %v1105 = vld [vmem:[#allocation5 + $0x54] sm:$0xf]
        %v1106 = vld [vmem:[#allocation5 + $0x58] sm:$0xf]
        %v1107 = vld [vmem:[#allocation5 + $0x5c] sm:$0xf]
        %v1108 = vld [vmem:[#allocation5 + $0x60] sm:$0xf]
        %v1109 = vld [vmem:[#allocation5 + $0x64] sm:$0xf]
        %v1110 = vld [vmem:[#allocation5 + $0x68] sm:$0xf]
        %v1111 = vld [vmem:[#allocation5 + $0x6c] sm:$0xf]
        %v1112 = vld [vmem:[#allocation5 + $0x70] sm:$0xf]
        %v1113 = vld [vmem:[#allocation5 + $0x74] sm:$0xf]
        %v1114 = vld [vmem:[#allocation5 + $0x78] sm:$0xf]
        %v1115 = vld [vmem:[#allocation5 + $0x7c] sm:$0xf]
        %v1116 = vld [vmem:[#allocation5 + $0x80] sm:$0xf]
        %v1117 = vld [vmem:[#allocation5 + $0x84] sm:$0xf]
        %v1118 = vld [vmem:[#allocation5 + $0x88] sm:$0xf]
        %v1119 = vld [vmem:[#allocation5 + $0x8c] sm:$0xf]
        %v1120 = vld [vmem:[#allocation5 + $0x90] sm:$0xf]
        %v1121 = vld [vmem:[#allocation5 + $0x94] sm:$0xf]
        %v1122 = vld [vmem:[#allocation5 + $0x98] sm:$0xf]
        %v1123 = vld [vmem:[#allocation5 + $0x9c] sm:$0xf]
        %v1124 = vld [vmem:[#allocation5 + $0xa0] sm:$0xf]
        %v1125 = vld [vmem:[#allocation5 + $0xa4] sm:$0xf]
        %v1126 = vld [vmem:[#allocation5 + $0xa8] sm:$0xf]
        %v1127 = vld [vmem:[#allocation5 + $0xac] sm:$0xf]
        %v1128 = vld [vmem:[#allocation5 + $0xb0] sm:$0xf]
        %v1129 = vld [vmem:[#allocation5 + $0xb4] sm:$0xf]
        %v1130 = vld [vmem:[#allocation5 + $0xb8] sm:$0xf]
        %v1131 = vld [vmem:[#allocation5 + $0xbc] sm:$0xf]
        %v1132 = vld [vmem:[#allocation5 + $0xc0] sm:$0xf]
        %v1133 = vld [vmem:[#allocation5 + $0xc4] sm:$0xf]
        %v1134 = vld [vmem:[#allocation5 + $0xc8] sm:$0xf]
        %v1135 = vld [vmem:[#allocation5 + $0xcc] sm:$0xf]
        %v1136 = vld [vmem:[#allocation5 + $0xd0] sm:$0xf]
        %v1137 = vld [vmem:[#allocation5 + $0xd4] sm:$0xf]
        %v1138 = vld [vmem:[#allocation5 + $0xd8] sm:$0xf]
        %v1139 = vld [vmem:[#allocation5 + $0xdc] sm:$0xf]
        %v1140 = vld [vmem:[#allocation5 + $0xe0] sm:$0xf]
        %v1141 = vld [vmem:[#allocation5 + $0xe4] sm:$0xf]
        %v1142 = vld [vmem:[#allocation5 + $0xe8] sm:$0xf]
        %v1143 = vld [vmem:[#allocation5 + $0xec] sm:$0xf]
        %v1144 = vld [vmem:[#allocation5 + $0xf0] sm:$0xf]
        %v1145 = vld [vmem:[#allocation5 + $0xf4] sm:$0xf]
        %v1146 = vld [vmem:[#allocation5 + $0xf8] sm:$0xf]
        %v1147 = vld [vmem:[#allocation5 + $0xfc] sm:$0xf]
        %v1148 = vld [vmem:[#allocation5 + $0x100] sm:$0xf]
        %v1149 = vld [vmem:[#allocation5 + $0x104] sm:$0xf]
        %v1150 = vld [vmem:[#allocation5 + $0x108] sm:$0xf]
        %v1151 = vld [vmem:[#allocation5 + $0x10c] sm:$0xf]
        %v1152 = vld [vmem:[#allocation5 + $0x110] sm:$0xf]
        %v1153 = vld [vmem:[#allocation5 + $0x114] sm:$0xf]
        %v1154 = vld [vmem:[#allocation5 + $0x118] sm:$0xf]
        %v1155 = vld [vmem:[#allocation5 + $0x11c] sm:$0xf]
        %v1156 = vld [vmem:[%s2] sm:$0x1]
        %v1158 = vlaneseq
        %v1159 = vshrl.u32 %v1158, 7
        %v1160 = vsub.s32 0, %v1159
        %v1161 = vrot.slane %v1156, %v1160
        %v1163 = vpack.c.b16 %v1054, %v1051
        %v1164 = vpack.c.b16 %v1056, %v1052
        %v1165 = vpack.c.b16 %v1057, %v1053
        %v1166 = vpack.c.b16 %v1058, %v1054
        %v1167 = vpack.c.b16 %v1059, %v1055
        %v1168 = vpack.c.b16 %v1062, %v1058
        %v1169 = vpack.c.b16 %v1064, %v1060
        %v1170 = vpack.c.b16 %v1065, %v1061
        %v1171 = vpack.c.b16 %v1066, %v1062
        %v1172 = vpack.c.b16 %v1067, %v1063
        %v1173 = vpack.c.b16 %v1070, %v1066
        %v1174 = vpack.c.b16 %v1072, %v1068
        %v1175 = vpack.c.b16 %v1073, %v1069
        %v1176 = vpack.c.b16 %v1074, %v1070
        %v1177 = vpack.c.b16 %v1075, %v1071
        %v1178 = vpack.c.b16 %v1078, %v1074
        %v1179 = vpack.c.b16 %v1080, %v1076
        %v1180 = vpack.c.b16 %v1081, %v1077
        %v1181 = vpack.c.b16 %v1082, %v1078
        %v1182 = vpack.c.b16 %v1083, %v1079
        %v1271 = vunpack.c.l.b16 %v1084
        %v1272 = vunpack.c.l.b16 %v1085
        %v1273 = vunpack.c.l.b16 %v1086
        %v1274 = vunpack.c.l.b16 %v1087
        %v1275 = vunpack.c.l.b16 %v1088
        %v1276 = vunpack.c.l.b16 %v1089
        %v1277 = vunpack.c.l.b16 %v1090
        %v1278 = vunpack.c.l.b16 %v1091
        %v1279 = vunpack.c.l.b16 %v1092
        %v1280 = vunpack.c.l.b16 %v1093
        %v1281 = vunpack.c.l.b16 %v1094
        %v1282 = vunpack.c.l.b16 %v1095
        %v1283 = vunpack.c.l.b16 %v1096
        %v1284 = vunpack.c.l.b16 %v1097
        %v1285 = vunpack.c.l.b16 %v1098
        %v1286 = vunpack.c.l.b16 %v1099
        %v1287 = vunpack.c.l.b16 %v1100
        %v1288 = vunpack.c.l.b16 %v1101
        %v1289 = vunpack.c.l.b16 %v1102
        %v1290 = vunpack.c.l.b16 %v1103
        %v1291 = vunpack.c.l.b16 %v1104
        %v1292 = vunpack.c.l.b16 %v1105
        %v1293 = vunpack.c.l.b16 %v1106
        %v1294 = vunpack.c.l.b16 %v1107
        %v1295 = vunpack.c.l.b16 %v1108
        %v1296 = vunpack.c.l.b16 %v1109
        %v1297 = vunpack.c.l.b16 %v1110
        %v1298 = vunpack.c.l.b16 %v1111
        %v1299 = vunpack.c.l.b16 %v1112
        %v1300 = vunpack.c.l.b16 %v1113
        %v1301 = vunpack.c.l.b16 %v1114
        %v1302 = vunpack.c.l.b16 %v1115
        %v1303 = vunpack.c.l.b16 %v1116
        %v1304 = vunpack.c.l.b16 %v1117
        %v1305 = vunpack.c.l.b16 %v1118
        %v1306 = vunpack.c.l.b16 %v1119
        %v1307 = vunpack.c.l.b16 %v1120
        %v1308 = vunpack.c.l.b16 %v1121
        %v1309 = vunpack.c.l.b16 %v1122
        %v1310 = vunpack.c.l.b16 %v1123
        %v1311 = vunpack.c.l.b16 %v1124
        %v1312 = vunpack.c.l.b16 %v1125
        %v1313 = vunpack.c.l.b16 %v1126
        %v1314 = vunpack.c.l.b16 %v1127
        %v1315 = vunpack.c.l.b16 %v1128
        %v1316 = vunpack.c.l.b16 %v1129
        %v1317 = vunpack.c.l.b16 %v1130
        %v1318 = vunpack.c.l.b16 %v1131
        %v1319 = vunpack.c.l.b16 %v1132
        %v1320 = vunpack.c.l.b16 %v1133
        %v1321 = vunpack.c.l.b16 %v1134
        %v1322 = vunpack.c.l.b16 %v1135
        %v1323 = vunpack.c.l.b16 %v1136
        %v1324 = vunpack.c.l.b16 %v1137
        %v1325 = vunpack.c.l.b16 %v1138
        %v1326 = vunpack.c.l.b16 %v1139
        %v1327 = vunpack.c.l.b16 %v1140
        %v1328 = vunpack.c.l.b16 %v1141
        %v1329 = vunpack.c.l.b16 %v1142
        %v1330 = vunpack.c.l.b16 %v1143
        %v1331 = vunpack.c.l.b16 %v1144
        %v1332 = vunpack.c.l.b16 %v1145
        %v1333 = vunpack.c.l.b16 %v1146
        %v1334 = vunpack.c.l.b16 %v1147
        %v1335 = vunpack.c.l.b16 %v1148
        %v1336 = vunpack.c.l.b16 %v1149
        %v1337 = vunpack.c.l.b16 %v1150
        %v1338 = vunpack.c.l.b16 %v1151
        %v1339 = vunpack.c.l.b16 %v1152
        %v1340 = vunpack.c.l.b16 %v1153
        %v1341 = vunpack.c.l.b16 %v1154
        %v1342 = vunpack.c.l.b16 %v1155
        %v1343 = vpack.c.b16 %v1272, %v1271
        %v1344 = vpack.c.b16 %v1274, %v1273
        %v1345 = vpack.c.b16 %v1276, %v1275
        %v1346 = vpack.c.b16 %v1278, %v1277
        %v1347 = vpack.c.b16 %v1280, %v1279
        %v1348 = vpack.c.b16 %v1282, %v1281
        %v1349 = vpack.c.b16 %v1284, %v1283
        %v1350 = vpack.c.b16 %v1286, %v1285
        %v1351 = vpack.c.b16 %v1288, %v1287
        %v1352 = vpack.c.b16 %v1290, %v1289
        %v1353 = vpack.c.b16 %v1292, %v1291
        %v1354 = vpack.c.b16 %v1294, %v1293
        %v1355 = vpack.c.b16 %v1296, %v1295
        %v1356 = vpack.c.b16 %v1298, %v1297
        %v1357 = vpack.c.b16 %v1300, %v1299
        %v1358 = vpack.c.b16 %v1302, %v1301
        %v1359 = vpack.c.b16 %v1304, %v1303
        %v1360 = vpack.c.b16 %v1306, %v1305
        %v1361 = vpack.c.b16 %v1308, %v1307
        %v1362 = vpack.c.b16 %v1310, %v1309
        %v1363 = vpack.c.b16 %v1312, %v1311
        %v1364 = vpack.c.b16 %v1314, %v1313
        %v1365 = vpack.c.b16 %v1316, %v1315
        %v1366 = vpack.c.b16 %v1318, %v1317
        %v1367 = vpack.c.b16 %v1320, %v1319
        %v1368 = vpack.c.b16 %v1322, %v1321
        %v1369 = vpack.c.b16 %v1324, %v1323
        %v1370 = vpack.c.b16 %v1326, %v1325
        %v1371 = vpack.c.b16 %v1328, %v1327
        %v1372 = vpack.c.b16 %v1330, %v1329
        %v1373 = vpack.c.b16 %v1332, %v1331
        %v1374 = vpack.c.b16 %v1334, %v1333
        %v1375 = vpack.c.b16 %v1336, %v1335
        %v1376 = vpack.c.b16 %v1338, %v1337
        %v1377 = vpack.c.b16 %v1340, %v1339
        %v1378 = vpack.c.b16 %v1342, %v1341
        %v1416 = vsel %vm919, %v1167, 0
        %v1419 = vsel %vm919, %v1172, 0
        %v1422 = vsel %vm919, %v1177, 0
        %v1425 = vsel %vm919, %v1182, 0
        %1427 = vmatprep.subr.bf16.mxu0 0
        %1428 = vmatpush1.bf16.msra.mxu0 %v1350
        %1429 = vmatprep.subr.bf16.mxu0 0
        %1430 = vmatpush1.bf16.msra.mxu0 %v1349
        %1431 = vmatprep.subr.bf16.mxu0 0
        %1432 = vmatpush1.bf16.msra.mxu0 %v1348
        %1433 = vmatprep.subr.bf16.mxu0 0
        %1434 = vmatpush1.bf16.msra.mxu0 %v1347
        %1435 = vmatprep.subr.bf16.mxu0 0
        %1436 = vmatpush1.bf16.msra.mxu0 %v1346
        %1437 = vmatprep.subr.bf16.mxu0 0
        %1438 = vmatpush1.bf16.msra.mxu0 %v1345
        %1439 = vmatprep.subr.bf16.mxu0 0
        %1440 = vmatpush1.bf16.msra.mxu0 %v1344
        %1441 = vmatprep.subr.bf16.mxu0 0
        %1442 = vmatpush1.bf16.msra.mxu0 %v1343
        %1443 = vmatprep.subr.bf16.mxu0 0
        %1444 = vmatpush2.bf16.msra.mxu0 %v1358
        %1445 = vmatprep.subr.bf16.mxu0 0
        %1446 = vmatpush2.bf16.msra.mxu0 %v1357
        %1447 = vmatprep.subr.bf16.mxu0 0
        %1448 = vmatpush2.bf16.msra.mxu0 %v1356
        %1449 = vmatprep.subr.bf16.mxu0 0
        %1450 = vmatpush2.bf16.msra.mxu0 %v1355
        %1451 = vmatprep.subr.bf16.mxu0 0
        %1452 = vmatpush2.bf16.msra.mxu0 %v1354
        %1453 = vmatprep.subr.bf16.mxu0 0
        %1454 = vmatpush2.bf16.msra.mxu0 %v1353
        %1455 = vmatprep.subr.bf16.mxu0 0
        %1456 = vmatpush2.bf16.msra.mxu0 %v1352
        %1457 = vmatprep.subr.bf16.mxu0 0
        %1458 = vmatpush2.bf16.msra.mxu0 %v1351
        %1459 = vmatprep.mubr.bf16.mxu0 %v1164
        %1460 = vmatmul.mubr.bf16.gmra.mxu0 %v1163
        %v1461 = vpop.f32.mrf.mxu0
        %v1462 = vadd.f32 %v1161, %v1461
        %v1463 = vpop.f32.mrf.mxu0
        %v1464 = vpop.f32.mrf.mxu0
        %v1465 = vadd.f32 %v1161, %v1464
        %v1466 = vpop.f32.mrf.mxu0
        %1467 = vmatprep.mubr.bf16.mxu0 %v1169
        %1468 = vmatmul.mubr.bf16.gmra.mxu0 %v1168
        %v1469 = vpop.f32.mrf.mxu0
        %v1470 = vadd.f32 %v1161, %v1469
        %v1471 = vpop.f32.mrf.mxu0
        %v1472 = vpop.f32.mrf.mxu0
        %v1473 = vadd.f32 %v1161, %v1472
        %v1474 = vpop.f32.mrf.mxu0
        %1475 = vmatprep.mubr.bf16.mxu0 %v1174
        %1476 = vmatmul.mubr.bf16.gmra.mxu0 %v1173
        %v1477 = vpop.f32.mrf.mxu0
        %v1478 = vadd.f32 %v1161, %v1477
        %v1479 = vpop.f32.mrf.mxu0
        %v1480 = vpop.f32.mrf.mxu0
        %v1481 = vadd.f32 %v1161, %v1480
        %v1482 = vpop.f32.mrf.mxu0
        %1483 = vmatprep.mubr.bf16.mxu0 %v1179
        %1484 = vmatmul.mubr.bf16.gmra.mxu0 %v1178
        %v1485 = vpop.f32.mrf.mxu0
        %v1486 = vadd.f32 %v1161, %v1485
        %v1487 = vpop.f32.mrf.mxu0
        %v1488 = vpop.f32.mrf.mxu0
        %v1489 = vadd.f32 %v1161, %v1488
        %v1490 = vpop.f32.mrf.mxu0
        %1491 = vdwg.mxu0
        %1492 = vmatprep.subr.bf16.mxu0 0
        %1493 = vmatpush1.bf16.msra.mxu0 %v1366
        %1494 = vmatprep.subr.bf16.mxu0 0
        %1495 = vmatpush1.bf16.msra.mxu0 %v1365
        %1496 = vmatprep.subr.bf16.mxu0 0
        %1497 = vmatpush1.bf16.msra.mxu0 %v1364
        %1498 = vmatprep.subr.bf16.mxu0 0
        %1499 = vmatpush1.bf16.msra.mxu0 %v1363
        %1500 = vmatprep.subr.bf16.mxu0 0
        %1501 = vmatpush1.bf16.msra.mxu0 %v1362
        %1502 = vmatprep.subr.bf16.mxu0 0
        %1503 = vmatpush1.bf16.msra.mxu0 %v1361
        %1504 = vmatprep.subr.bf16.mxu0 0
        %1505 = vmatpush1.bf16.msra.mxu0 %v1360
        %1506 = vmatprep.subr.bf16.mxu0 0
        %1507 = vmatpush1.bf16.msra.mxu0 %v1359
        %1508 = vmatprep.subr.bf16.mxu0 0
        %1509 = vmatpush2.bf16.msra.mxu0 %v1374
        %1510 = vmatprep.subr.bf16.mxu0 0
        %1511 = vmatpush2.bf16.msra.mxu0 %v1373
        %1512 = vmatprep.subr.bf16.mxu0 0
        %1513 = vmatpush2.bf16.msra.mxu0 %v1372
        %1514 = vmatprep.subr.bf16.mxu0 0
        %1515 = vmatpush2.bf16.msra.mxu0 %v1371
        %1516 = vmatprep.subr.bf16.mxu0 0
        %1517 = vmatpush2.bf16.msra.mxu0 %v1370
        %1518 = vmatprep.subr.bf16.mxu0 0
        %1519 = vmatpush2.bf16.msra.mxu0 %v1369
        %1520 = vmatprep.subr.bf16.mxu0 0
        %1521 = vmatpush2.bf16.msra.mxu0 %v1368
        %1522 = vmatprep.subr.bf16.mxu0 0
        %1523 = vmatpush2.bf16.msra.mxu0 %v1367
        %1524 = vmatprep.mubr.bf16.mxu0 %v1166
        %1525 = vmatmul.mubr.bf16.gmra.mxu0 %v1165
        %v1526 = vpop.f32.mrf.mxu0
        %v1527 = vadd.f32 %v1462, %v1526
        %v1528 = vpop.f32.mrf.mxu0
        %v1529 = vpop.f32.mrf.mxu0
        %v1530 = vadd.f32 %v1465, %v1529
        %v1531 = vpop.f32.mrf.mxu0
        %1532 = vmatprep.mubr.bf16.mxu0 %v1171
        %1533 = vmatmul.mubr.bf16.gmra.mxu0 %v1170
        %v1534 = vpop.f32.mrf.mxu0
        %v1535 = vadd.f32 %v1470, %v1534
        %v1536 = vpop.f32.mrf.mxu0
        %v1537 = vpop.f32.mrf.mxu0
        %v1538 = vadd.f32 %v1473, %v1537
        %v1539 = vpop.f32.mrf.mxu0
        %1540 = vmatprep.mubr.bf16.mxu0 %v1176
        %1541 = vmatmul.mubr.bf16.gmra.mxu0 %v1175
        %v1542 = vpop.f32.mrf.mxu0
        %v1543 = vadd.f32 %v1478, %v1542
        %v1544 = vpop.f32.mrf.mxu0
        %v1545 = vpop.f32.mrf.mxu0
        %v1546 = vadd.f32 %v1481, %v1545
        %v1547 = vpop.f32.mrf.mxu0
        %1548 = vmatprep.mubr.bf16.mxu0 %v1181
        %1549 = vmatmul.mubr.bf16.gmra.mxu0 %v1180
        %v1550 = vpop.f32.mrf.mxu0
        %v1551 = vadd.f32 %v1486, %v1550
        %v1552 = vpop.f32.mrf.mxu0
        %v1553 = vpop.f32.mrf.mxu0
        %v1554 = vadd.f32 %v1489, %v1553
        %v1555 = vpop.f32.mrf.mxu0
        %1556 = vdwg.mxu0
        %1557 = vmatprep.subr.bf16.mxu0 0
        %1558 = vmatpush1.bf16.msra.mxu0 0
        %1559 = vmatprep.subr.bf16.mxu0 0
        %1560 = vmatpush1.bf16.msra.mxu0 0
        %1561 = vmatprep.subr.bf16.mxu0 0
        %1562 = vmatpush1.bf16.msra.mxu0 0
        %1563 = vmatprep.subr.bf16.mxu0 0
        %1564 = vmatpush1.bf16.msra.mxu0 0
        %1565 = vmatprep.subr.bf16.mxu0 0
        %1566 = vmatpush1.bf16.msra.mxu0 %v1378
        %1567 = vmatprep.subr.bf16.mxu0 0
        %1568 = vmatpush1.bf16.msra.mxu0 %v1377
        %1569 = vmatprep.subr.bf16.mxu0 0
        %1570 = vmatpush1.bf16.msra.mxu0 %v1376
        %1571 = vmatprep.subr.bf16.mxu0 0
        %1572 = vmatpush1.bf16.msra.mxu0 %v1375
        %1573 = vmatprep.subr.bf16.mxu0 0
        %1574 = vmatpush2.bf16.msra.mxu0 0
        %1575 = vmatprep.subr.bf16.mxu0 0
        %1576 = vmatpush2.bf16.msra.mxu0 0
        %1577 = vmatprep.subr.bf16.mxu0 0
        %1578 = vmatpush2.bf16.msra.mxu0 0
        %1579 = vmatprep.subr.bf16.mxu0 0
        %1580 = vmatpush2.bf16.msra.mxu0 0
        %1581 = vmatprep.subr.bf16.mxu0 0
        %1582 = vmatpush2.bf16.msra.mxu0 0
        %1583 = vmatprep.subr.bf16.mxu0 0
        %1584 = vmatpush2.bf16.msra.mxu0 0
        %1585 = vmatprep.subr.bf16.mxu0 0
        %1586 = vmatpush2.bf16.msra.mxu0 0
        %1587 = vmatprep.subr.bf16.mxu0 0
        %1588 = vmatpush2.bf16.msra.mxu0 0
        %1589 = vmatprep.mubr.bf16.mxu0 0
        %1590 = vmatmul.mubr.bf16.gmra.mxu0 %v1416
        %v1591 = vpop.f32.mrf.mxu0
        %v1592 = vadd.f32 %v1527, %v1591
        %v1593 = vpop.f32.mrf.mxu0
        %v1594 = vpop.f32.mrf.mxu0
        %v1595 = vadd.f32 %v1530, %v1594
        %v1596 = vpop.f32.mrf.mxu0
        %1597 = vmatprep.mubr.bf16.mxu0 0
        %1598 = vmatmul.mubr.bf16.gmra.mxu0 %v1419
        %v1599 = vpop.f32.mrf.mxu0
        %v1600 = vadd.f32 %v1535, %v1599
        %v1601 = vpop.f32.mrf.mxu0
        %v1602 = vpop.f32.mrf.mxu0
        %v1603 = vadd.f32 %v1538, %v1602
        %v1604 = vpop.f32.mrf.mxu0
        %1605 = vmatprep.mubr.bf16.mxu0 0
        %1606 = vmatmul.mubr.bf16.gmra.mxu0 %v1422
        %v1607 = vpop.f32.mrf.mxu0
        %v1608 = vadd.f32 %v1543, %v1607
        %v1609 = vpop.f32.mrf.mxu0
        %v1610 = vpop.f32.mrf.mxu0
        %v1611 = vadd.f32 %v1546, %v1610
        %v1612 = vpop.f32.mrf.mxu0
        %1613 = vmatprep.mubr.bf16.mxu0 0
        %1614 = vmatmul.mubr.bf16.gmra.mxu0 %v1425
        %v1615 = vpop.f32.mrf.mxu0
        %v1616 = vadd.f32 %v1551, %v1615
        %v1617 = vpop.f32.mrf.mxu0
        %v1618 = vpop.f32.mrf.mxu0
        %v1619 = vadd.f32 %v1554, %v1618
        %v1620 = vpop.f32.mrf.mxu0
        %1621 = vdwg.mxu0
        %vm1622 = vcmp.gt.f32.partialorder %v1592, 0.0
        %vm1623 = vcmp.gt.f32.partialorder %v1595, 0.0
        %vm1624 = vcmp.gt.f32.partialorder %v1600, 0.0
        %vm1625 = vcmp.gt.f32.partialorder %v1603, 0.0
        %vm1626 = vcmp.gt.f32.partialorder %v1608, 0.0
        %vm1627 = vcmp.gt.f32.partialorder %v1611, 0.0
        %vm1628 = vcmp.gt.f32.partialorder %v1616, 0.0
        %vm1629 = vcmp.gt.f32.partialorder %v1619, 0.0
        %v1630 = vmul.f32 %v1592, 0.01
        %v1631 = vmul.f32 %v1595, 0.01
        %v1632 = vmul.f32 %v1600, 0.01
        %v1633 = vmul.f32 %v1603, 0.01
        %v1634 = vmul.f32 %v1608, 0.01
        %v1635 = vmul.f32 %v1611, 0.01
        %v1636 = vmul.f32 %v1616, 0.01
        %v1637 = vmul.f32 %v1619, 0.01
        %v1638 = vsel %vm1622, %v1592, %v1630
        %v1639 = vsel %vm1623, %v1595, %v1631
        %v1640 = vsel %vm1624, %v1600, %v1632
        %v1641 = vsel %vm1625, %v1603, %v1633
        %v1642 = vsel %vm1626, %v1608, %v1634
        %v1643 = vsel %vm1627, %v1611, %v1635
        %v1644 = vsel %vm1628, %v1616, %v1636
        %v1645 = vsel %vm1629, %v1619, %v1637
        %v1646 = vpack.c.bf16 %v1639, %v1638
        %v1647 = vpack.c.bf16 %v1641, %v1640
        %v1648 = vpack.c.bf16 %v1643, %v1642
        %v1649 = vpack.c.bf16 %v1645, %v1644
        %v1650 = vld [vmem:[%s3] sm:$0xf]
        %v1651 = vld [vmem:[%s3 + $0x4] sm:$0xf]
        %v1652 = vld [vmem:[%s3 + $0x8] sm:$0xf]
        %v1653 = vld [vmem:[%s3 + $0xc] sm:$0xf]
        %v1654 = vld [vmem:[%s3 + $0x10] sm:$0xf]
        %v1655 = vld [vmem:[%s3 + $0x14] sm:$0xf]
        %v1656 = vld [vmem:[%s3 + $0x18] sm:$0xf]
        %v1657 = vld [vmem:[%s3 + $0x1c] sm:$0xf]
        %v1658 = vld [vmem:[%s3 + $0x20] sm:$0xf]
        %v1659 = vld [vmem:[%s3 + $0x24] sm:$0xf]
        %v1660 = vld [vmem:[%s3 + $0x28] sm:$0xf]
        %v1661 = vld [vmem:[%s3 + $0x2c] sm:$0xf]
        %v1662 = vld [vmem:[%s3 + $0x30] sm:$0xf]
        %v1663 = vld [vmem:[%s3 + $0x34] sm:$0xf]
        %v1664 = vld [vmem:[%s3 + $0x38] sm:$0xf]
        %v1665 = vld [vmem:[%s3 + $0x3c] sm:$0xf]
        %v1666 = vld [vmem:[%s4] sm:$0x1]
        %v1668 = vlaneseq
        %v1669 = vshrl.u32 %v1668, 7
        %v1670 = vsub.s32 0, %v1669
        %v1671 = vrot.slane %v1666, %v1670
        %v1689 = vunpack.c.l.b16 %v1650
        %v1690 = vunpack.c.l.b16 %v1651
        %v1691 = vunpack.c.l.b16 %v1652
        %v1692 = vunpack.c.l.b16 %v1653
        %v1693 = vunpack.c.l.b16 %v1654
        %v1694 = vunpack.c.l.b16 %v1655
        %v1695 = vunpack.c.l.b16 %v1656
        %v1696 = vunpack.c.l.b16 %v1657
        %v1697 = vunpack.c.l.b16 %v1658
        %v1698 = vunpack.c.l.b16 %v1659
        %v1699 = vunpack.c.l.b16 %v1660
        %v1700 = vunpack.c.l.b16 %v1661
        %v1701 = vunpack.c.l.b16 %v1662
        %v1702 = vunpack.c.l.b16 %v1663
        %v1703 = vunpack.c.l.b16 %v1664
        %v1704 = vunpack.c.l.b16 %v1665
        %v1705 = vpack.c.b16 %v1690, %v1689
        %v1706 = vpack.c.b16 %v1692, %v1691
        %v1707 = vpack.c.b16 %v1694, %v1693
        %v1708 = vpack.c.b16 %v1696, %v1695
        %v1709 = vpack.c.b16 %v1698, %v1697
        %v1710 = vpack.c.b16 %v1700, %v1699
        %v1711 = vpack.c.b16 %v1702, %v1701
        %v1712 = vpack.c.b16 %v1704, %v1703
        %1721 = vmatprep.subr.bf16.mxu0 0
        %1722 = vmatpush1.bf16.msra.mxu0 %v1712
        %1723 = vmatprep.subr.bf16.mxu0 0
        %1724 = vmatpush1.bf16.msra.mxu0 %v1711
        %1725 = vmatprep.subr.bf16.mxu0 0
        %1726 = vmatpush1.bf16.msra.mxu0 %v1710
        %1727 = vmatprep.subr.bf16.mxu0 0
        %1728 = vmatpush1.bf16.msra.mxu0 %v1709
        %1729 = vmatprep.subr.bf16.mxu0 0
        %1730 = vmatpush1.bf16.msra.mxu0 %v1708
        %1731 = vmatprep.subr.bf16.mxu0 0
        %1732 = vmatpush1.bf16.msra.mxu0 %v1707
        %1733 = vmatprep.subr.bf16.mxu0 0
        %1734 = vmatpush1.bf16.msra.mxu0 %v1706
        %1735 = vmatprep.subr.bf16.mxu0 0
        %1736 = vmatpush1.bf16.msra.mxu0 %v1705
        %1737 = vmatprep.subr.bf16.mxu0 0
        %1738 = vmatpush2.bf16.msra.mxu0 0
        %1739 = vmatprep.subr.bf16.mxu0 0
        %1740 = vmatpush2.bf16.msra.mxu0 0
        %1741 = vmatprep.subr.bf16.mxu0 0
        %1742 = vmatpush2.bf16.msra.mxu0 0
        %1743 = vmatprep.subr.bf16.mxu0 0
        %1744 = vmatpush2.bf16.msra.mxu0 0
        %1745 = vmatprep.subr.bf16.mxu0 0
        %1746 = vmatpush2.bf16.msra.mxu0 0
        %1747 = vmatprep.subr.bf16.mxu0 0
        %1748 = vmatpush2.bf16.msra.mxu0 0
        %1749 = vmatprep.subr.bf16.mxu0 0
        %1750 = vmatpush2.bf16.msra.mxu0 0
        %1751 = vmatprep.subr.bf16.mxu0 0
        %1752 = vmatpush2.bf16.msra.mxu0 0
        %1753 = vmatprep.mubr.bf16.mxu0 0
        %1754 = vmatmul.mubr.bf16.gmra.mxu0 %v1646
        %v1755 = vpop.f32.mrf.mxu0
        %v1756 = vadd.f32 %v1671, %v1755
        %v1757 = vpop.f32.mrf.mxu0
        %v1758 = vpop.f32.mrf.mxu0
        %v1759 = vadd.f32 %v1671, %v1758
        %v1760 = vpop.f32.mrf.mxu0
        %1761 = vmatprep.mubr.bf16.mxu0 0
        %1762 = vmatmul.mubr.bf16.gmra.mxu0 %v1647
        %v1763 = vpop.f32.mrf.mxu0
        %v1764 = vadd.f32 %v1671, %v1763
        %v1765 = vpop.f32.mrf.mxu0
        %v1766 = vpop.f32.mrf.mxu0
        %v1767 = vadd.f32 %v1671, %v1766
        %v1768 = vpop.f32.mrf.mxu0
        %1769 = vmatprep.mubr.bf16.mxu0 0
        %1770 = vmatmul.mubr.bf16.gmra.mxu0 %v1648
        %v1771 = vpop.f32.mrf.mxu0
        %v1772 = vadd.f32 %v1671, %v1771
        %v1773 = vpop.f32.mrf.mxu0
        %v1774 = vpop.f32.mrf.mxu0
        %v1775 = vadd.f32 %v1671, %v1774
        %v1776 = vpop.f32.mrf.mxu0
        %1777 = vmatprep.mubr.bf16.mxu0 0
        %1778 = vmatmul.mubr.bf16.gmra.mxu0 %v1649
        %v1779 = vpop.f32.mrf.mxu0
        %v1780 = vadd.f32 %v1671, %v1779
        %v1781 = vpop.f32.mrf.mxu0
        %v1782 = vpop.f32.mrf.mxu0
        %v1783 = vadd.f32 %v1671, %v1782
        %v1784 = vpop.f32.mrf.mxu0
        %1785 = vdwg.mxu0
        %vm1786 = vcmp.gt.f32.partialorder %v1756, 0.0
        %vm1787 = vcmp.gt.f32.partialorder %v1759, 0.0
        %vm1788 = vcmp.gt.f32.partialorder %v1764, 0.0
        %vm1789 = vcmp.gt.f32.partialorder %v1767, 0.0
        %vm1790 = vcmp.gt.f32.partialorder %v1772, 0.0
        %vm1791 = vcmp.gt.f32.partialorder %v1775, 0.0
        %vm1792 = vcmp.gt.f32.partialorder %v1780, 0.0
        %vm1793 = vcmp.gt.f32.partialorder %v1783, 0.0
        %v1794 = vmul.f32 %v1756, 0.01
        %v1795 = vmul.f32 %v1759, 0.01
        %v1796 = vmul.f32 %v1764, 0.01
        %v1797 = vmul.f32 %v1767, 0.01
        %v1798 = vmul.f32 %v1772, 0.01
        %v1799 = vmul.f32 %v1775, 0.01
        %v1800 = vmul.f32 %v1780, 0.01
        %v1801 = vmul.f32 %v1783, 0.01
        %v1802 = vsel %vm1786, %v1756, %v1794
        %v1803 = vsel %vm1787, %v1759, %v1795
        %v1804 = vsel %vm1788, %v1764, %v1796
        %v1805 = vsel %vm1789, %v1767, %v1797
        %v1806 = vsel %vm1790, %v1772, %v1798
        %v1807 = vsel %vm1791, %v1775, %v1799
        %v1808 = vsel %vm1792, %v1780, %v1800
        %v1809 = vsel %vm1793, %v1783, %v1801
        %v1810 = vld [vmem:[#allocation7] sm:$0xf]
        %v1811 = vld [vmem:[#allocation7 + $0x4] sm:$0xf]
        %v1812 = vld [vmem:[#allocation7 + $0x8] sm:$0xf]
        %v1813 = vld [vmem:[#allocation7 + $0xc] sm:$0xf]
        %v1814 = vld [vmem:[#allocation7 + $0x10] sm:$0xf]
        %v1815 = vld [vmem:[#allocation7 + $0x14] sm:$0xf]
        %v1816 = vld [vmem:[#allocation7 + $0x18] sm:$0xf]
        %v1817 = vld [vmem:[#allocation7 + $0x1c] sm:$0xf]
        %v1818 = vld [vmem:[#allocation7 + $0x20] sm:$0xf]
        %v1819 = vld [vmem:[#allocation7 + $0x24] sm:$0xf]
        %v1820 = vld [vmem:[#allocation7 + $0x28] sm:$0xf]
        %v1821 = vld [vmem:[#allocation7 + $0x2c] sm:$0xf]
        %v1822 = vld [vmem:[#allocation7 + $0x30] sm:$0xf]
        %v1823 = vld [vmem:[#allocation7 + $0x34] sm:$0xf]
        %v1824 = vld [vmem:[#allocation7 + $0x38] sm:$0xf]
        %v1825 = vld [vmem:[#allocation7 + $0x3c] sm:$0xf]
        %v1826 = vld [vmem:[%s6] sm:$0x1]
        %v1828 = vlaneseq
        %v1829 = vshrl.u32 %v1828, 7
        %v1830 = vsub.s32 0, %v1829
        %v1831 = vrot.slane %v1826, %v1830
        %v1849 = vunpack.c.l.b16 %v1810
        %v1850 = vunpack.c.l.b16 %v1811
        %v1851 = vunpack.c.l.b16 %v1812
        %v1852 = vunpack.c.l.b16 %v1813
        %v1853 = vunpack.c.l.b16 %v1814
        %v1854 = vunpack.c.l.b16 %v1815
        %v1855 = vunpack.c.l.b16 %v1816
        %v1856 = vunpack.c.l.b16 %v1817
        %v1857 = vunpack.c.l.b16 %v1818
        %v1858 = vunpack.c.l.b16 %v1819
        %v1859 = vunpack.c.l.b16 %v1820
        %v1860 = vunpack.c.l.b16 %v1821
        %v1861 = vunpack.c.l.b16 %v1822
        %v1862 = vunpack.c.l.b16 %v1823
        %v1863 = vunpack.c.l.b16 %v1824
        %v1864 = vunpack.c.l.b16 %v1825
        %v1865 = vpack.c.b16 %v1850, %v1849
        %v1866 = vpack.c.b16 %v1852, %v1851
        %v1867 = vpack.c.b16 %v1854, %v1853
        %v1868 = vpack.c.b16 %v1856, %v1855
        %v1869 = vpack.c.b16 %v1858, %v1857
        %v1870 = vpack.c.b16 %v1860, %v1859
        %v1871 = vpack.c.b16 %v1862, %v1861
        %v1872 = vpack.c.b16 %v1864, %v1863
        %1881 = vmatprep.subr.bf16.mxu0 0
        %1882 = vmatpush1.bf16.msra.mxu0 %v1872
        %1883 = vmatprep.subr.bf16.mxu0 0
        %1884 = vmatpush1.bf16.msra.mxu0 %v1871
        %1885 = vmatprep.subr.bf16.mxu0 0
        %1886 = vmatpush1.bf16.msra.mxu0 %v1870
        %1887 = vmatprep.subr.bf16.mxu0 0
        %1888 = vmatpush1.bf16.msra.mxu0 %v1869
        %1889 = vmatprep.subr.bf16.mxu0 0
        %1890 = vmatpush1.bf16.msra.mxu0 %v1868
        %1891 = vmatprep.subr.bf16.mxu0 0
        %1892 = vmatpush1.bf16.msra.mxu0 %v1867
        %1893 = vmatprep.subr.bf16.mxu0 0
        %1894 = vmatpush1.bf16.msra.mxu0 %v1866
        %1895 = vmatprep.subr.bf16.mxu0 0
        %1896 = vmatpush1.bf16.msra.mxu0 %v1865
        %1897 = vmatprep.subr.bf16.mxu0 0
        %1898 = vmatpush2.bf16.msra.mxu0 0
        %1899 = vmatprep.subr.bf16.mxu0 0
        %1900 = vmatpush2.bf16.msra.mxu0 0
        %1901 = vmatprep.subr.bf16.mxu0 0
        %1902 = vmatpush2.bf16.msra.mxu0 0
        %1903 = vmatprep.subr.bf16.mxu0 0
        %1904 = vmatpush2.bf16.msra.mxu0 0
        %1905 = vmatprep.subr.bf16.mxu0 0
        %1906 = vmatpush2.bf16.msra.mxu0 0
        %1907 = vmatprep.subr.bf16.mxu0 0
        %1908 = vmatpush2.bf16.msra.mxu0 0
        %1909 = vmatprep.subr.bf16.mxu0 0
        %1910 = vmatpush2.bf16.msra.mxu0 0
        %1911 = vmatprep.subr.bf16.mxu0 0
        %1912 = vmatpush2.bf16.msra.mxu0 0
        %1913 = vmatprep.mubr.bf16.mxu0 0
        %1914 = vmatmul.mubr.bf16.gmra.mxu0 %v1646
        %v1915 = vpop.f32.mrf.mxu0
        %v1916 = vadd.f32 %v1831, %v1915
        %v1917 = vpop.f32.mrf.mxu0
        %v1918 = vpop.f32.mrf.mxu0
        %v1919 = vadd.f32 %v1831, %v1918
        %v1920 = vpop.f32.mrf.mxu0
        %1921 = vmatprep.mubr.bf16.mxu0 0
        %1922 = vmatmul.mubr.bf16.gmra.mxu0 %v1647
        %v1923 = vpop.f32.mrf.mxu0
        %v1924 = vadd.f32 %v1831, %v1923
        %v1925 = vpop.f32.mrf.mxu0
        %v1926 = vpop.f32.mrf.mxu0
        %v1927 = vadd.f32 %v1831, %v1926
        %v1928 = vpop.f32.mrf.mxu0
        %1929 = vmatprep.mubr.bf16.mxu0 0
        %1930 = vmatmul.mubr.bf16.gmra.mxu0 %v1648
        %v1931 = vpop.f32.mrf.mxu0
        %v1932 = vadd.f32 %v1831, %v1931
        %v1933 = vpop.f32.mrf.mxu0
        %v1934 = vpop.f32.mrf.mxu0
        %v1935 = vadd.f32 %v1831, %v1934
        %v1936 = vpop.f32.mrf.mxu0
        %1937 = vmatprep.mubr.bf16.mxu0 0
        %1938 = vmatmul.mubr.bf16.gmra.mxu0 %v1649
        %v1939 = vpop.f32.mrf.mxu0
        %v1940 = vadd.f32 %v1831, %v1939
        %v1941 = vpop.f32.mrf.mxu0
        %v1942 = vpop.f32.mrf.mxu0
        %v1943 = vadd.f32 %v1831, %v1942
        %v1944 = vpop.f32.mrf.mxu0
        %1945 = vdwg.mxu0
        %vm1946 = vcmp.gt.f32.partialorder %v1916, 0.0
        %vm1947 = vcmp.gt.f32.partialorder %v1919, 0.0
        %vm1948 = vcmp.gt.f32.partialorder %v1924, 0.0
        %vm1949 = vcmp.gt.f32.partialorder %v1927, 0.0
        %vm1950 = vcmp.gt.f32.partialorder %v1932, 0.0
        %vm1951 = vcmp.gt.f32.partialorder %v1935, 0.0
        %vm1952 = vcmp.gt.f32.partialorder %v1940, 0.0
        %vm1953 = vcmp.gt.f32.partialorder %v1943, 0.0
        %v1954 = vmul.f32 %v1916, 0.01
        %v1955 = vmul.f32 %v1919, 0.01
        %v1956 = vmul.f32 %v1924, 0.01
        %v1957 = vmul.f32 %v1927, 0.01
        %v1958 = vmul.f32 %v1932, 0.01
        %v1959 = vmul.f32 %v1935, 0.01
        %v1960 = vmul.f32 %v1940, 0.01
        %v1961 = vmul.f32 %v1943, 0.01
        %v1962 = vsel %vm1946, %v1916, %v1954
        %v1963 = vsel %vm1947, %v1919, %v1955
        %v1964 = vsel %vm1948, %v1924, %v1956
        %v1965 = vsel %vm1949, %v1927, %v1957
        %v1966 = vsel %vm1950, %v1932, %v1958
        %v1967 = vsel %vm1951, %v1935, %v1959
        %v1968 = vsel %vm1952, %v1940, %v1960
        %v1969 = vsel %vm1953, %v1943, %v1961
        %v1970 = vpack.c.bf16 %v1963, %v1962
        %v1971 = vpack.c.bf16 %v1965, %v1964
        %v1972 = vpack.c.bf16 %v1967, %v1966
        %v1973 = vpack.c.bf16 %v1969, %v1968
        %v1974 = vld [vmem:[%s7] sm:$0xf]
        %v1975 = vld [vmem:[%s7 + $0x4] sm:$0xf]
        %v1976 = vld [vmem:[%s7 + $0x8] sm:$0xf]
        %v1977 = vld [vmem:[%s7 + $0xc] sm:$0xf]
        %v1978 = vld [vmem:[%s7 + $0x10] sm:$0xf]
        %v1979 = vld [vmem:[%s7 + $0x14] sm:$0xf]
        %v1980 = vld [vmem:[%s7 + $0x18] sm:$0xf]
        %v1981 = vld [vmem:[%s7 + $0x1c] sm:$0xf]
        %v1982 = vld [vmem:[%s7 + $0x20] sm:$0xf]
        %v1983 = vld [vmem:[%s7 + $0x24] sm:$0xf]
        %v1984 = vld [vmem:[%s7 + $0x28] sm:$0xf]
        %v1985 = vld [vmem:[%s7 + $0x2c] sm:$0xf]
        %v1986 = vld [vmem:[%s7 + $0x30] sm:$0xf]
        %v1987 = vld [vmem:[%s7 + $0x34] sm:$0xf]
        %v1988 = vld [vmem:[%s7 + $0x38] sm:$0xf]
        %v1989 = vld [vmem:[%s7 + $0x3c] sm:$0xf]
        %v1990 = vld [vmem:[%s8] sm:$0x1]
        %v1992 = vlaneseq
        %v1993 = vshrl.u32 %v1992, 7
        %v1994 = vsub.s32 0, %v1993
        %v1995 = vrot.slane %v1990, %v1994
        %v2013 = vunpack.c.l.b16 %v1974
        %v2014 = vunpack.c.l.b16 %v1975
        %v2015 = vunpack.c.l.b16 %v1976
        %v2016 = vunpack.c.l.b16 %v1977
        %v2017 = vunpack.c.l.b16 %v1978
        %v2018 = vunpack.c.l.b16 %v1979
        %v2019 = vunpack.c.l.b16 %v1980
        %v2020 = vunpack.c.l.b16 %v1981
        %v2021 = vunpack.c.l.b16 %v1982
        %v2022 = vunpack.c.l.b16 %v1983
        %v2023 = vunpack.c.l.b16 %v1984
        %v2024 = vunpack.c.l.b16 %v1985
        %v2025 = vunpack.c.l.b16 %v1986
        %v2026 = vunpack.c.l.b16 %v1987
        %v2027 = vunpack.c.l.b16 %v1988
        %v2028 = vunpack.c.l.b16 %v1989
        %v2029 = vpack.c.b16 %v2014, %v2013
        %v2030 = vpack.c.b16 %v2016, %v2015
        %v2031 = vpack.c.b16 %v2018, %v2017
        %v2032 = vpack.c.b16 %v2020, %v2019
        %v2033 = vpack.c.b16 %v2022, %v2021
        %v2034 = vpack.c.b16 %v2024, %v2023
        %v2035 = vpack.c.b16 %v2026, %v2025
        %v2036 = vpack.c.b16 %v2028, %v2027
        %2045 = vmatprep.subr.bf16.mxu0 0
        %2046 = vmatpush1.bf16.msra.mxu0 %v2036
        %2047 = vmatprep.subr.bf16.mxu0 0
        %2048 = vmatpush1.bf16.msra.mxu0 %v2035
        %2049 = vmatprep.subr.bf16.mxu0 0
        %2050 = vmatpush1.bf16.msra.mxu0 %v2034
        %2051 = vmatprep.subr.bf16.mxu0 0
        %2052 = vmatpush1.bf16.msra.mxu0 %v2033
        %2053 = vmatprep.subr.bf16.mxu0 0
        %2054 = vmatpush1.bf16.msra.mxu0 %v2032
        %2055 = vmatprep.subr.bf16.mxu0 0
        %2056 = vmatpush1.bf16.msra.mxu0 %v2031
        %2057 = vmatprep.subr.bf16.mxu0 0
        %2058 = vmatpush1.bf16.msra.mxu0 %v2030
        %2059 = vmatprep.subr.bf16.mxu0 0
        %2060 = vmatpush1.bf16.msra.mxu0 %v2029
        %2061 = vmatprep.subr.bf16.mxu0 0
        %2062 = vmatpush2.bf16.msra.mxu0 0
        %2063 = vmatprep.subr.bf16.mxu0 0
        %2064 = vmatpush2.bf16.msra.mxu0 0
        %2065 = vmatprep.subr.bf16.mxu0 0
        %2066 = vmatpush2.bf16.msra.mxu0 0
        %2067 = vmatprep.subr.bf16.mxu0 0
        %2068 = vmatpush2.bf16.msra.mxu0 0
        %2069 = vmatprep.subr.bf16.mxu0 0
        %2070 = vmatpush2.bf16.msra.mxu0 0
        %2071 = vmatprep.subr.bf16.mxu0 0
        %2072 = vmatpush2.bf16.msra.mxu0 0
        %2073 = vmatprep.subr.bf16.mxu0 0
        %2074 = vmatpush2.bf16.msra.mxu0 0
        %2075 = vmatprep.subr.bf16.mxu0 0
        %2076 = vmatpush2.bf16.msra.mxu0 0
        %2077 = vmatprep.mubr.bf16.mxu0 0
        %2078 = vmatmul.mubr.bf16.gmra.mxu0 %v1970
        %v2079 = vpop.f32.mrf.mxu0
        %v2080 = vadd.f32 %v1995, %v2079
        %v2081 = vpop.f32.mrf.mxu0
        %v2082 = vpop.f32.mrf.mxu0
        %v2083 = vadd.f32 %v1995, %v2082
        %v2084 = vpop.f32.mrf.mxu0
        %2085 = vmatprep.mubr.bf16.mxu0 0
        %2086 = vmatmul.mubr.bf16.gmra.mxu0 %v1971
        %v2087 = vpop.f32.mrf.mxu0
        %v2088 = vadd.f32 %v1995, %v2087
        %v2089 = vpop.f32.mrf.mxu0
        %v2090 = vpop.f32.mrf.mxu0
        %v2091 = vadd.f32 %v1995, %v2090
        %v2092 = vpop.f32.mrf.mxu0
        %2093 = vmatprep.mubr.bf16.mxu0 0
        %2094 = vmatmul.mubr.bf16.gmra.mxu0 %v1972
        %v2095 = vpop.f32.mrf.mxu0
        %v2096 = vadd.f32 %v1995, %v2095
        %v2097 = vpop.f32.mrf.mxu0
        %v2098 = vpop.f32.mrf.mxu0
        %v2099 = vadd.f32 %v1995, %v2098
        %v2100 = vpop.f32.mrf.mxu0
        %2101 = vmatprep.mubr.bf16.mxu0 0
        %2102 = vmatmul.mubr.bf16.gmra.mxu0 %v1973
        %v2103 = vpop.f32.mrf.mxu0
        %v2104 = vadd.f32 %v1995, %v2103
        %v2105 = vpop.f32.mrf.mxu0
        %v2106 = vpop.f32.mrf.mxu0
        %v2107 = vadd.f32 %v1995, %v2106
        %v2108 = vpop.f32.mrf.mxu0
        %2109 = vdwg.mxu0
        %vm2110 = vcmp.gt.f32.partialorder %v2080, 0.0
        %vm2111 = vcmp.gt.f32.partialorder %v2083, 0.0
        %vm2112 = vcmp.gt.f32.partialorder %v2088, 0.0
        %vm2113 = vcmp.gt.f32.partialorder %v2091, 0.0
        %vm2114 = vcmp.gt.f32.partialorder %v2096, 0.0
        %vm2115 = vcmp.gt.f32.partialorder %v2099, 0.0
        %vm2116 = vcmp.gt.f32.partialorder %v2104, 0.0
        %vm2117 = vcmp.gt.f32.partialorder %v2107, 0.0
        %v2118 = vmul.f32 %v2080, 0.01
        %v2119 = vmul.f32 %v2083, 0.01
        %v2120 = vmul.f32 %v2088, 0.01
        %v2121 = vmul.f32 %v2091, 0.01
        %v2122 = vmul.f32 %v2096, 0.01
        %v2123 = vmul.f32 %v2099, 0.01
        %v2124 = vmul.f32 %v2104, 0.01
        %v2125 = vmul.f32 %v2107, 0.01
        %v2126 = vsel %vm2110, %v2080, %v2118
        %v2127 = vsel %vm2111, %v2083, %v2119
        %v2128 = vsel %vm2112, %v2088, %v2120
        %v2129 = vsel %vm2113, %v2091, %v2121
        %v2130 = vsel %vm2114, %v2096, %v2122
        %v2131 = vsel %vm2115, %v2099, %v2123
        %v2132 = vsel %vm2116, %v2104, %v2124
        %v2133 = vsel %vm2117, %v2107, %v2125
        %v2134 = vpack.c.bf16 %v2127, %v2126
        %v2135 = vpack.c.bf16 %v2129, %v2128
        %v2136 = vpack.c.bf16 %v2131, %v2130
        %v2137 = vpack.c.bf16 %v2133, %v2132
        %v2142 = vunpack.c.l.b16 %v2134
        %v2143 = vunpack.c.h.b16 %v2134
        %v2144 = vunpack.c.l.b16 %v2135
        %v2145 = vunpack.c.h.b16 %v2135
        %v2146 = vunpack.c.l.b16 %v2136
        %v2147 = vunpack.c.h.b16 %v2136
        %v2148 = vunpack.c.l.b16 %v2137
        %v2149 = vunpack.c.h.b16 %v2137
        %v2150 = vpack.c.b16 %v2142, %v2142
        %v2151 = vpack.c.b16 %v2143, %v2143
        %v2152 = vpack.c.b16 %v2144, %v2144
        %v2153 = vpack.c.b16 %v2145, %v2145
        %v2154 = vpack.c.b16 %v2146, %v2146
        %v2155 = vpack.c.b16 %v2147, %v2147
        %v2156 = vpack.c.b16 %v2148, %v2148
        %v2157 = vpack.c.b16 %v2149, %v2149
        %v2159 = vshrl.u32 %v2150, 16
        %v2161 = vrot.slane %v2159, 7
        %v2162 = vshll.u32 %v2150, 16
        %v2164 = vor.u32 %v2161, %v2162
        %v2166 = vshrl.u32 %v2151, 16
        %v2168 = vrot.slane %v2166, 7
        %v2169 = vshll.u32 %v2151, 16
        %v2171 = vor.u32 %v2168, %v2169
        %v2173 = vshrl.u32 %v2152, 16
        %v2175 = vrot.slane %v2173, 7
        %v2176 = vshll.u32 %v2152, 16
        %v2178 = vor.u32 %v2175, %v2176
        %v2180 = vshrl.u32 %v2153, 16
        %v2182 = vrot.slane %v2180, 7
        %v2183 = vshll.u32 %v2153, 16
        %v2185 = vor.u32 %v2182, %v2183
        %v2187 = vshrl.u32 %v2154, 16
        %v2189 = vrot.slane %v2187, 7
        %v2190 = vshll.u32 %v2154, 16
        %v2192 = vor.u32 %v2189, %v2190
        %v2194 = vshrl.u32 %v2155, 16
        %v2196 = vrot.slane %v2194, 7
        %v2197 = vshll.u32 %v2155, 16
        %v2199 = vor.u32 %v2196, %v2197
        %v2201 = vshrl.u32 %v2156, 16
        %v2203 = vrot.slane %v2201, 7
        %v2204 = vshll.u32 %v2156, 16
        %v2206 = vor.u32 %v2203, %v2204
        %v2208 = vshrl.u32 %v2157, 16
        %v2210 = vrot.slane %v2208, 7
        %v2211 = vshll.u32 %v2157, 16
        %v2213 = vor.u32 %v2210, %v2211
        %v2222 = vsel %vm822, 0, %v2164
        %v2223 = vsel %vm822, 0, %v2171
        %v2224 = vsel %vm822, 0, %v2178
        %v2225 = vsel %vm822, 0, %v2185
        %v2226 = vsel %vm822, 0, %v2192
        %v2227 = vsel %vm822, 0, %v2199
        %v2228 = vsel %vm822, 0, %v2206
        %v2229 = vsel %vm822, 0, %v2213
        %v2230 = vrot.slane %v2162, 1
        %v2231 = vor.u32 %v2159, %v2230
        %v2232 = vrot.slane %v2169, 1
        %v2233 = vor.u32 %v2166, %v2232
        %v2234 = vrot.slane %v2176, 1
        %v2235 = vor.u32 %v2173, %v2234
        %v2236 = vrot.slane %v2183, 1
        %v2237 = vor.u32 %v2180, %v2236
        %v2238 = vrot.slane %v2190, 1
        %v2239 = vor.u32 %v2187, %v2238
        %v2240 = vrot.slane %v2197, 1
        %v2241 = vor.u32 %v2194, %v2240
        %v2242 = vrot.slane %v2204, 1
        %v2243 = vor.u32 %v2201, %v2242
        %v2244 = vrot.slane %v2211, 1
        %v2245 = vor.u32 %v2208, %v2244
        %vm2254 = vcmask 1043456
        %vm2255 = vsmask.f32 3328
        %vm2256 = vmand %vm2254, %vm2255
        %v2257 = vsel %vm2256, %v2231, 0
        %v2258 = vsel %vm2256, %v2233, 0
        %v2259 = vsel %vm2256, %v2235, 0
        %v2260 = vsel %vm2256, %v2237, 0
        %v2261 = vsel %vm2256, %v2239, 0
        %v2262 = vsel %vm2256, %v2241, 0
        %v2263 = vsel %vm2256, %v2243, 0
        %v2264 = vsel %vm2256, %v2245, 0
        %2265 = vrot.lane.b32.xlu0 %v2150, 64
        %v2266 = vpop.permute.xlu0 %2265
        %2267 = vrot.lane.b32.xlu0 %v2151, 64
        %v2268 = vpop.permute.xlu0 %2267
        %2269 = vrot.lane.b32.xlu0 %v2152, 64
        %v2270 = vpop.permute.xlu0 %2269
        %2271 = vrot.lane.b32.xlu0 %v2153, 64
        %v2272 = vpop.permute.xlu0 %2271
        %2273 = vrot.lane.b32.xlu0 %v2154, 64
        %v2274 = vpop.permute.xlu0 %2273
        %2275 = vrot.lane.b32.xlu0 %v2155, 64
        %v2276 = vpop.permute.xlu0 %2275
        %2277 = vrot.lane.b32.xlu0 %v2156, 64
        %v2278 = vpop.permute.xlu0 %2277
        %2279 = vrot.lane.b32.xlu0 %v2157, 64
        %v2280 = vpop.permute.xlu0 %2279
        %v2283 = vsel %vm919, %v2222, %v2266
        %v2286 = vsel %vm919, %v2223, %v2268
        %v2289 = vsel %vm919, %v2224, %v2270
        %v2292 = vsel %vm919, %v2225, %v2272
        %v2295 = vsel %vm919, %v2226, %v2274
        %v2298 = vsel %vm919, %v2227, %v2276
        %v2301 = vsel %vm919, %v2228, %v2278
        %v2304 = vsel %vm919, %v2229, %v2280
        %2321 = vrot.lane.b32.xlu0 %v2283, 64
        %v2322 = vpop.permute.xlu0 %2321
        %2323 = vrot.lane.b32.xlu0 %v2257, 64
        %v2324 = vpop.permute.xlu0 %2323
        %2325 = vrot.lane.b32.xlu0 %v2286, 64
        %v2326 = vpop.permute.xlu0 %2325
        %2327 = vrot.lane.b32.xlu0 %v2258, 64
        %v2328 = vpop.permute.xlu0 %2327
        %2329 = vrot.lane.b32.xlu0 %v2289, 64
        %v2330 = vpop.permute.xlu0 %2329
        %2331 = vrot.lane.b32.xlu0 %v2259, 64
        %v2332 = vpop.permute.xlu0 %2331
        %2333 = vrot.lane.b32.xlu0 %v2292, 64
        %v2334 = vpop.permute.xlu0 %2333
        %2335 = vrot.lane.b32.xlu0 %v2260, 64
        %v2336 = vpop.permute.xlu0 %2335
        %2337 = vrot.lane.b32.xlu0 %v2295, 64
        %v2338 = vpop.permute.xlu0 %2337
        %2339 = vrot.lane.b32.xlu0 %v2261, 64
        %v2340 = vpop.permute.xlu0 %2339
        %2341 = vrot.lane.b32.xlu0 %v2298, 64
        %v2342 = vpop.permute.xlu0 %2341
        %2343 = vrot.lane.b32.xlu0 %v2262, 64
        %v2344 = vpop.permute.xlu0 %2343
        %2345 = vrot.lane.b32.xlu0 %v2301, 64
        %v2346 = vpop.permute.xlu0 %2345
        %2347 = vrot.lane.b32.xlu0 %v2263, 64
        %v2348 = vpop.permute.xlu0 %2347
        %2349 = vrot.lane.b32.xlu0 %v2304, 64
        %v2350 = vpop.permute.xlu0 %2349
        %2351 = vrot.lane.b32.xlu0 %v2264, 64
        %v2352 = vpop.permute.xlu0 %2351
        %v2353 = vsel %vm1008, %v2322, %v2324
        %v2354 = vsel %vm1008, %v2326, %v2328
        %v2355 = vsel %vm1008, %v2330, %v2332
        %v2356 = vsel %vm1008, %v2334, %v2336
        %v2357 = vsel %vm1008, %v2338, %v2340
        %v2358 = vsel %vm1008, %v2342, %v2344
        %v2359 = vsel %vm1008, %v2346, %v2348
        %v2360 = vsel %vm1008, %v2350, %v2352
        %v2362 = vsel %vm919, 0, %v2322
        %v2365 = vsel %vm919, %v2257, %v2326
        %v2368 = vsel %vm919, %v2258, %v2330
        %v2371 = vsel %vm919, %v2259, %v2334
        %v2374 = vsel %vm919, %v2260, %v2338
        %v2377 = vsel %vm919, %v2261, %v2342
        %v2380 = vsel %vm919, %v2262, %v2346
        %v2383 = vsel %vm919, %v2263, %v2350
        %v2392 = vunpack.c.l.b16 %v2362
        %v2393 = vunpack.c.l.b16 %v2353
        %v2394 = vunpack.c.l.b16 %v2286
        %v2395 = vunpack.c.l.b16 %v2258
        %v2396 = vunpack.c.l.b16 %v2283
        %v2397 = vunpack.c.l.b16 %v2365
        %v2398 = vunpack.c.l.b16 %v2354
        %v2399 = vunpack.c.l.b16 %v2289
        %v2400 = vunpack.c.l.b16 %v2259
        %v2401 = vunpack.c.l.b16 %v2368
        %v2402 = vunpack.c.l.b16 %v2355
        %v2403 = vunpack.c.l.b16 %v2292
        %v2404 = vunpack.c.l.b16 %v2260
        %v2405 = vunpack.c.l.b16 %v2371
        %v2406 = vunpack.c.l.b16 %v2356
        %v2407 = vunpack.c.l.b16 %v2295
        %v2408 = vunpack.c.l.b16 %v2261
        %v2409 = vunpack.c.l.b16 %v2374
        %v2410 = vunpack.c.l.b16 %v2357
        %v2411 = vunpack.c.l.b16 %v2298
        %v2412 = vunpack.c.l.b16 %v2262
        %v2413 = vunpack.c.l.b16 %v2377
        %v2414 = vunpack.c.l.b16 %v2358
        %v2415 = vunpack.c.l.b16 %v2301
        %v2416 = vunpack.c.l.b16 %v2263
        %v2417 = vunpack.c.l.b16 %v2380
        %v2418 = vunpack.c.l.b16 %v2359
        %v2419 = vunpack.c.l.b16 %v2304
        %v2420 = vunpack.c.l.b16 %v2264
        %v2421 = vunpack.c.l.b16 %v2383
        %v2422 = vunpack.c.l.b16 %v2360
        %v2423 = vld [vmem:[#allocation8] sm:$0xf]
        %v2424 = vld [vmem:[#allocation8 + $0x4] sm:$0xf]
        %v2425 = vld [vmem:[#allocation8 + $0x8] sm:$0xf]
        %v2426 = vld [vmem:[#allocation8 + $0xc] sm:$0xf]
        %v2427 = vld [vmem:[#allocation8 + $0x10] sm:$0xf]
        %v2428 = vld [vmem:[#allocation8 + $0x14] sm:$0xf]
        %v2429 = vld [vmem:[#allocation8 + $0x18] sm:$0xf]
        %v2430 = vld [vmem:[#allocation8 + $0x1c] sm:$0xf]
        %v2431 = vld [vmem:[#allocation8 + $0x20] sm:$0xf]
        %v2432 = vld [vmem:[#allocation8 + $0x24] sm:$0xf]
        %v2433 = vld [vmem:[#allocation8 + $0x28] sm:$0xf]
        %v2434 = vld [vmem:[#allocation8 + $0x2c] sm:$0xf]
        %v2435 = vld [vmem:[#allocation8 + $0x30] sm:$0xf]
        %v2436 = vld [vmem:[#allocation8 + $0x34] sm:$0xf]
        %v2437 = vld [vmem:[#allocation8 + $0x38] sm:$0xf]
        %v2438 = vld [vmem:[#allocation8 + $0x3c] sm:$0xf]
        %v2439 = vld [vmem:[#allocation8 + $0x40] sm:$0xf]
        %v2440 = vld [vmem:[#allocation8 + $0x44] sm:$0xf]
        %v2441 = vld [vmem:[#allocation8 + $0x48] sm:$0xf]
        %v2442 = vld [vmem:[#allocation8 + $0x4c] sm:$0xf]
        %v2443 = vld [vmem:[#allocation8 + $0x50] sm:$0xf]
        %v2444 = vld [vmem:[#allocation8 + $0x54] sm:$0xf]
        %v2445 = vld [vmem:[#allocation8 + $0x58] sm:$0xf]
        %v2446 = vld [vmem:[#allocation8 + $0x5c] sm:$0xf]
        %v2447 = vld [vmem:[#allocation8 + $0x60] sm:$0xf]
        %v2448 = vld [vmem:[#allocation8 + $0x64] sm:$0xf]
        %v2449 = vld [vmem:[#allocation8 + $0x68] sm:$0xf]
        %v2450 = vld [vmem:[#allocation8 + $0x6c] sm:$0xf]
        %v2451 = vld [vmem:[#allocation8 + $0x70] sm:$0xf]
        %v2452 = vld [vmem:[#allocation8 + $0x74] sm:$0xf]
        %v2453 = vld [vmem:[#allocation8 + $0x78] sm:$0xf]
        %v2454 = vld [vmem:[#allocation8 + $0x7c] sm:$0xf]
        %v2455 = vld [vmem:[#allocation8 + $0x80] sm:$0xf]
        %v2456 = vld [vmem:[#allocation8 + $0x84] sm:$0xf]
        %v2457 = vld [vmem:[#allocation8 + $0x88] sm:$0xf]
        %v2458 = vld [vmem:[#allocation8 + $0x8c] sm:$0xf]
        %v2459 = vld [vmem:[#allocation8 + $0x90] sm:$0xf]
        %v2460 = vld [vmem:[#allocation8 + $0x94] sm:$0xf]
        %v2461 = vld [vmem:[#allocation8 + $0x98] sm:$0xf]
        %v2462 = vld [vmem:[#allocation8 + $0x9c] sm:$0xf]
        %v2463 = vld [vmem:[#allocation8 + $0xa0] sm:$0xf]
        %v2464 = vld [vmem:[#allocation8 + $0xa4] sm:$0xf]
        %v2465 = vld [vmem:[#allocation8 + $0xa8] sm:$0xf]
        %v2466 = vld [vmem:[#allocation8 + $0xac] sm:$0xf]
        %v2467 = vld [vmem:[#allocation8 + $0xb0] sm:$0xf]
        %v2468 = vld [vmem:[#allocation8 + $0xb4] sm:$0xf]
        %v2469 = vld [vmem:[#allocation8 + $0xb8] sm:$0xf]
        %v2470 = vld [vmem:[#allocation8 + $0xbc] sm:$0xf]
        %v2471 = vld [vmem:[#allocation8 + $0xc0] sm:$0xf]
        %v2472 = vld [vmem:[#allocation8 + $0xc4] sm:$0xf]
        %v2473 = vld [vmem:[#allocation8 + $0xc8] sm:$0xf]
        %v2474 = vld [vmem:[#allocation8 + $0xcc] sm:$0xf]
        %v2475 = vld [vmem:[#allocation8 + $0xd0] sm:$0xf]
        %v2476 = vld [vmem:[#allocation8 + $0xd4] sm:$0xf]
        %v2477 = vld [vmem:[#allocation8 + $0xd8] sm:$0xf]
        %v2478 = vld [vmem:[#allocation8 + $0xdc] sm:$0xf]
        %v2479 = vld [vmem:[#allocation8 + $0xe0] sm:$0xf]
        %v2480 = vld [vmem:[#allocation8 + $0xe4] sm:$0xf]
        %v2481 = vld [vmem:[#allocation8 + $0xe8] sm:$0xf]
        %v2482 = vld [vmem:[#allocation8 + $0xec] sm:$0xf]
        %v2483 = vld [vmem:[#allocation8 + $0xf0] sm:$0xf]
        %v2484 = vld [vmem:[#allocation8 + $0xf4] sm:$0xf]
        %v2485 = vld [vmem:[#allocation8 + $0xf8] sm:$0xf]
        %v2486 = vld [vmem:[#allocation8 + $0xfc] sm:$0xf]
        %v2487 = vld [vmem:[#allocation8 + $0x100] sm:$0xf]
        %v2488 = vld [vmem:[#allocation8 + $0x104] sm:$0xf]
        %v2489 = vld [vmem:[#allocation8 + $0x108] sm:$0xf]
        %v2490 = vld [vmem:[#allocation8 + $0x10c] sm:$0xf]
        %v2491 = vld [vmem:[#allocation8 + $0x110] sm:$0xf]
        %v2492 = vld [vmem:[#allocation8 + $0x114] sm:$0xf]
        %v2493 = vld [vmem:[#allocation8 + $0x118] sm:$0xf]
        %v2494 = vld [vmem:[#allocation8 + $0x11c] sm:$0xf]
        %v2495 = vld [vmem:[%s10] sm:$0x1]
        %v2497 = vlaneseq
        %v2498 = vshrl.u32 %v2497, 7
        %v2499 = vsub.s32 0, %v2498
        %v2500 = vrot.slane %v2495, %v2499
        %v2502 = vpack.c.b16 %v2396, %v1051
        %v2503 = vpack.c.b16 %v2397, %v2392
        %v2504 = vpack.c.b16 %v2398, %v2393
        %v2505 = vpack.c.b16 %v2399, %v2394
        %v2506 = vpack.c.b16 %v2400, %v2395
        %v2507 = vpack.c.b16 %v2405, %v2401
        %v2508 = vpack.c.b16 %v2406, %v2402
        %v2509 = vpack.c.b16 %v2407, %v2403
        %v2510 = vpack.c.b16 %v2408, %v2404
        %v2511 = vpack.c.b16 %v2413, %v2409
        %v2512 = vpack.c.b16 %v2414, %v2410
        %v2513 = vpack.c.b16 %v2415, %v2411
        %v2514 = vpack.c.b16 %v2416, %v2412
        %v2515 = vpack.c.b16 %v2421, %v2417
        %v2516 = vpack.c.b16 %v2422, %v2418
        %v2517 = vpack.c.b16 %v1051, %v2419
        %v2518 = vpack.c.b16 %v1051, %v2420
        %v2604 = vunpack.c.l.b16 %v2423
        %v2605 = vunpack.c.l.b16 %v2424
        %v2606 = vunpack.c.l.b16 %v2425
        %v2607 = vunpack.c.l.b16 %v2426
        %v2608 = vunpack.c.l.b16 %v2427
        %v2609 = vunpack.c.l.b16 %v2428
        %v2610 = vunpack.c.l.b16 %v2429
        %v2611 = vunpack.c.l.b16 %v2430
        %v2612 = vunpack.c.l.b16 %v2431
        %v2613 = vunpack.c.l.b16 %v2432
        %v2614 = vunpack.c.l.b16 %v2433
        %v2615 = vunpack.c.l.b16 %v2434
        %v2616 = vunpack.c.l.b16 %v2435
        %v2617 = vunpack.c.l.b16 %v2436
        %v2618 = vunpack.c.l.b16 %v2437
        %v2619 = vunpack.c.l.b16 %v2438
        %v2620 = vunpack.c.l.b16 %v2439
        %v2621 = vunpack.c.l.b16 %v2440
        %v2622 = vunpack.c.l.b16 %v2441
        %v2623 = vunpack.c.l.b16 %v2442
        %v2624 = vunpack.c.l.b16 %v2443
        %v2625 = vunpack.c.l.b16 %v2444
        %v2626 = vunpack.c.l.b16 %v2445
        %v2627 = vunpack.c.l.b16 %v2446
        %v2628 = vunpack.c.l.b16 %v2447
        %v2629 = vunpack.c.l.b16 %v2448
        %v2630 = vunpack.c.l.b16 %v2449
        %v2631 = vunpack.c.l.b16 %v2450
        %v2632 = vunpack.c.l.b16 %v2451
        %v2633 = vunpack.c.l.b16 %v2452
        %v2634 = vunpack.c.l.b16 %v2453
        %v2635 = vunpack.c.l.b16 %v2454
        %v2636 = vunpack.c.l.b16 %v2455
        %v2637 = vunpack.c.l.b16 %v2456
        %v2638 = vunpack.c.l.b16 %v2457
        %v2639 = vunpack.c.l.b16 %v2458
        %v2640 = vunpack.c.l.b16 %v2459
        %v2641 = vunpack.c.l.b16 %v2460
        %v2642 = vunpack.c.l.b16 %v2461
        %v2643 = vunpack.c.l.b16 %v2462
        %v2644 = vunpack.c.l.b16 %v2463
        %v2645 = vunpack.c.l.b16 %v2464
        %v2646 = vunpack.c.l.b16 %v2465
        %v2647 = vunpack.c.l.b16 %v2466
        %v2648 = vunpack.c.l.b16 %v2467
        %v2649 = vunpack.c.l.b16 %v2468
        %v2650 = vunpack.c.l.b16 %v2469
        %v2651 = vunpack.c.l.b16 %v2470
        %v2652 = vunpack.c.l.b16 %v2471
        %v2653 = vunpack.c.l.b16 %v2472
        %v2654 = vunpack.c.l.b16 %v2473
        %v2655 = vunpack.c.l.b16 %v2474
        %v2656 = vunpack.c.l.b16 %v2475
        %v2657 = vunpack.c.l.b16 %v2476
        %v2658 = vunpack.c.l.b16 %v2477
        %v2659 = vunpack.c.l.b16 %v2478
        %v2660 = vunpack.c.l.b16 %v2479
        %v2661 = vunpack.c.l.b16 %v2480
        %v2662 = vunpack.c.l.b16 %v2481
        %v2663 = vunpack.c.l.b16 %v2482
        %v2664 = vunpack.c.l.b16 %v2483
        %v2665 = vunpack.c.l.b16 %v2484
        %v2666 = vunpack.c.l.b16 %v2485
        %v2667 = vunpack.c.l.b16 %v2486
        %v2668 = vunpack.c.l.b16 %v2487
        %v2669 = vunpack.c.l.b16 %v2488
        %v2670 = vunpack.c.l.b16 %v2489
        %v2671 = vunpack.c.l.b16 %v2490
        %v2672 = vunpack.c.l.b16 %v2491
        %v2673 = vunpack.c.l.b16 %v2492
        %v2674 = vunpack.c.l.b16 %v2493
        %v2675 = vunpack.c.l.b16 %v2494
        %v2676 = vpack.c.b16 %v2605, %v2604
        %v2677 = vpack.c.b16 %v2607, %v2606
        %v2678 = vpack.c.b16 %v2609, %v2608
        %v2679 = vpack.c.b16 %v2611, %v2610
        %v2680 = vpack.c.b16 %v2613, %v2612
        %v2681 = vpack.c.b16 %v2615, %v2614
        %v2682 = vpack.c.b16 %v2617, %v2616
        %v2683 = vpack.c.b16 %v2619, %v2618
        %v2684 = vpack.c.b16 %v2621, %v2620
        %v2685 = vpack.c.b16 %v2623, %v2622
        %v2686 = vpack.c.b16 %v2625, %v2624
        %v2687 = vpack.c.b16 %v2627, %v2626
        %v2688 = vpack.c.b16 %v2629, %v2628
        %v2689 = vpack.c.b16 %v2631, %v2630
        %v2690 = vpack.c.b16 %v2633, %v2632
        %v2691 = vpack.c.b16 %v2635, %v2634
        %v2692 = vpack.c.b16 %v2637, %v2636
        %v2693 = vpack.c.b16 %v2639, %v2638
        %v2694 = vpack.c.b16 %v2641, %v2640
        %v2695 = vpack.c.b16 %v2643, %v2642
        %v2696 = vpack.c.b16 %v2645, %v2644
        %v2697 = vpack.c.b16 %v2647, %v2646
        %v2698 = vpack.c.b16 %v2649, %v2648
        %v2699 = vpack.c.b16 %v2651, %v2650
        %v2700 = vpack.c.b16 %v2653, %v2652
        %v2701 = vpack.c.b16 %v2655, %v2654
        %v2702 = vpack.c.b16 %v2657, %v2656
        %v2703 = vpack.c.b16 %v2659, %v2658
        %v2704 = vpack.c.b16 %v2661, %v2660
        %v2705 = vpack.c.b16 %v2663, %v2662
        %v2706 = vpack.c.b16 %v2665, %v2664
        %v2707 = vpack.c.b16 %v2667, %v2666
        %v2708 = vpack.c.b16 %v2669, %v2668
        %v2709 = vpack.c.b16 %v2671, %v2670
        %v2710 = vpack.c.b16 %v2673, %v2672
        %v2711 = vpack.c.b16 %v2675, %v2674
        %v2749 = vsel %vm919, %v2506, 0
        %v2752 = vsel %vm919, %v2510, 0
        %v2755 = vsel %vm919, %v2514, 0
        %v2758 = vsel %vm919, %v2518, 0
        %2760 = vmatprep.subr.bf16.mxu0 0
        %2761 = vmatpush1.bf16.msra.mxu0 %v2683
        %2762 = vmatprep.subr.bf16.mxu0 0
        %2763 = vmatpush1.bf16.msra.mxu0 %v2682
        %2764 = vmatprep.subr.bf16.mxu0 0
        %2765 = vmatpush1.bf16.msra.mxu0 %v2681
        %2766 = vmatprep.subr.bf16.mxu0 0
        %2767 = vmatpush1.bf16.msra.mxu0 %v2680
        %2768 = vmatprep.subr.bf16.mxu0 0
        %2769 = vmatpush1.bf16.msra.mxu0 %v2679
        %2770 = vmatprep.subr.bf16.mxu0 0
        %2771 = vmatpush1.bf16.msra.mxu0 %v2678
        %2772 = vmatprep.subr.bf16.mxu0 0
        %2773 = vmatpush1.bf16.msra.mxu0 %v2677
        %2774 = vmatprep.subr.bf16.mxu0 0
        %2775 = vmatpush1.bf16.msra.mxu0 %v2676
        %2776 = vmatprep.subr.bf16.mxu0 0
        %2777 = vmatpush2.bf16.msra.mxu0 %v2691
        %2778 = vmatprep.subr.bf16.mxu0 0
        %2779 = vmatpush2.bf16.msra.mxu0 %v2690
        %2780 = vmatprep.subr.bf16.mxu0 0
        %2781 = vmatpush2.bf16.msra.mxu0 %v2689
        %2782 = vmatprep.subr.bf16.mxu0 0
        %2783 = vmatpush2.bf16.msra.mxu0 %v2688
        %2784 = vmatprep.subr.bf16.mxu0 0
        %2785 = vmatpush2.bf16.msra.mxu0 %v2687
        %2786 = vmatprep.subr.bf16.mxu0 0
        %2787 = vmatpush2.bf16.msra.mxu0 %v2686
        %2788 = vmatprep.subr.bf16.mxu0 0
        %2789 = vmatpush2.bf16.msra.mxu0 %v2685
        %2790 = vmatprep.subr.bf16.mxu0 0
        %2791 = vmatpush2.bf16.msra.mxu0 %v2684
        %2792 = vmatprep.mubr.bf16.mxu0 %v2503
        %2793 = vmatmul.mubr.bf16.gmra.mxu0 %v2502
        %v2794 = vpop.f32.mrf.mxu0
        %v2795 = vadd.f32 %v2500, %v2794
        %v2796 = vpop.f32.mrf.mxu0
        %v2797 = vpop.f32.mrf.mxu0
        %v2798 = vadd.f32 %v2500, %v2797
        %v2799 = vpop.f32.mrf.mxu0
        %2800 = vmatprep.mubr.bf16.mxu0 %v2507
        %2801 = vmatmul.mubr.bf16.gmra.mxu0 %v2505
        %v2802 = vpop.f32.mrf.mxu0
        %v2803 = vadd.f32 %v2500, %v2802
        %v2804 = vpop.f32.mrf.mxu0
        %v2805 = vpop.f32.mrf.mxu0
        %v2806 = vadd.f32 %v2500, %v2805
        %v2807 = vpop.f32.mrf.mxu0
        %2808 = vmatprep.mubr.bf16.mxu0 %v2511
        %2809 = vmatmul.mubr.bf16.gmra.mxu0 %v2509
        %v2810 = vpop.f32.mrf.mxu0
        %v2811 = vadd.f32 %v2500, %v2810
        %v2812 = vpop.f32.mrf.mxu0
        %v2813 = vpop.f32.mrf.mxu0
        %v2814 = vadd.f32 %v2500, %v2813
        %v2815 = vpop.f32.mrf.mxu0
        %2816 = vmatprep.mubr.bf16.mxu0 %v2515
        %2817 = vmatmul.mubr.bf16.gmra.mxu0 %v2513
        %v2818 = vpop.f32.mrf.mxu0
        %v2819 = vadd.f32 %v2500, %v2818
        %v2820 = vpop.f32.mrf.mxu0
        %v2821 = vpop.f32.mrf.mxu0
        %v2822 = vadd.f32 %v2500, %v2821
        %v2823 = vpop.f32.mrf.mxu0
        %2824 = vdwg.mxu0
        %2825 = vmatprep.subr.bf16.mxu0 0
        %2826 = vmatpush1.bf16.msra.mxu0 %v2699
        %2827 = vmatprep.subr.bf16.mxu0 0
        %2828 = vmatpush1.bf16.msra.mxu0 %v2698
        %2829 = vmatprep.subr.bf16.mxu0 0
        %2830 = vmatpush1.bf16.msra.mxu0 %v2697
        %2831 = vmatprep.subr.bf16.mxu0 0
        %2832 = vmatpush1.bf16.msra.mxu0 %v2696
        %2833 = vmatprep.subr.bf16.mxu0 0
        %2834 = vmatpush1.bf16.msra.mxu0 %v2695
        %2835 = vmatprep.subr.bf16.mxu0 0
        %2836 = vmatpush1.bf16.msra.mxu0 %v2694
        %2837 = vmatprep.subr.bf16.mxu0 0
        %2838 = vmatpush1.bf16.msra.mxu0 %v2693
        %2839 = vmatprep.subr.bf16.mxu0 0
        %2840 = vmatpush1.bf16.msra.mxu0 %v2692
        %2841 = vmatprep.subr.bf16.mxu0 0
        %2842 = vmatpush2.bf16.msra.mxu0 %v2707
        %2843 = vmatprep.subr.bf16.mxu0 0
        %2844 = vmatpush2.bf16.msra.mxu0 %v2706
        %2845 = vmatprep.subr.bf16.mxu0 0
        %2846 = vmatpush2.bf16.msra.mxu0 %v2705
        %2847 = vmatprep.subr.bf16.mxu0 0
        %2848 = vmatpush2.bf16.msra.mxu0 %v2704
        %2849 = vmatprep.subr.bf16.mxu0 0
        %2850 = vmatpush2.bf16.msra.mxu0 %v2703
        %2851 = vmatprep.subr.bf16.mxu0 0
        %2852 = vmatpush2.bf16.msra.mxu0 %v2702
        %2853 = vmatprep.subr.bf16.mxu0 0
        %2854 = vmatpush2.bf16.msra.mxu0 %v2701
        %2855 = vmatprep.subr.bf16.mxu0 0
        %2856 = vmatpush2.bf16.msra.mxu0 %v2700
        %2857 = vmatprep.mubr.bf16.mxu0 %v2505
        %2858 = vmatmul.mubr.bf16.gmra.mxu0 %v2504
        %v2859 = vpop.f32.mrf.mxu0
        %v2860 = vadd.f32 %v2795, %v2859
        %v2861 = vpop.f32.mrf.mxu0
        %v2862 = vpop.f32.mrf.mxu0
        %v2863 = vadd.f32 %v2798, %v2862
        %v2864 = vpop.f32.mrf.mxu0
        %2865 = vmatprep.mubr.bf16.mxu0 %v2509
        %2866 = vmatmul.mubr.bf16.gmra.mxu0 %v2508
        %v2867 = vpop.f32.mrf.mxu0
        %v2868 = vadd.f32 %v2803, %v2867
        %v2869 = vpop.f32.mrf.mxu0
        %v2870 = vpop.f32.mrf.mxu0
        %v2871 = vadd.f32 %v2806, %v2870
        %v2872 = vpop.f32.mrf.mxu0
        %2873 = vmatprep.mubr.bf16.mxu0 %v2513
        %2874 = vmatmul.mubr.bf16.gmra.mxu0 %v2512
        %v2875 = vpop.f32.mrf.mxu0
        %v2876 = vadd.f32 %v2811, %v2875
        %v2877 = vpop.f32.mrf.mxu0
        %v2878 = vpop.f32.mrf.mxu0
        %v2879 = vadd.f32 %v2814, %v2878
        %v2880 = vpop.f32.mrf.mxu0
        %2881 = vmatprep.mubr.bf16.mxu0 %v2517
        %2882 = vmatmul.mubr.bf16.gmra.mxu0 %v2516
        %v2883 = vpop.f32.mrf.mxu0
        %v2884 = vadd.f32 %v2819, %v2883
        %v2885 = vpop.f32.mrf.mxu0
        %v2886 = vpop.f32.mrf.mxu0
        %v2887 = vadd.f32 %v2822, %v2886
        %v2888 = vpop.f32.mrf.mxu0
        %2889 = vdwg.mxu0
        %2890 = vmatprep.subr.bf16.mxu0 0
        %2891 = vmatpush1.bf16.msra.mxu0 0
        %2892 = vmatprep.subr.bf16.mxu0 0
        %2893 = vmatpush1.bf16.msra.mxu0 0
        %2894 = vmatprep.subr.bf16.mxu0 0
        %2895 = vmatpush1.bf16.msra.mxu0 0
        %2896 = vmatprep.subr.bf16.mxu0 0
        %2897 = vmatpush1.bf16.msra.mxu0 0
        %2898 = vmatprep.subr.bf16.mxu0 0
        %2899 = vmatpush1.bf16.msra.mxu0 %v2711
        %2900 = vmatprep.subr.bf16.mxu0 0
        %2901 = vmatpush1.bf16.msra.mxu0 %v2710
        %2902 = vmatprep.subr.bf16.mxu0 0
        %2903 = vmatpush1.bf16.msra.mxu0 %v2709
        %2904 = vmatprep.subr.bf16.mxu0 0
        %2905 = vmatpush1.bf16.msra.mxu0 %v2708
        %2906 = vmatprep.subr.bf16.mxu0 0
        %2907 = vmatpush2.bf16.msra.mxu0 0
        %2908 = vmatprep.subr.bf16.mxu0 0
        %2909 = vmatpush2.bf16.msra.mxu0 0
        %2910 = vmatprep.subr.bf16.mxu0 0
        %2911 = vmatpush2.bf16.msra.mxu0 0
        %2912 = vmatprep.subr.bf16.mxu0 0
        %2913 = vmatpush2.bf16.msra.mxu0 0
        %2914 = vmatprep.subr.bf16.mxu0 0
        %2915 = vmatpush2.bf16.msra.mxu0 0
        %2916 = vmatprep.subr.bf16.mxu0 0
        %2917 = vmatpush2.bf16.msra.mxu0 0
        %2918 = vmatprep.subr.bf16.mxu0 0
        %2919 = vmatpush2.bf16.msra.mxu0 0
        %2920 = vmatprep.subr.bf16.mxu0 0
        %2921 = vmatpush2.bf16.msra.mxu0 0
        %2922 = vmatprep.mubr.bf16.mxu0 0
        %2923 = vmatmul.mubr.bf16.gmra.mxu0 %v2749
        %v2924 = vpop.f32.mrf.mxu0
        %v2925 = vadd.f32 %v2860, %v2924
        %v2926 = vpop.f32.mrf.mxu0
        %v2927 = vpop.f32.mrf.mxu0
        %v2928 = vadd.f32 %v2863, %v2927
        %v2929 = vpop.f32.mrf.mxu0
        %2930 = vmatprep.mubr.bf16.mxu0 0
        %2931 = vmatmul.mubr.bf16.gmra.mxu0 %v2752
        %v2932 = vpop.f32.mrf.mxu0
        %v2933 = vadd.f32 %v2868, %v2932
        %v2934 = vpop.f32.mrf.mxu0
        %v2935 = vpop.f32.mrf.mxu0
        %v2936 = vadd.f32 %v2871, %v2935
        %v2937 = vpop.f32.mrf.mxu0
        %2938 = vmatprep.mubr.bf16.mxu0 0
        %2939 = vmatmul.mubr.bf16.gmra.mxu0 %v2755
        %v2940 = vpop.f32.mrf.mxu0
        %v2941 = vadd.f32 %v2876, %v2940
        %v2942 = vpop.f32.mrf.mxu0
        %v2943 = vpop.f32.mrf.mxu0
        %v2944 = vadd.f32 %v2879, %v2943
        %v2945 = vpop.f32.mrf.mxu0
        %2946 = vmatprep.mubr.bf16.mxu0 0
        %2947 = vmatmul.mubr.bf16.gmra.mxu0 %v2758
        %v2948 = vpop.f32.mrf.mxu0
        %v2949 = vadd.f32 %v2884, %v2948
        %v2950 = vpop.f32.mrf.mxu0
        %v2951 = vpop.f32.mrf.mxu0
        %v2952 = vadd.f32 %v2887, %v2951
        %v2953 = vpop.f32.mrf.mxu0
        %2954 = vdwg.mxu0
        %vm2955 = vcmp.gt.f32.partialorder %v2925, 0.0
        %vm2956 = vcmp.gt.f32.partialorder %v2928, 0.0
        %vm2957 = vcmp.gt.f32.partialorder %v2933, 0.0
        %vm2958 = vcmp.gt.f32.partialorder %v2936, 0.0
        %vm2959 = vcmp.gt.f32.partialorder %v2941, 0.0
        %vm2960 = vcmp.gt.f32.partialorder %v2944, 0.0
        %vm2961 = vcmp.gt.f32.partialorder %v2949, 0.0
        %vm2962 = vcmp.gt.f32.partialorder %v2952, 0.0
        %v2963 = vmul.f32 %v2925, 0.01
        %v2964 = vmul.f32 %v2928, 0.01
        %v2965 = vmul.f32 %v2933, 0.01
        %v2966 = vmul.f32 %v2936, 0.01
        %v2967 = vmul.f32 %v2941, 0.01
        %v2968 = vmul.f32 %v2944, 0.01
        %v2969 = vmul.f32 %v2949, 0.01
        %v2970 = vmul.f32 %v2952, 0.01
        %v2971 = vsel %vm2955, %v2925, %v2963
        %v2972 = vsel %vm2956, %v2928, %v2964
        %v2973 = vsel %vm2957, %v2933, %v2965
        %v2974 = vsel %vm2958, %v2936, %v2966
        %v2975 = vsel %vm2959, %v2941, %v2967
        %v2976 = vsel %vm2960, %v2944, %v2968
        %v2977 = vsel %vm2961, %v2949, %v2969
        %v2978 = vsel %vm2962, %v2952, %v2970
        %v2979 = vadd.f32 %v1962, %v2971
        %v2980 = vadd.f32 %v1963, %v2972
        %v2981 = vadd.f32 %v1964, %v2973
        %v2982 = vadd.f32 %v1965, %v2974
        %v2983 = vadd.f32 %v1966, %v2975
        %v2984 = vadd.f32 %v1967, %v2976
        %v2985 = vadd.f32 %v1968, %v2977
        %v2986 = vadd.f32 %v1969, %v2978
        %v2987 = vpack.c.bf16 %v2980, %v2979
        %v2988 = vpack.c.bf16 %v2982, %v2981
        %v2989 = vpack.c.bf16 %v2984, %v2983
        %v2990 = vpack.c.bf16 %v2986, %v2985
        %v2991 = vld [vmem:[#allocation10] sm:$0xf]
        %v2992 = vld [vmem:[#allocation10 + $0x4] sm:$0xf]
        %v2993 = vld [vmem:[#allocation10 + $0x8] sm:$0xf]
        %v2994 = vld [vmem:[#allocation10 + $0xc] sm:$0xf]
        %v2995 = vld [vmem:[#allocation10 + $0x10] sm:$0xf]
        %v2996 = vld [vmem:[#allocation10 + $0x14] sm:$0xf]
        %v2997 = vld [vmem:[#allocation10 + $0x18] sm:$0xf]
        %v2998 = vld [vmem:[#allocation10 + $0x1c] sm:$0xf]
        %v2999 = vld [vmem:[#allocation10 + $0x20] sm:$0xf]
        %v3000 = vld [vmem:[#allocation10 + $0x24] sm:$0xf]
        %v3001 = vld [vmem:[#allocation10 + $0x28] sm:$0xf]
        %v3002 = vld [vmem:[#allocation10 + $0x2c] sm:$0xf]
        %v3003 = vld [vmem:[#allocation10 + $0x30] sm:$0xf]
        %v3004 = vld [vmem:[#allocation10 + $0x34] sm:$0xf]
        %v3005 = vld [vmem:[#allocation10 + $0x38] sm:$0xf]
        %v3006 = vld [vmem:[#allocation10 + $0x3c] sm:$0xf]
        %v3007 = vld [vmem:[%s12] sm:$0x1]
        %v3009 = vlaneseq
        %v3010 = vshrl.u32 %v3009, 7
        %v3011 = vsub.s32 0, %v3010
        %v3012 = vrot.slane %v3007, %v3011
        %v3030 = vunpack.c.l.b16 %v2991
        %v3031 = vunpack.c.l.b16 %v2992
        %v3032 = vunpack.c.l.b16 %v2993
        %v3033 = vunpack.c.l.b16 %v2994
        %v3034 = vunpack.c.l.b16 %v2995
        %v3035 = vunpack.c.l.b16 %v2996
        %v3036 = vunpack.c.l.b16 %v2997
        %v3037 = vunpack.c.l.b16 %v2998
        %v3038 = vunpack.c.l.b16 %v2999
        %v3039 = vunpack.c.l.b16 %v3000
        %v3040 = vunpack.c.l.b16 %v3001
        %v3041 = vunpack.c.l.b16 %v3002
        %v3042 = vunpack.c.l.b16 %v3003
        %v3043 = vunpack.c.l.b16 %v3004
        %v3044 = vunpack.c.l.b16 %v3005
        %v3045 = vunpack.c.l.b16 %v3006
        %v3046 = vpack.c.b16 %v3031, %v3030
        %v3047 = vpack.c.b16 %v3033, %v3032
        %v3048 = vpack.c.b16 %v3035, %v3034
        %v3049 = vpack.c.b16 %v3037, %v3036
        %v3050 = vpack.c.b16 %v3039, %v3038
        %v3051 = vpack.c.b16 %v3041, %v3040
        %v3052 = vpack.c.b16 %v3043, %v3042
        %v3053 = vpack.c.b16 %v3045, %v3044
        %3062 = vmatprep.subr.bf16.mxu0 0
        %3063 = vmatpush1.bf16.msra.mxu0 %v3053
        %3064 = vmatprep.subr.bf16.mxu0 0
        %3065 = vmatpush1.bf16.msra.mxu0 %v3052
        %3066 = vmatprep.subr.bf16.mxu0 0
        %3067 = vmatpush1.bf16.msra.mxu0 %v3051
        %3068 = vmatprep.subr.bf16.mxu0 0
        %3069 = vmatpush1.bf16.msra.mxu0 %v3050
        %3070 = vmatprep.subr.bf16.mxu0 0
        %3071 = vmatpush1.bf16.msra.mxu0 %v3049
        %3072 = vmatprep.subr.bf16.mxu0 0
        %3073 = vmatpush1.bf16.msra.mxu0 %v3048
        %3074 = vmatprep.subr.bf16.mxu0 0
        %3075 = vmatpush1.bf16.msra.mxu0 %v3047
        %3076 = vmatprep.subr.bf16.mxu0 0
        %3077 = vmatpush1.bf16.msra.mxu0 %v3046
        %3078 = vmatprep.subr.bf16.mxu0 0
        %3079 = vmatpush2.bf16.msra.mxu0 0
        %3080 = vmatprep.subr.bf16.mxu0 0
        %3081 = vmatpush2.bf16.msra.mxu0 0
        %3082 = vmatprep.subr.bf16.mxu0 0
        %3083 = vmatpush2.bf16.msra.mxu0 0
        %3084 = vmatprep.subr.bf16.mxu0 0
        %3085 = vmatpush2.bf16.msra.mxu0 0
        %3086 = vmatprep.subr.bf16.mxu0 0
        %3087 = vmatpush2.bf16.msra.mxu0 0
        %3088 = vmatprep.subr.bf16.mxu0 0
        %3089 = vmatpush2.bf16.msra.mxu0 0
        %3090 = vmatprep.subr.bf16.mxu0 0
        %3091 = vmatpush2.bf16.msra.mxu0 0
        %3092 = vmatprep.subr.bf16.mxu0 0
        %3093 = vmatpush2.bf16.msra.mxu0 0
        %3094 = vmatprep.mubr.bf16.mxu0 0
        %3095 = vmatmul.mubr.bf16.gmra.mxu0 %v2987
        %v3096 = vpop.f32.mrf.mxu0
        %v3097 = vadd.f32 %v3012, %v3096
        %v3098 = vpop.f32.mrf.mxu0
        %v3099 = vpop.f32.mrf.mxu0
        %v3100 = vadd.f32 %v3012, %v3099
        %v3101 = vpop.f32.mrf.mxu0
        %3102 = vmatprep.mubr.bf16.mxu0 0
        %3103 = vmatmul.mubr.bf16.gmra.mxu0 %v2988
        %v3104 = vpop.f32.mrf.mxu0
        %v3105 = vadd.f32 %v3012, %v3104
        %v3106 = vpop.f32.mrf.mxu0
        %v3107 = vpop.f32.mrf.mxu0
        %v3108 = vadd.f32 %v3012, %v3107
        %v3109 = vpop.f32.mrf.mxu0
        %3110 = vmatprep.mubr.bf16.mxu0 0
        %3111 = vmatmul.mubr.bf16.gmra.mxu0 %v2989
        %v3112 = vpop.f32.mrf.mxu0
        %v3113 = vadd.f32 %v3012, %v3112
        %v3114 = vpop.f32.mrf.mxu0
        %v3115 = vpop.f32.mrf.mxu0
        %v3116 = vadd.f32 %v3012, %v3115
        %v3117 = vpop.f32.mrf.mxu0
        %3118 = vmatprep.mubr.bf16.mxu0 0
        %3119 = vmatmul.mubr.bf16.gmra.mxu0 %v2990
        %v3120 = vpop.f32.mrf.mxu0
        %v3121 = vadd.f32 %v3012, %v3120
        %v3122 = vpop.f32.mrf.mxu0
        %v3123 = vpop.f32.mrf.mxu0
        %v3124 = vadd.f32 %v3012, %v3123
        %v3125 = vpop.f32.mrf.mxu0
        %3126 = vdwg.mxu0
        %vm3127 = vcmp.gt.f32.partialorder %v3097, 0.0
        %vm3128 = vcmp.gt.f32.partialorder %v3100, 0.0
        %vm3129 = vcmp.gt.f32.partialorder %v3105, 0.0
        %vm3130 = vcmp.gt.f32.partialorder %v3108, 0.0
        %vm3131 = vcmp.gt.f32.partialorder %v3113, 0.0
        %vm3132 = vcmp.gt.f32.partialorder %v3116, 0.0
        %vm3133 = vcmp.gt.f32.partialorder %v3121, 0.0
        %vm3134 = vcmp.gt.f32.partialorder %v3124, 0.0
        %v3135 = vmul.f32 %v3097, 0.01
        %v3136 = vmul.f32 %v3100, 0.01
        %v3137 = vmul.f32 %v3105, 0.01
        %v3138 = vmul.f32 %v3108, 0.01
        %v3139 = vmul.f32 %v3113, 0.01
        %v3140 = vmul.f32 %v3116, 0.01
        %v3141 = vmul.f32 %v3121, 0.01
        %v3142 = vmul.f32 %v3124, 0.01
        %v3143 = vsel %vm3127, %v3097, %v3135
        %v3144 = vsel %vm3128, %v3100, %v3136
        %v3145 = vsel %vm3129, %v3105, %v3137
        %v3146 = vsel %vm3130, %v3108, %v3138
        %v3147 = vsel %vm3131, %v3113, %v3139
        %v3148 = vsel %vm3132, %v3116, %v3140
        %v3149 = vsel %vm3133, %v3121, %v3141
        %v3150 = vsel %vm3134, %v3124, %v3142
        %v3151 = vpack.c.bf16 %v1803, %v1802
        %v3152 = vpack.c.bf16 %v1805, %v1804
        %v3153 = vpack.c.bf16 %v1807, %v1806
        %v3154 = vpack.c.bf16 %v1809, %v1808
        %v3155 = vld [vmem:[#allocation11] sm:$0xf]
        %v3156 = vld [vmem:[#allocation11 + $0x4] sm:$0xf]
        %v3157 = vld [vmem:[#allocation11 + $0x8] sm:$0xf]
        %v3158 = vld [vmem:[#allocation11 + $0xc] sm:$0xf]
        %v3159 = vld [vmem:[#allocation11 + $0x10] sm:$0xf]
        %v3160 = vld [vmem:[#allocation11 + $0x14] sm:$0xf]
        %v3161 = vld [vmem:[#allocation11 + $0x18] sm:$0xf]
        %v3162 = vld [vmem:[#allocation11 + $0x1c] sm:$0xf]
        %v3163 = vld [vmem:[#allocation11 + $0x20] sm:$0xf]
        %v3164 = vld [vmem:[#allocation11 + $0x24] sm:$0xf]
        %v3165 = vld [vmem:[#allocation11 + $0x28] sm:$0xf]
        %v3166 = vld [vmem:[#allocation11 + $0x2c] sm:$0xf]
        %v3167 = vld [vmem:[#allocation11 + $0x30] sm:$0xf]
        %v3168 = vld [vmem:[#allocation11 + $0x34] sm:$0xf]
        %v3169 = vld [vmem:[#allocation11 + $0x38] sm:$0xf]
        %v3170 = vld [vmem:[#allocation11 + $0x3c] sm:$0xf]
        %v3171 = vpack.c.bf16 %v3144, %v3143
        %v3172 = vpack.c.bf16 %v3146, %v3145
        %v3173 = vpack.c.bf16 %v3148, %v3147
        %v3174 = vpack.c.bf16 %v3150, %v3149
        %v3175 = vld [vmem:[#allocation13] sm:$0xf]
        %v3176 = vld [vmem:[#allocation13 + $0x4] sm:$0xf]
        %v3177 = vld [vmem:[#allocation13 + $0x8] sm:$0xf]
        %v3178 = vld [vmem:[#allocation13 + $0xc] sm:$0xf]
        %v3179 = vld [vmem:[#allocation13 + $0x10] sm:$0xf]
        %v3180 = vld [vmem:[#allocation13 + $0x14] sm:$0xf]
        %v3181 = vld [vmem:[#allocation13 + $0x18] sm:$0xf]
        %v3182 = vld [vmem:[#allocation13 + $0x1c] sm:$0xf]
        %v3183 = vld [vmem:[#allocation13 + $0x20] sm:$0xf]
        %v3184 = vld [vmem:[#allocation13 + $0x24] sm:$0xf]
        %v3185 = vld [vmem:[#allocation13 + $0x28] sm:$0xf]
        %v3186 = vld [vmem:[#allocation13 + $0x2c] sm:$0xf]
        %v3187 = vld [vmem:[#allocation13 + $0x30] sm:$0xf]
        %v3188 = vld [vmem:[#allocation13 + $0x34] sm:$0xf]
        %v3189 = vld [vmem:[#allocation13 + $0x38] sm:$0xf]
        %v3190 = vld [vmem:[#allocation13 + $0x3c] sm:$0xf]
        %v3207 = vunpack.c.l.b16 %v3175
        %v3208 = vunpack.c.l.b16 %v3176
        %v3209 = vunpack.c.l.b16 %v3177
        %v3210 = vunpack.c.l.b16 %v3178
        %v3211 = vunpack.c.l.b16 %v3179
        %v3212 = vunpack.c.l.b16 %v3180
        %v3213 = vunpack.c.l.b16 %v3181
        %v3214 = vunpack.c.l.b16 %v3182
        %v3215 = vunpack.c.l.b16 %v3183
        %v3216 = vunpack.c.l.b16 %v3184
        %v3217 = vunpack.c.l.b16 %v3185
        %v3218 = vunpack.c.l.b16 %v3186
        %v3219 = vunpack.c.l.b16 %v3187
        %v3220 = vunpack.c.l.b16 %v3188
        %v3221 = vunpack.c.l.b16 %v3189
        %v3222 = vunpack.c.l.b16 %v3190
        %v3223 = vpack.c.b16 %v3208, %v3207
        %v3224 = vpack.c.b16 %v3210, %v3209
        %v3225 = vpack.c.b16 %v3212, %v3211
        %v3226 = vpack.c.b16 %v3214, %v3213
        %v3227 = vpack.c.b16 %v3216, %v3215
        %v3228 = vpack.c.b16 %v3218, %v3217
        %v3229 = vpack.c.b16 %v3220, %v3219
        %v3230 = vpack.c.b16 %v3222, %v3221
        %3239 = vmatprep.subr.bf16.mxu0 0
        %3240 = vmatpush1.bf16.msra.mxu0 %v3230
        %3241 = vmatprep.subr.bf16.mxu0 0
        %3242 = vmatpush1.bf16.msra.mxu0 %v3229
        %3243 = vmatprep.subr.bf16.mxu0 0
        %3244 = vmatpush1.bf16.msra.mxu0 %v3228
        %3245 = vmatprep.subr.bf16.mxu0 0
        %3246 = vmatpush1.bf16.msra.mxu0 %v3227
        %3247 = vmatprep.subr.bf16.mxu0 0
        %3248 = vmatpush1.bf16.msra.mxu0 %v3226
        %3249 = vmatprep.subr.bf16.mxu0 0
        %3250 = vmatpush1.bf16.msra.mxu0 %v3225
        %3251 = vmatprep.subr.bf16.mxu0 0
        %3252 = vmatpush1.bf16.msra.mxu0 %v3224
        %3253 = vmatprep.subr.bf16.mxu0 0
        %3254 = vmatpush1.bf16.msra.mxu0 %v3223
        %3255 = vmatprep.subr.bf16.mxu0 0
        %3256 = vmatpush2.bf16.msra.mxu0 0
        %3257 = vmatprep.subr.bf16.mxu0 0
        %3258 = vmatpush2.bf16.msra.mxu0 0
        %3259 = vmatprep.subr.bf16.mxu0 0
        %3260 = vmatpush2.bf16.msra.mxu0 0
        %3261 = vmatprep.subr.bf16.mxu0 0
        %3262 = vmatpush2.bf16.msra.mxu0 0
        %3263 = vmatprep.subr.bf16.mxu0 0
        %3264 = vmatpush2.bf16.msra.mxu0 0
        %3265 = vmatprep.subr.bf16.mxu0 0
        %3266 = vmatpush2.bf16.msra.mxu0 0
        %3267 = vmatprep.subr.bf16.mxu0 0
        %3268 = vmatpush2.bf16.msra.mxu0 0
        %3269 = vmatprep.subr.bf16.mxu0 0
        %3270 = vmatpush2.bf16.msra.mxu0 0
        %3271 = vmatprep.mubr.bf16.mxu0 0
        %3272 = vmatmul.mubr.bf16.gmra.mxu0 %v3171
        %v3273 = vpop.f32.mrf.mxu0
        %v3274 = vadd.f32 0.0, %v3273
        %v3275 = vpop.f32.mrf.mxu0
        %v3276 = vpop.f32.mrf.mxu0
        %v3277 = vadd.f32 0.0, %v3276
        %v3278 = vpop.f32.mrf.mxu0
        %3279 = vmatprep.mubr.bf16.mxu0 0
        %3280 = vmatmul.mubr.bf16.gmra.mxu0 %v3172
        %v3281 = vpop.f32.mrf.mxu0
        %v3282 = vadd.f32 0.0, %v3281
        %v3283 = vpop.f32.mrf.mxu0
        %v3284 = vpop.f32.mrf.mxu0
        %v3285 = vadd.f32 0.0, %v3284
        %v3286 = vpop.f32.mrf.mxu0
        %3287 = vmatprep.mubr.bf16.mxu0 0
        %3288 = vmatmul.mubr.bf16.gmra.mxu0 %v3173
        %v3289 = vpop.f32.mrf.mxu0
        %v3290 = vadd.f32 0.0, %v3289
        %v3291 = vpop.f32.mrf.mxu0
        %v3292 = vpop.f32.mrf.mxu0
        %v3293 = vadd.f32 0.0, %v3292
        %v3294 = vpop.f32.mrf.mxu0
        %3295 = vmatprep.mubr.bf16.mxu0 0
        %3296 = vmatmul.mubr.bf16.gmra.mxu0 %v3174
        %v3297 = vpop.f32.mrf.mxu0
        %v3298 = vadd.f32 0.0, %v3297
        %v3299 = vpop.f32.mrf.mxu0
        %v3300 = vpop.f32.mrf.mxu0
        %v3301 = vadd.f32 0.0, %v3300
        %v3302 = vpop.f32.mrf.mxu0
        %3303 = vdwg.mxu0
        %v3320 = vunpack.c.l.b16 %v3155
        %v3321 = vunpack.c.l.b16 %v3156
        %v3322 = vunpack.c.l.b16 %v3157
        %v3323 = vunpack.c.l.b16 %v3158
        %v3324 = vunpack.c.l.b16 %v3159
        %v3325 = vunpack.c.l.b16 %v3160
        %v3326 = vunpack.c.l.b16 %v3161
        %v3327 = vunpack.c.l.b16 %v3162
        %v3328 = vunpack.c.l.b16 %v3163
        %v3329 = vunpack.c.l.b16 %v3164
        %v3330 = vunpack.c.l.b16 %v3165
        %v3331 = vunpack.c.l.b16 %v3166
        %v3332 = vunpack.c.l.b16 %v3167
        %v3333 = vunpack.c.l.b16 %v3168
        %v3334 = vunpack.c.l.b16 %v3169
        %v3335 = vunpack.c.l.b16 %v3170
        %v3336 = vpack.c.b16 %v3321, %v3320
        %v3337 = vpack.c.b16 %v3323, %v3322
        %v3338 = vpack.c.b16 %v3325, %v3324
        %v3339 = vpack.c.b16 %v3327, %v3326
        %v3340 = vpack.c.b16 %v3329, %v3328
        %v3341 = vpack.c.b16 %v3331, %v3330
        %v3342 = vpack.c.b16 %v3333, %v3332
        %v3343 = vpack.c.b16 %v3335, %v3334
        %3352 = vmatprep.subr.bf16.mxu0 0
        %3353 = vmatpush1.bf16.msra.mxu0 %v3343
        %3354 = vmatprep.subr.bf16.mxu0 0
        %3355 = vmatpush1.bf16.msra.mxu0 %v3342
        %3356 = vmatprep.subr.bf16.mxu0 0
        %3357 = vmatpush1.bf16.msra.mxu0 %v3341
        %3358 = vmatprep.subr.bf16.mxu0 0
        %3359 = vmatpush1.bf16.msra.mxu0 %v3340
        %3360 = vmatprep.subr.bf16.mxu0 0
        %3361 = vmatpush1.bf16.msra.mxu0 %v3339
        %3362 = vmatprep.subr.bf16.mxu0 0
        %3363 = vmatpush1.bf16.msra.mxu0 %v3338
        %3364 = vmatprep.subr.bf16.mxu0 0
        %3365 = vmatpush1.bf16.msra.mxu0 %v3337
        %3366 = vmatprep.subr.bf16.mxu0 0
        %3367 = vmatpush1.bf16.msra.mxu0 %v3336
        %3368 = vmatprep.subr.bf16.mxu0 0
        %3369 = vmatpush2.bf16.msra.mxu0 0
        %3370 = vmatprep.subr.bf16.mxu0 0
        %3371 = vmatpush2.bf16.msra.mxu0 0
        %3372 = vmatprep.subr.bf16.mxu0 0
        %3373 = vmatpush2.bf16.msra.mxu0 0
        %3374 = vmatprep.subr.bf16.mxu0 0
        %3375 = vmatpush2.bf16.msra.mxu0 0
        %3376 = vmatprep.subr.bf16.mxu0 0
        %3377 = vmatpush2.bf16.msra.mxu0 0
        %3378 = vmatprep.subr.bf16.mxu0 0
        %3379 = vmatpush2.bf16.msra.mxu0 0
        %3380 = vmatprep.subr.bf16.mxu0 0
        %3381 = vmatpush2.bf16.msra.mxu0 0
        %3382 = vmatprep.subr.bf16.mxu0 0
        %3383 = vmatpush2.bf16.msra.mxu0 0
        %3384 = vmatprep.mubr.bf16.mxu0 0
        %3385 = vmatmul.mubr.bf16.gmra.mxu0 %v3151
        %v3386 = vpop.f32.mrf.mxu0
        %v3387 = vadd.f32 %v3274, %v3386
        %v3388 = vpop.f32.mrf.mxu0
        %v3389 = vpop.f32.mrf.mxu0
        %v3390 = vadd.f32 %v3277, %v3389
        %v3391 = vpop.f32.mrf.mxu0
        %3392 = vmatprep.mubr.bf16.mxu0 0
        %3393 = vmatmul.mubr.bf16.gmra.mxu0 %v3152
        %v3394 = vpop.f32.mrf.mxu0
        %v3395 = vadd.f32 %v3282, %v3394
        %v3396 = vpop.f32.mrf.mxu0
        %v3397 = vpop.f32.mrf.mxu0
        %v3398 = vadd.f32 %v3285, %v3397
        %v3399 = vpop.f32.mrf.mxu0
        %3400 = vmatprep.mubr.bf16.mxu0 0
        %3401 = vmatmul.mubr.bf16.gmra.mxu0 %v3153
        %v3402 = vpop.f32.mrf.mxu0
        %v3403 = vadd.f32 %v3290, %v3402
        %v3404 = vpop.f32.mrf.mxu0
        %v3405 = vpop.f32.mrf.mxu0
        %v3406 = vadd.f32 %v3293, %v3405
        %v3407 = vpop.f32.mrf.mxu0
        %3408 = vmatprep.mubr.bf16.mxu0 0
        %3409 = vmatmul.mubr.bf16.gmra.mxu0 %v3154
        %v3410 = vpop.f32.mrf.mxu0
        %v3411 = vadd.f32 %v3298, %v3410
        %v3412 = vpop.f32.mrf.mxu0
        %v3413 = vpop.f32.mrf.mxu0
        %v3414 = vadd.f32 %v3301, %v3413
        %v3415 = vpop.f32.mrf.mxu0
        %3416 = vdwg.mxu0
        %v3417 = vld [vmem:[%s15] sm:$0x1]
        %v3419 = vlaneseq
        %v3420 = vshrl.u32 %v3419, 7
        %v3421 = vsub.s32 0, %v3420
        %v3422 = vrot.slane %v3417, %v3421
        %v3424 = vadd.f32 %v3387, %v3422
        %v3425 = vadd.f32 %v3390, %v3422
        %v3426 = vadd.f32 %v3395, %v3422
        %v3427 = vadd.f32 %v3398, %v3422
        %v3428 = vadd.f32 %v3403, %v3422
        %v3429 = vadd.f32 %v3406, %v3422
        %v3430 = vadd.f32 %v3411, %v3422
        %v3431 = vadd.f32 %v3414, %v3422
        %vm3432 = vcmp.gt.f32.partialorder %v3424, 0.0
        %vm3433 = vcmp.gt.f32.partialorder %v3425, 0.0
        %vm3434 = vcmp.gt.f32.partialorder %v3426, 0.0
        %vm3435 = vcmp.gt.f32.partialorder %v3427, 0.0
        %vm3436 = vcmp.gt.f32.partialorder %v3428, 0.0
        %vm3437 = vcmp.gt.f32.partialorder %v3429, 0.0
        %vm3438 = vcmp.gt.f32.partialorder %v3430, 0.0
        %vm3439 = vcmp.gt.f32.partialorder %v3431, 0.0
        %v3440 = vmul.f32 %v3424, 0.01
        %v3441 = vmul.f32 %v3425, 0.01
        %v3442 = vmul.f32 %v3426, 0.01
        %v3443 = vmul.f32 %v3427, 0.01
        %v3444 = vmul.f32 %v3428, 0.01
        %v3445 = vmul.f32 %v3429, 0.01
        %v3446 = vmul.f32 %v3430, 0.01
        %v3447 = vmul.f32 %v3431, 0.01
        %v3448 = vsel %vm3432, %v3424, %v3440
        %v3449 = vsel %vm3433, %v3425, %v3441
        %v3450 = vsel %vm3434, %v3426, %v3442
        %v3451 = vsel %vm3435, %v3427, %v3443
        %v3452 = vsel %vm3436, %v3428, %v3444
        %v3453 = vsel %vm3437, %v3429, %v3445
        %v3454 = vsel %vm3438, %v3430, %v3446
        %v3455 = vsel %vm3439, %v3431, %v3447
        %3456 = vst [vmem:[%s626] sm:$0xff] %v3448
        %3457 = vst [vmem:[%s626 + $0x8] sm:$0xff] %v3449
        %3458 = vst [vmem:[%s626 + $0x10] sm:$0xff] %v3450
        %3459 = vst [vmem:[%s626 + $0x18] sm:$0xff] %v3451
        %3460 = vst [vmem:[%s626 + $0x20] sm:$0xff] %v3452
        %3461 = vst [vmem:[%s626 + $0x28] sm:$0xff] %v3453
        %3462 = vst [vmem:[%s626 + $0x30] sm:$0xff] %v3454
        %3463 = vst [vmem:[%s626 + $0x38] sm:$0xff] %v3455
        %s3464 = sand.u32 %s385, 1
        %s3465 = scalar_lea.sflag [#allocation4], %s3464
        %s3466 = sand.u32 %s385, 1
        %s3467 = smul.addr %s3466, 64
        %s3468 = scalar_lea.vmem [#allocation14], %s3467
        // Predicated region
        $region113: #{tpu_custom_call.1} parent=83 // pred_check
          %p3469 = pneg %p395
        $region114: #{tpu_custom_call.1} parent=83 // pred_check_branch
          %3471 = sbr.rel (%p3469) target = $region116
        $region115: #{tpu_custom_call.1} parent=83 // pred_region
          %s3473 = ssub.s32 1024, 1024
          %3474 = vsyncadd %s3465, %s3473
          %s3475 = smul.addr %s36, 8
          %s3476 = smul.addr %s3475, 128
          %s3477 = scalar_lea.hbm %s16, %s3476
          %s3478 = sshll.u32 %s3468, 4
          %s3479 = int_to_ptr.vmem [resolvable:$true] %s3478
          %3484 = dma.vmem_to_hbm [thread:$0]  %s3479, 1024, %s3477, %s3465, 128, 128, 8
        $region116: #{tpu_custom_call.1} parent=83 // pred_fallthru
          _
      $region84: #{tpu_custom_call.1} parent=5 // pred_fallthru
        _
      %p3485 = scmp.le.s32.totalorder 2, %s31
      // Predicated region
      $region117: #{tpu_custom_call.1} parent=5 // pred_check
        %p3486 = pneg %p3485
      $region118: #{tpu_custom_call.1} parent=5 // pred_check_branch
        %3488 = sbr.rel (%p3486) target = $region120
      $region119: #{tpu_custom_call.1} parent=5 // pred_region
        %s3489 = ssub.s32 %s31, 2
        // Predicated region
        $region121: #{tpu_custom_call.1} parent=119 // pred_check
          %p3490 = pneg %p401
        $region122: #{tpu_custom_call.1} parent=119 // pred_check_branch
          %3492 = sbr.rel (%p3490) target = $region124
        $region123: #{tpu_custom_call.1} parent=119 // pred_region
          %s3493 = sand.u32 %s386, 1
          %s3494 = scalar_lea.sflag [#allocation4], %s3493
          %s3495 = sand.u32 %s386, 1
          %s3496 = smul.addr %s3495, 64
          %s3497 = scalar_lea.vmem [#allocation14], %s3496
          %3498 = dma.done %s3494, 1024
        $region124: #{tpu_custom_call.1} parent=119 // pred_fallthru
          _
      $region120: #{tpu_custom_call.1} parent=5 // pred_fallthru
        _
    $region6: #{tpu_custom_call.1} parent=1 // loop_footer
      %s35 = sadd.s32 1, %s31
    $region7: #{tpu_custom_call.1} parent=1 // loop_footer_branch
      %30 = sbr.rel target = $region3
    $region8: #{tpu_custom_call.1} parent=1 // loop_exit
      _
    %3499 = vsyncpa [#allocation3], 1
    %s3500 = scalar_lea.sflag [#allocation3], 1
    %3501 = vsyncpa %s3500, 1
    %3502 = vsyncpa [#allocation6], 1
    %3503 = vsyncpa [#allocation9], 1
    %3504 = vsyncpa [#allocation12], 1
    %3505 = vsyncpa [#allocation4], 1
    %s3506 = scalar_lea.sflag [#allocation4], 1
    %3507 = vsyncpa %s3506, 1

</llo_original>
